<compile_context>
chip_gen: v5e
topology: v5e:2x2
jax: 0.10.0
libtpu: 0.0.40
codegen_flags: <defaults>
</compile_context>

<pallas_src>
import jax
import jax.numpy as jnp
import numpy as np
from jax import lax
from jax.experimental import pallas as pl
from jax.experimental.pallas import tpu as pltpu


# --------------------------------------------------------------------------
# Fused Pallas kernel: per-split multi-layer self-attention + residual + LN
# + sequence mean pool + DeepEnsemble MLP head.  Whole problem in one call.
# --------------------------------------------------------------------------
def _make_fused_kernel(split_n: int, num_layers: int, D: int, B: int, S: int, C: int):
    def kernel(x_ref, mask_ref, wqkv_ref, g_ref, b_ref,
               w1_ref, b1_ref, w2_ref, b2_ref, w3_ref, b3_ref, o_ref):
        # x_ref   : (split_n, B, S, D) f32
        # mask_ref: (B, S)             int32 (1 attendable / 0 masked)
        # wqkv_ref: (split_n, L, D, 3D) bf16, Q columns pre-scaled by D**-0.5
        # g_ref/b_ref : (split_n, L, D) f32 LayerNorm gamma / beta
        # w*/b*   : DeepEnsemble meta-classifier (weights bf16, biases f32)
        # o_ref   : (B, C) f32 logits
        m = mask_ref[...]                                       # (B, S) int32
        # mask & mask^T, hoisted out of split/layer loops (torch masked_fill semantics)
        keep = (m[:, :, None] != 0) & (m[:, None, :] != 0)      # (B, S, S) bool

        pooled = []
        for s in range(split_n):
            x = x_ref[s]                                        # (B, S, D) f32
            for l in range(num_layers):
                w = wqkv_ref[s, l]                              # (D, 3D) bf16
                # Fold (B, S) into the matmul M dim -> one MXU push per layer.
                x2 = x.reshape(B * S, D).astype(jnp.bfloat16)
                qkv = jnp.dot(x2, w, preferred_element_type=jnp.float32)
                qkv = qkv.reshape(B, S, 3 * D)
                q = qkv[:, :, 0 * D:1 * D]                      # already scaled
                k = qkv[:, :, 1 * D:2 * D]
                v = qkv[:, :, 2 * D:3 * D]

                # Batched scores; no explicit k^T materialized.
                energy = jnp.einsum("bqd,bkd->bqk",
                                    q.astype(jnp.bfloat16), k.astype(jnp.bfloat16),
                                    preferred_element_type=jnp.float32)
                energy = jnp.where(keep, energy, -1e20)         # literal -> no capture

                # softmax over keys (exact divide for parity with the reference)
                emax = jnp.max(energy, axis=-1, keepdims=True)
                p = jnp.exp(energy - emax)
                attn = p / jnp.sum(p, axis=-1, keepdims=True)

                out = jnp.einsum("bqk,bkd->bqd",
                                 attn.astype(jnp.bfloat16), v.astype(jnp.bfloat16),
                                 preferred_element_type=jnp.float32)

                # residual + LayerNorm (eps = 1e-5, PyTorch default), f32
                y = x + out
                mu = jnp.mean(y, axis=-1, keepdims=True)
                var = jnp.mean((y - mu) ** 2, axis=-1, keepdims=True)
                x = (y - mu) * lax.rsqrt(var + 1e-5) * g_ref[s, l] + b_ref[s, l]

            # mean over sequence (includes masked positions, as in torch)
            pooled.append(jnp.mean(x, axis=1))                  # (B, D)

        # DeepEnsemble meta-classifier fused in (Linear-ReLU-Linear-ReLU-Linear)
        flat = jnp.concatenate(pooled, axis=-1)                 # (B, split_n*D)
        h = jnp.dot(flat.astype(jnp.bfloat16), w1_ref[...],
                    preferred_element_type=jnp.float32) + b1_ref[...]
        h = jnp.maximum(h, 0.0)
        h = jnp.dot(h.astype(jnp.bfloat16), w2_ref[...],
                    preferred_element_type=jnp.float32) + b2_ref[...]
        h = jnp.maximum(h, 0.0)
        o_ref[...] = jnp.dot(h.astype(jnp.bfloat16), w3_ref[...],
                             preferred_element_type=jnp.float32) + b3_ref[...]

    return kernel


def fused_forward(x, mask, wqkv, ln_g, ln_b, w1, b1, w2, b2, w3, b3):
    split_n, B, S, D = x.shape
    L = wqkv.shape[1]
    C = w3.shape[-1]
    kernel = _make_fused_kernel(split_n, L, D, B, S, C)
    vmem = lambda: pl.BlockSpec(memory_space=pltpu.MemorySpace.VMEM)
    return pl.pallas_call(
        kernel,
        out_shape=jax.ShapeDtypeStruct((B, C), jnp.float32),
        in_specs=[vmem() for _ in range(11)],
        out_specs=vmem(),
    )(x, mask, wqkv, ln_g, ln_b, w1, b1, w2, b2, w3, b3)


# --------------------------------------------------------------------------
# Full forward (embedding gather + split happen in the XLA wrapper)
# --------------------------------------------------------------------------
def model_forward(params, input_ids, attention_mask):
    B, S = input_ids.shape
    split_n, L, D, _ = params["wqkv_k"].shape

    emb = jnp.take(params["embedding"], input_ids, axis=0)        # (B, S, E)
    x = jnp.transpose(emb.reshape(B, S, split_n, D), (2, 0, 1, 3))  # (split_n, B, S, D)
    mask = attention_mask.astype(jnp.int32)                        # (B, S) only

    return fused_forward(x, mask,
                         params["wqkv_k"], params["ln_g"], params["ln_b"],
                         params["w1_k"], params["b1"], params["w2_k"], params["b2"],
                         params["w3_k"], params["b3"])


# --------------------------------------------------------------------------
# Pure-JAX f32 reference (mirrors the PyTorch forward exactly)
# --------------------------------------------------------------------------
def reference_forward(params, input_ids, attention_mask):
    B, S = input_ids.shape
    split_n, L, D, _ = params["wq"].shape

    emb = params["embedding"][input_ids]
    x_all = jnp.transpose(emb.reshape(B, S, split_n, D), (0, 2, 1, 3))
    m = attention_mask.astype(jnp.float32)
    mm = m[:, :, None] * m[:, None, :]

    outs = []
    for i in range(split_n):
        x = x_all[:, i]
        for l in range(L):
            q = x @ params["wq"][i, l]
            k = x @ params["wk"][i, l]
            v = x @ params["wv"][i, l]
            e = jnp.einsum("bqd,bkd->bqk", q, k) / (D ** 0.5)
            e = jnp.where(mm == 0.0, -1e20, e)
            a = jax.nn.softmax(e, axis=-1)
            o = jnp.einsum("bqk,bkd->bqd", a, v)
            y = x + o
            mu = y.mean(-1, keepdims=True)
            var = ((y - mu) ** 2).mean(-1, keepdims=True)
            x = (y - mu) / jnp.sqrt(var + 1e-5) * params["ln_g"][i, l] + params["ln_b"][i, l]
        outs.append(x.mean(axis=1))
    cl = jnp.stack(outs, axis=1)
    flat = cl.reshape(B, -1)
    h = jax.nn.relu(flat @ params["w1"] + params["b1"][0])
    h = jax.nn.relu(h @ params["w2"] + params["b2"][0])
    return h @ params["w3"] + params["b3"][0]


# --------------------------------------------------------------------------
# Deterministic parameter init (f32 reference weights + kernel-format weights)
# --------------------------------------------------------------------------
def init_params(key, vocab_size, embed_size, split_n, num_layers, num_classes):
    D = embed_size // split_n
    ks = jax.random.split(key, 10)
    wq = jax.random.normal(ks[1], (split_n, num_layers, D, D), jnp.float32) * (D ** -0.5)
    wk = jax.random.normal(ks[2], (split_n, num_layers, D, D), jnp.float32) * (D ** -0.5)
    wv = jax.random.normal(ks[3], (split_n, num_layers, D, D), jnp.float32) * (D ** -0.5)
    w1 = jax.random.normal(ks[4], (split_n * D, D), jnp.float32) * 0.05
    b1 = jax.random.normal(ks[5], (1, D), jnp.float32) * 0.01
    w2 = jax.random.normal(ks[6], (D, D), jnp.float32) * 0.05
    b2 = jax.random.normal(ks[7], (1, D), jnp.float32) * 0.01
    w3 = jax.random.normal(ks[8], (D, num_classes), jnp.float32) * 0.05
    b3 = jax.random.normal(ks[9], (1, num_classes), jnp.float32) * 0.01

    # Kernel-format weights: Q|K|V fused along the out dim, 1/sqrt(D) folded
    # into the Q columns at init, cast to bf16 (MXU-native, half the DMA bytes).
    wqkv_k = jnp.concatenate([wq * (D ** -0.5), wk, wv], axis=-1).astype(jnp.bfloat16)

    return {
        "embedding": jax.random.normal(ks[0], (vocab_size, embed_size), jnp.float32) * 0.02,
        # f32 reference weights (pre-transposed (in, out), like torch .weight.T)
        "wq": wq, "wk": wk, "wv": wv,
        "ln_g": jnp.ones((split_n, num_layers, D), jnp.float32),
        "ln_b": jnp.zeros((split_n, num_layers, D), jnp.float32),
        "w1": w1, "b1": b1, "w2": w2, "b2": b2, "w3": w3, "b3": b3,
        # kernel-format weights
        "wqkv_k": wqkv_k,
        "w1_k": w1.astype(jnp.bfloat16),
        "w2_k": w2.astype(jnp.bfloat16),
        "w3_k": w3.astype(jnp.bfloat16),
    }


if __name__ == "__main__":
    # Small configuration consistent with the module structure:
    #   embed_size / split_n == split_dim (here 256 / 2 = 128, lane-aligned)
    vocab_size = 512
    embed_size = 256
    split_n = 2
    num_layers = 3
    num_classes = 7
    B, S = 2, 8

    key = jax.random.PRNGKey(0)
    pkey, idkey = jax.random.split(key)
    params = init_params(pkey, vocab_size, embed_size, split_n, num_layers, num_classes)

    input_ids = jax.random.randint(idkey, (B, S), 0, vocab_size, dtype=jnp.int32)
    attention_mask = jnp.ones((B, S), jnp.int32).at[1, -3:].set(0)   # mask tail of batch 1

    out = jax.block_until_ready(model_forward(params, input_ids, attention_mask))
    ref = jax.block_until_ready(reference_forward(params, input_ids, attention_mask))

    assert out.shape == (B, num_classes), out.shape
    # Tolerance reflects bf16 MXU operands (weights + activations rounded to bf16,
    # f32 accumulation) vs. the pure-f32 reference.
    err = np.abs(np.asarray(out) - np.asarray(ref)).max()
    assert np.allclose(np.asarray(out), np.asarray(ref), rtol=2e-2, atol=2e-2), (
        f"mismatch vs reference, max abs err={err}")

    print("KERNEL_OK")
</pallas_src>

<mosaic_0001>
module attributes {stable_mosaic.version = 11 : i64} {
  func.func @kernel(%arg0: memref<2x2x8x128xf32, #tpu.memory_space<vmem>>, %arg1: memref<2x8xi32, #tpu.memory_space<vmem>>, %arg2: memref<2x3x128x384xbf16, #tpu.memory_space<vmem>>, %arg3: memref<2x3x128xf32, #tpu.memory_space<vmem>>, %arg4: memref<2x3x128xf32, #tpu.memory_space<vmem>>, %arg5: memref<256x128xbf16, #tpu.memory_space<vmem>>, %arg6: memref<1x128xf32, #tpu.memory_space<vmem>>, %arg7: memref<128x128xbf16, #tpu.memory_space<vmem>>, %arg8: memref<1x128xf32, #tpu.memory_space<vmem>>, %arg9: memref<128x7xbf16, #tpu.memory_space<vmem>>, %arg10: memref<1x7xf32, #tpu.memory_space<vmem>>, %arg11: memref<2x7xf32, #tpu.memory_space<vmem>>) attributes {dimension_semantics = [], scalar_prefetch = 0 : i64, scratch_operands = 0 : i64, tpu.core_type = #tpu.core_type<tc>} {
    %c0 = arith.constant 0 : index
    %c0_0 = arith.constant 0 : index
    %0 = vector.load %arg1[%c0, %c0_0] : memref<2x8xi32, #tpu.memory_space<vmem>>, vector<2x8xi32>
    %1 = vector.shape_cast %0 : vector<2x8xi32> to vector<2x8x1xi32>
    %c0_i32 = arith.constant 0 : i32
    %2 = vector.broadcast %c0_i32 : i32 to vector<2x8x1xi32>
    %3 = arith.cmpi ne, %1, %2 : vector<2x8x1xi32>
    %4 = vector.shape_cast %0 : vector<2x8xi32> to vector<2x1x8xi32>
    %c0_i32_1 = arith.constant 0 : i32
    %5 = vector.broadcast %c0_i32_1 : i32 to vector<2x1x8xi32>
    %6 = arith.cmpi ne, %4, %5 : vector<2x1x8xi32>
    %7 = vector.broadcast %3 : vector<2x8x1xi1> to vector<2x8x8xi1>
    %8 = vector.broadcast %6 : vector<2x1x8xi1> to vector<2x8x8xi1>
    %9 = arith.andi %7, %8 : vector<2x8x8xi1>
    %c0_2 = arith.constant 0 : index
    %c0_3 = arith.constant 0 : index
    %c0_4 = arith.constant 0 : index
    %c0_5 = arith.constant 0 : index
    %10 = vector.load %arg0[%c0_2, %c0_3, %c0_4, %c0_5] : memref<2x2x8x128xf32, #tpu.memory_space<vmem>>, vector<1x2x8x128xf32>
    %11 = vector.shape_cast %10 : vector<1x2x8x128xf32> to vector<2x8x128xf32>
    %c0_6 = arith.constant 0 : index
    %c0_7 = arith.constant 0 : index
    %c0_8 = arith.constant 0 : index
    %c0_9 = arith.constant 0 : index
    %12 = vector.load %arg2[%c0_6, %c0_7, %c0_8, %c0_9] : memref<2x3x128x384xbf16, #tpu.memory_space<vmem>>, vector<1x1x128x384xbf16>
    %13 = vector.shape_cast %12 : vector<1x1x128x384xbf16> to vector<128x384xbf16>
    %14 = vector.shape_cast %11 : vector<2x8x128xf32> to vector<16x128xf32>
    %15 = arith.truncf %14 : vector<16x128xf32> to vector<16x128xbf16>
    %cst = arith.constant dense<0.000000e+00> : vector<16x384xf32>
    %16 = tpu.matmul %15, %13, %cst {dimension_numbers = #tpu.dot_dimension_numbers<[1], [0], [0], [1], [0, 0, 1, 1], [], []>} : vector<16x128xbf16>, vector<128x384xbf16>, vector<16x384xf32> -> vector<16x384xf32>
    %17 = vector.shape_cast %16 : vector<16x384xf32> to vector<2x8x384xf32>
    %18 = vector.extract_strided_slice %17 {offsets = [0, 0, 0], sizes = [2, 8, 128], strides = [1, 1, 1]} : vector<2x8x384xf32> to vector<2x8x128xf32>
    %19 = vector.extract_strided_slice %17 {offsets = [0, 0, 128], sizes = [2, 8, 128], strides = [1, 1, 1]} : vector<2x8x384xf32> to vector<2x8x128xf32>
    %20 = vector.extract_strided_slice %17 {offsets = [0, 0, 256], sizes = [2, 8, 128], strides = [1, 1, 1]} : vector<2x8x384xf32> to vector<2x8x128xf32>
    %21 = arith.truncf %18 : vector<2x8x128xf32> to vector<2x8x128xbf16>
    %22 = arith.truncf %19 : vector<2x8x128xf32> to vector<2x8x128xbf16>
    "tpu.trace_start"() <{level = 10 : i32, message = "bqd,bkd->bqk"}> : () -> ()
    %cst_10 = arith.constant dense<0.000000e+00> : vector<2x8x8xf32>
    %23 = tpu.matmul %21, %22, %cst_10 {dimension_numbers = #tpu.dot_dimension_numbers<[2], [2], [1], [1], [0, 0, 0, 1, 1, 1], [0], [0]>} : vector<2x8x128xbf16>, vector<2x8x128xbf16>, vector<2x8x8xf32> -> vector<2x8x8xf32>
    %cst_11 = arith.constant -1.000000e+20 : f32
    "tpu.trace_stop"() : () -> ()
    %24 = vector.broadcast %cst_11 : f32 to vector<2x8x8xf32>
    %25 = arith.select %9, %23, %24 : vector<2x8x8xi1>, vector<2x8x8xf32>
    %cst_12 = arith.constant dense<0xFF800000> : vector<2x8xf32>
    %26 = vector.multi_reduction <maximumf>, %25, %cst_12 [2] : vector<2x8x8xf32> to vector<2x8xf32>
    %27 = vector.shape_cast %26 : vector<2x8xf32> to vector<2x8x1xf32>
    %28 = vector.broadcast %27 : vector<2x8x1xf32> to vector<2x8x8xf32>
    %29 = arith.subf %25, %28 : vector<2x8x8xf32>
    %30 = math.exp %29 : vector<2x8x8xf32>
    %cst_13 = arith.constant dense<0.000000e+00> : vector<2x8xf32>
    %31 = vector.multi_reduction <add>, %30, %cst_13 [2] : vector<2x8x8xf32> to vector<2x8xf32>
    %32 = vector.shape_cast %31 : vector<2x8xf32> to vector<2x8x1xf32>
    %33 = vector.broadcast %32 : vector<2x8x1xf32> to vector<2x8x8xf32>
    %34 = arith.divf %30, %33 : vector<2x8x8xf32>
    %35 = arith.truncf %34 : vector<2x8x8xf32> to vector<2x8x8xbf16>
    %36 = arith.truncf %20 : vector<2x8x128xf32> to vector<2x8x128xbf16>
    "tpu.trace_start"() <{level = 10 : i32, message = "bqk,bkd->bqd"}> : () -> ()
    %cst_14 = arith.constant dense<0.000000e+00> : vector<2x8x128xf32>
    %37 = tpu.matmul %35, %36, %cst_14 {dimension_numbers = #tpu.dot_dimension_numbers<[2], [1], [1], [2], [0, 0, 0, 1, 1, 2], [0], [0]>} : vector<2x8x8xbf16>, vector<2x8x128xbf16>, vector<2x8x128xf32> -> vector<2x8x128xf32>
    "tpu.trace_stop"() : () -> ()
    %38 = arith.addf %11, %37 : vector<2x8x128xf32>
    %cst_15 = arith.constant dense<0.000000e+00> : vector<2x8xf32>
    %39 = vector.multi_reduction <add>, %38, %cst_15 [2] : vector<2x8x128xf32> to vector<2x8xf32>
    %40 = vector.shape_cast %39 : vector<2x8xf32> to vector<2x8x1xf32>
    %cst_16 = arith.constant 1.280000e+02 : f32
    %41 = vector.broadcast %cst_16 : f32 to vector<2x8x1xf32>
    %42 = arith.divf %40, %41 : vector<2x8x1xf32>
    %43 = vector.broadcast %42 : vector<2x8x1xf32> to vector<2x8x128xf32>
    %44 = arith.subf %38, %43 : vector<2x8x128xf32>
    %45 = arith.mulf %44, %44 : vector<2x8x128xf32>
    %cst_17 = arith.constant dense<0.000000e+00> : vector<2x8xf32>
    %46 = vector.multi_reduction <add>, %45, %cst_17 [2] : vector<2x8x128xf32> to vector<2x8xf32>
    %47 = vector.shape_cast %46 : vector<2x8xf32> to vector<2x8x1xf32>
    %cst_18 = arith.constant 1.280000e+02 : f32
    %48 = vector.broadcast %cst_18 : f32 to vector<2x8x1xf32>
    %49 = arith.divf %47, %48 : vector<2x8x1xf32>
    %50 = vector.broadcast %42 : vector<2x8x1xf32> to vector<2x8x128xf32>
    %51 = arith.subf %38, %50 : vector<2x8x128xf32>
    %cst_19 = arith.constant 9.99999974E-6 : f32
    %52 = vector.broadcast %cst_19 : f32 to vector<2x8x1xf32>
    %53 = arith.addf %49, %52 : vector<2x8x1xf32>
    %54 = math.rsqrt %53 : vector<2x8x1xf32>
    %55 = vector.broadcast %54 : vector<2x8x1xf32> to vector<2x8x128xf32>
    %56 = arith.mulf %51, %55 : vector<2x8x128xf32>
    %c0_20 = arith.constant 0 : index
    %c0_21 = arith.constant 0 : index
    %c0_22 = arith.constant 0 : index
    %57 = vector.load %arg3[%c0_20, %c0_21, %c0_22] : memref<2x3x128xf32, #tpu.memory_space<vmem>>, vector<1x1x128xf32>
    %58 = vector.shape_cast %57 : vector<1x1x128xf32> to vector<128xf32>
    %59 = vector.shape_cast %58 : vector<128xf32> to vector<1x1x128xf32>
    %60 = vector.broadcast %59 : vector<1x1x128xf32> to vector<2x8x128xf32>
    %61 = arith.mulf %56, %60 : vector<2x8x128xf32>
    %c0_23 = arith.constant 0 : index
    %c0_24 = arith.constant 0 : index
    %c0_25 = arith.constant 0 : index
    %62 = vector.load %arg4[%c0_23, %c0_24, %c0_25] : memref<2x3x128xf32, #tpu.memory_space<vmem>>, vector<1x1x128xf32>
    %63 = vector.shape_cast %62 : vector<1x1x128xf32> to vector<128xf32>
    %64 = vector.shape_cast %63 : vector<128xf32> to vector<1x1x128xf32>
    %65 = vector.broadcast %64 : vector<1x1x128xf32> to vector<2x8x128xf32>
    %66 = arith.addf %61, %65 : vector<2x8x128xf32>
    %c0_26 = arith.constant 0 : index
    %c1 = arith.constant 1 : index
    %c0_27 = arith.constant 0 : index
    %c0_28 = arith.constant 0 : index
    %67 = vector.load %arg2[%c0_26, %c1, %c0_27, %c0_28] : memref<2x3x128x384xbf16, #tpu.memory_space<vmem>>, vector<1x1x128x384xbf16>
    %68 = vector.shape_cast %67 : vector<1x1x128x384xbf16> to vector<128x384xbf16>
    %69 = vector.shape_cast %66 : vector<2x8x128xf32> to vector<16x128xf32>
    %70 = arith.truncf %69 : vector<16x128xf32> to vector<16x128xbf16>
    %cst_29 = arith.constant dense<0.000000e+00> : vector<16x384xf32>
    %71 = tpu.matmul %70, %68, %cst_29 {dimension_numbers = #tpu.dot_dimension_numbers<[1], [0], [0], [1], [0, 0, 1, 1], [], []>} : vector<16x128xbf16>, vector<128x384xbf16>, vector<16x384xf32> -> vector<16x384xf32>
    %72 = vector.shape_cast %71 : vector<16x384xf32> to vector<2x8x384xf32>
    %73 = vector.extract_strided_slice %72 {offsets = [0, 0, 0], sizes = [2, 8, 128], strides = [1, 1, 1]} : vector<2x8x384xf32> to vector<2x8x128xf32>
    %74 = vector.extract_strided_slice %72 {offsets = [0, 0, 128], sizes = [2, 8, 128], strides = [1, 1, 1]} : vector<2x8x384xf32> to vector<2x8x128xf32>
    %75 = vector.extract_strided_slice %72 {offsets = [0, 0, 256], sizes = [2, 8, 128], strides = [1, 1, 1]} : vector<2x8x384xf32> to vector<2x8x128xf32>
    %76 = arith.truncf %73 : vector<2x8x128xf32> to vector<2x8x128xbf16>
    %77 = arith.truncf %74 : vector<2x8x128xf32> to vector<2x8x128xbf16>
    "tpu.trace_start"() <{level = 10 : i32, message = "bqd,bkd->bqk"}> : () -> ()
    %cst_30 = arith.constant dense<0.000000e+00> : vector<2x8x8xf32>
    %78 = tpu.matmul %76, %77, %cst_30 {dimension_numbers = #tpu.dot_dimension_numbers<[2], [2], [1], [1], [0, 0, 0, 1, 1, 1], [0], [0]>} : vector<2x8x128xbf16>, vector<2x8x128xbf16>, vector<2x8x8xf32> -> vector<2x8x8xf32>
    %cst_31 = arith.constant -1.000000e+20 : f32
    "tpu.trace_stop"() : () -> ()
    %79 = vector.broadcast %cst_31 : f32 to vector<2x8x8xf32>
    %80 = arith.select %9, %78, %79 : vector<2x8x8xi1>, vector<2x8x8xf32>
    %cst_32 = arith.constant dense<0xFF800000> : vector<2x8xf32>
    %81 = vector.multi_reduction <maximumf>, %80, %cst_32 [2] : vector<2x8x8xf32> to vector<2x8xf32>
    %82 = vector.shape_cast %81 : vector<2x8xf32> to vector<2x8x1xf32>
    %83 = vector.broadcast %82 : vector<2x8x1xf32> to vector<2x8x8xf32>
    %84 = arith.subf %80, %83 : vector<2x8x8xf32>
    %85 = math.exp %84 : vector<2x8x8xf32>
    %cst_33 = arith.constant dense<0.000000e+00> : vector<2x8xf32>
    %86 = vector.multi_reduction <add>, %85, %cst_33 [2] : vector<2x8x8xf32> to vector<2x8xf32>
    %87 = vector.shape_cast %86 : vector<2x8xf32> to vector<2x8x1xf32>
    %88 = vector.broadcast %87 : vector<2x8x1xf32> to vector<2x8x8xf32>
    %89 = arith.divf %85, %88 : vector<2x8x8xf32>
    %90 = arith.truncf %89 : vector<2x8x8xf32> to vector<2x8x8xbf16>
    %91 = arith.truncf %75 : vector<2x8x128xf32> to vector<2x8x128xbf16>
    "tpu.trace_start"() <{level = 10 : i32, message = "bqk,bkd->bqd"}> : () -> ()
    %cst_34 = arith.constant dense<0.000000e+00> : vector<2x8x128xf32>
    %92 = tpu.matmul %90, %91, %cst_34 {dimension_numbers = #tpu.dot_dimension_numbers<[2], [1], [1], [2], [0, 0, 0, 1, 1, 2], [0], [0]>} : vector<2x8x8xbf16>, vector<2x8x128xbf16>, vector<2x8x128xf32> -> vector<2x8x128xf32>
    "tpu.trace_stop"() : () -> ()
    %93 = arith.addf %66, %92 : vector<2x8x128xf32>
    %cst_35 = arith.constant dense<0.000000e+00> : vector<2x8xf32>
    %94 = vector.multi_reduction <add>, %93, %cst_35 [2] : vector<2x8x128xf32> to vector<2x8xf32>
    %95 = vector.shape_cast %94 : vector<2x8xf32> to vector<2x8x1xf32>
    %cst_36 = arith.constant 1.280000e+02 : f32
    %96 = vector.broadcast %cst_36 : f32 to vector<2x8x1xf32>
    %97 = arith.divf %95, %96 : vector<2x8x1xf32>
    %98 = vector.broadcast %97 : vector<2x8x1xf32> to vector<2x8x128xf32>
    %99 = arith.subf %93, %98 : vector<2x8x128xf32>
    %100 = arith.mulf %99, %99 : vector<2x8x128xf32>
    %cst_37 = arith.constant dense<0.000000e+00> : vector<2x8xf32>
    %101 = vector.multi_reduction <add>, %100, %cst_37 [2] : vector<2x8x128xf32> to vector<2x8xf32>
    %102 = vector.shape_cast %101 : vector<2x8xf32> to vector<2x8x1xf32>
    %cst_38 = arith.constant 1.280000e+02 : f32
    %103 = vector.broadcast %cst_38 : f32 to vector<2x8x1xf32>
    %104 = arith.divf %102, %103 : vector<2x8x1xf32>
    %105 = vector.broadcast %97 : vector<2x8x1xf32> to vector<2x8x128xf32>
    %106 = arith.subf %93, %105 : vector<2x8x128xf32>
    %cst_39 = arith.constant 9.99999974E-6 : f32
    %107 = vector.broadcast %cst_39 : f32 to vector<2x8x1xf32>
    %108 = arith.addf %104, %107 : vector<2x8x1xf32>
    %109 = math.rsqrt %108 : vector<2x8x1xf32>
    %110 = vector.broadcast %109 : vector<2x8x1xf32> to vector<2x8x128xf32>
    %111 = arith.mulf %106, %110 : vector<2x8x128xf32>
    %c0_40 = arith.constant 0 : index
    %c1_41 = arith.constant 1 : index
    %c0_42 = arith.constant 0 : index
    %112 = vector.load %arg3[%c0_40, %c1_41, %c0_42] : memref<2x3x128xf32, #tpu.memory_space<vmem>>, vector<1x1x128xf32>
    %113 = vector.shape_cast %112 : vector<1x1x128xf32> to vector<128xf32>
    %114 = vector.shape_cast %113 : vector<128xf32> to vector<1x1x128xf32>
    %115 = vector.broadcast %114 : vector<1x1x128xf32> to vector<2x8x128xf32>
    %116 = arith.mulf %111, %115 : vector<2x8x128xf32>
    %c0_43 = arith.constant 0 : index
    %c1_44 = arith.constant 1 : index
    %c0_45 = arith.constant 0 : index
    %117 = vector.load %arg4[%c0_43, %c1_44, %c0_45] : memref<2x3x128xf32, #tpu.memory_space<vmem>>, vector<1x1x128xf32>
    %118 = vector.shape_cast %117 : vector<1x1x128xf32> to vector<128xf32>
    %119 = vector.shape_cast %118 : vector<128xf32> to vector<1x1x128xf32>
    %120 = vector.broadcast %119 : vector<1x1x128xf32> to vector<2x8x128xf32>
    %121 = arith.addf %116, %120 : vector<2x8x128xf32>
    %c0_46 = arith.constant 0 : index
    %c2 = arith.constant 2 : index
    %c0_47 = arith.constant 0 : index
    %c0_48 = arith.constant 0 : index
    %122 = vector.load %arg2[%c0_46, %c2, %c0_47, %c0_48] : memref<2x3x128x384xbf16, #tpu.memory_space<vmem>>, vector<1x1x128x384xbf16>
    %123 = vector.shape_cast %122 : vector<1x1x128x384xbf16> to vector<128x384xbf16>
    %124 = vector.shape_cast %121 : vector<2x8x128xf32> to vector<16x128xf32>
    %125 = arith.truncf %124 : vector<16x128xf32> to vector<16x128xbf16>
    %cst_49 = arith.constant dense<0.000000e+00> : vector<16x384xf32>
    %126 = tpu.matmul %125, %123, %cst_49 {dimension_numbers = #tpu.dot_dimension_numbers<[1], [0], [0], [1], [0, 0, 1, 1], [], []>} : vector<16x128xbf16>, vector<128x384xbf16>, vector<16x384xf32> -> vector<16x384xf32>
    %127 = vector.shape_cast %126 : vector<16x384xf32> to vector<2x8x384xf32>
    %128 = vector.extract_strided_slice %127 {offsets = [0, 0, 0], sizes = [2, 8, 128], strides = [1, 1, 1]} : vector<2x8x384xf32> to vector<2x8x128xf32>
    %129 = vector.extract_strided_slice %127 {offsets = [0, 0, 128], sizes = [2, 8, 128], strides = [1, 1, 1]} : vector<2x8x384xf32> to vector<2x8x128xf32>
    %130 = vector.extract_strided_slice %127 {offsets = [0, 0, 256], sizes = [2, 8, 128], strides = [1, 1, 1]} : vector<2x8x384xf32> to vector<2x8x128xf32>
    %131 = arith.truncf %128 : vector<2x8x128xf32> to vector<2x8x128xbf16>
    %132 = arith.truncf %129 : vector<2x8x128xf32> to vector<2x8x128xbf16>
    "tpu.trace_start"() <{level = 10 : i32, message = "bqd,bkd->bqk"}> : () -> ()
    %cst_50 = arith.constant dense<0.000000e+00> : vector<2x8x8xf32>
    %133 = tpu.matmul %131, %132, %cst_50 {dimension_numbers = #tpu.dot_dimension_numbers<[2], [2], [1], [1], [0, 0, 0, 1, 1, 1], [0], [0]>} : vector<2x8x128xbf16>, vector<2x8x128xbf16>, vector<2x8x8xf32> -> vector<2x8x8xf32>
    %cst_51 = arith.constant -1.000000e+20 : f32
    "tpu.trace_stop"() : () -> ()
    %134 = vector.broadcast %cst_51 : f32 to vector<2x8x8xf32>
    %135 = arith.select %9, %133, %134 : vector<2x8x8xi1>, vector<2x8x8xf32>
    %cst_52 = arith.constant dense<0xFF800000> : vector<2x8xf32>
    %136 = vector.multi_reduction <maximumf>, %135, %cst_52 [2] : vector<2x8x8xf32> to vector<2x8xf32>
    %137 = vector.shape_cast %136 : vector<2x8xf32> to vector<2x8x1xf32>
    %138 = vector.broadcast %137 : vector<2x8x1xf32> to vector<2x8x8xf32>
    %139 = arith.subf %135, %138 : vector<2x8x8xf32>
    %140 = math.exp %139 : vector<2x8x8xf32>
    %cst_53 = arith.constant dense<0.000000e+00> : vector<2x8xf32>
    %141 = vector.multi_reduction <add>, %140, %cst_53 [2] : vector<2x8x8xf32> to vector<2x8xf32>
    %142 = vector.shape_cast %141 : vector<2x8xf32> to vector<2x8x1xf32>
    %143 = vector.broadcast %142 : vector<2x8x1xf32> to vector<2x8x8xf32>
    %144 = arith.divf %140, %143 : vector<2x8x8xf32>
    %145 = arith.truncf %144 : vector<2x8x8xf32> to vector<2x8x8xbf16>
    %146 = arith.truncf %130 : vector<2x8x128xf32> to vector<2x8x128xbf16>
    "tpu.trace_start"() <{level = 10 : i32, message = "bqk,bkd->bqd"}> : () -> ()
    %cst_54 = arith.constant dense<0.000000e+00> : vector<2x8x128xf32>
    %147 = tpu.matmul %145, %146, %cst_54 {dimension_numbers = #tpu.dot_dimension_numbers<[2], [1], [1], [2], [0, 0, 0, 1, 1, 2], [0], [0]>} : vector<2x8x8xbf16>, vector<2x8x128xbf16>, vector<2x8x128xf32> -> vector<2x8x128xf32>
    "tpu.trace_stop"() : () -> ()
    %148 = arith.addf %121, %147 : vector<2x8x128xf32>
    %cst_55 = arith.constant dense<0.000000e+00> : vector<2x8xf32>
    %149 = vector.multi_reduction <add>, %148, %cst_55 [2] : vector<2x8x128xf32> to vector<2x8xf32>
    %150 = vector.shape_cast %149 : vector<2x8xf32> to vector<2x8x1xf32>
    %cst_56 = arith.constant 1.280000e+02 : f32
    %151 = vector.broadcast %cst_56 : f32 to vector<2x8x1xf32>
    %152 = arith.divf %150, %151 : vector<2x8x1xf32>
    %153 = vector.broadcast %152 : vector<2x8x1xf32> to vector<2x8x128xf32>
    %154 = arith.subf %148, %153 : vector<2x8x128xf32>
    %155 = arith.mulf %154, %154 : vector<2x8x128xf32>
    %cst_57 = arith.constant dense<0.000000e+00> : vector<2x8xf32>
    %156 = vector.multi_reduction <add>, %155, %cst_57 [2] : vector<2x8x128xf32> to vector<2x8xf32>
    %157 = vector.shape_cast %156 : vector<2x8xf32> to vector<2x8x1xf32>
    %cst_58 = arith.constant 1.280000e+02 : f32
    %158 = vector.broadcast %cst_58 : f32 to vector<2x8x1xf32>
    %159 = arith.divf %157, %158 : vector<2x8x1xf32>
    %160 = vector.broadcast %152 : vector<2x8x1xf32> to vector<2x8x128xf32>
    %161 = arith.subf %148, %160 : vector<2x8x128xf32>
    %cst_59 = arith.constant 9.99999974E-6 : f32
    %162 = vector.broadcast %cst_59 : f32 to vector<2x8x1xf32>
    %163 = arith.addf %159, %162 : vector<2x8x1xf32>
    %164 = math.rsqrt %163 : vector<2x8x1xf32>
    %165 = vector.broadcast %164 : vector<2x8x1xf32> to vector<2x8x128xf32>
    %166 = arith.mulf %161, %165 : vector<2x8x128xf32>
    %c0_60 = arith.constant 0 : index
    %c2_61 = arith.constant 2 : index
    %c0_62 = arith.constant 0 : index
    %167 = vector.load %arg3[%c0_60, %c2_61, %c0_62] : memref<2x3x128xf32, #tpu.memory_space<vmem>>, vector<1x1x128xf32>
    %168 = vector.shape_cast %167 : vector<1x1x128xf32> to vector<128xf32>
    %169 = vector.shape_cast %168 : vector<128xf32> to vector<1x1x128xf32>
    %170 = vector.broadcast %169 : vector<1x1x128xf32> to vector<2x8x128xf32>
    %171 = arith.mulf %166, %170 : vector<2x8x128xf32>
    %c0_63 = arith.constant 0 : index
    %c2_64 = arith.constant 2 : index
    %c0_65 = arith.constant 0 : index
    %172 = vector.load %arg4[%c0_63, %c2_64, %c0_65] : memref<2x3x128xf32, #tpu.memory_space<vmem>>, vector<1x1x128xf32>
    %173 = vector.shape_cast %172 : vector<1x1x128xf32> to vector<128xf32>
    %174 = vector.shape_cast %173 : vector<128xf32> to vector<1x1x128xf32>
    %175 = vector.broadcast %174 : vector<1x1x128xf32> to vector<2x8x128xf32>
    %176 = arith.addf %171, %175 : vector<2x8x128xf32>
    %cst_66 = arith.constant dense<0.000000e+00> : vector<2x128xf32>
    %177 = vector.multi_reduction <add>, %176, %cst_66 [1] : vector<2x8x128xf32> to vector<2x128xf32>
    %cst_67 = arith.constant 8.000000e+00 : f32
    %178 = vector.broadcast %cst_67 : f32 to vector<2x128xf32>
    %179 = arith.divf %177, %178 : vector<2x128xf32>
    %c1_68 = arith.constant 1 : index
    %c0_69 = arith.constant 0 : index
    %c0_70 = arith.constant 0 : index
    %c0_71 = arith.constant 0 : index
    %180 = vector.load %arg0[%c1_68, %c0_69, %c0_70, %c0_71] : memref<2x2x8x128xf32, #tpu.memory_space<vmem>>, vector<1x2x8x128xf32>
    %181 = vector.shape_cast %180 : vector<1x2x8x128xf32> to vector<2x8x128xf32>
    %c1_72 = arith.constant 1 : index
    %c0_73 = arith.constant 0 : index
    %c0_74 = arith.constant 0 : index
    %c0_75 = arith.constant 0 : index
    %182 = vector.load %arg2[%c1_72, %c0_73, %c0_74, %c0_75] : memref<2x3x128x384xbf16, #tpu.memory_space<vmem>>, vector<1x1x128x384xbf16>
    %183 = vector.shape_cast %182 : vector<1x1x128x384xbf16> to vector<128x384xbf16>
    %184 = vector.shape_cast %181 : vector<2x8x128xf32> to vector<16x128xf32>
    %185 = arith.truncf %184 : vector<16x128xf32> to vector<16x128xbf16>
    %cst_76 = arith.constant dense<0.000000e+00> : vector<16x384xf32>
    %186 = tpu.matmul %185, %183, %cst_76 {dimension_numbers = #tpu.dot_dimension_numbers<[1], [0], [0], [1], [0, 0, 1, 1], [], []>} : vector<16x128xbf16>, vector<128x384xbf16>, vector<16x384xf32> -> vector<16x384xf32>
    %187 = vector.shape_cast %186 : vector<16x384xf32> to vector<2x8x384xf32>
    %188 = vector.extract_strided_slice %187 {offsets = [0, 0, 0], sizes = [2, 8, 128], strides = [1, 1, 1]} : vector<2x8x384xf32> to vector<2x8x128xf32>
    %189 = vector.extract_strided_slice %187 {offsets = [0, 0, 128], sizes = [2, 8, 128], strides = [1, 1, 1]} : vector<2x8x384xf32> to vector<2x8x128xf32>
    %190 = vector.extract_strided_slice %187 {offsets = [0, 0, 256], sizes = [2, 8, 128], strides = [1, 1, 1]} : vector<2x8x384xf32> to vector<2x8x128xf32>
    %191 = arith.truncf %188 : vector<2x8x128xf32> to vector<2x8x128xbf16>
    %192 = arith.truncf %189 : vector<2x8x128xf32> to vector<2x8x128xbf16>
    "tpu.trace_start"() <{level = 10 : i32, message = "bqd,bkd->bqk"}> : () -> ()
    %cst_77 = arith.constant dense<0.000000e+00> : vector<2x8x8xf32>
    %193 = tpu.matmul %191, %192, %cst_77 {dimension_numbers = #tpu.dot_dimension_numbers<[2], [2], [1], [1], [0, 0, 0, 1, 1, 1], [0], [0]>} : vector<2x8x128xbf16>, vector<2x8x128xbf16>, vector<2x8x8xf32> -> vector<2x8x8xf32>
    %cst_78 = arith.constant -1.000000e+20 : f32
    "tpu.trace_stop"() : () -> ()
    %194 = vector.broadcast %cst_78 : f32 to vector<2x8x8xf32>
    %195 = arith.select %9, %193, %194 : vector<2x8x8xi1>, vector<2x8x8xf32>
    %cst_79 = arith.constant dense<0xFF800000> : vector<2x8xf32>
    %196 = vector.multi_reduction <maximumf>, %195, %cst_79 [2] : vector<2x8x8xf32> to vector<2x8xf32>
    %197 = vector.shape_cast %196 : vector<2x8xf32> to vector<2x8x1xf32>
    %198 = vector.broadcast %197 : vector<2x8x1xf32> to vector<2x8x8xf32>
    %199 = arith.subf %195, %198 : vector<2x8x8xf32>
    %200 = math.exp %199 : vector<2x8x8xf32>
    %cst_80 = arith.constant dense<0.000000e+00> : vector<2x8xf32>
    %201 = vector.multi_reduction <add>, %200, %cst_80 [2] : vector<2x8x8xf32> to vector<2x8xf32>
    %202 = vector.shape_cast %201 : vector<2x8xf32> to vector<2x8x1xf32>
    %203 = vector.broadcast %202 : vector<2x8x1xf32> to vector<2x8x8xf32>
    %204 = arith.divf %200, %203 : vector<2x8x8xf32>
    %205 = arith.truncf %204 : vector<2x8x8xf32> to vector<2x8x8xbf16>
    %206 = arith.truncf %190 : vector<2x8x128xf32> to vector<2x8x128xbf16>
    "tpu.trace_start"() <{level = 10 : i32, message = "bqk,bkd->bqd"}> : () -> ()
    %cst_81 = arith.constant dense<0.000000e+00> : vector<2x8x128xf32>
    %207 = tpu.matmul %205, %206, %cst_81 {dimension_numbers = #tpu.dot_dimension_numbers<[2], [1], [1], [2], [0, 0, 0, 1, 1, 2], [0], [0]>} : vector<2x8x8xbf16>, vector<2x8x128xbf16>, vector<2x8x128xf32> -> vector<2x8x128xf32>
    "tpu.trace_stop"() : () -> ()
    %208 = arith.addf %181, %207 : vector<2x8x128xf32>
    %cst_82 = arith.constant dense<0.000000e+00> : vector<2x8xf32>
    %209 = vector.multi_reduction <add>, %208, %cst_82 [2] : vector<2x8x128xf32> to vector<2x8xf32>
    %210 = vector.shape_cast %209 : vector<2x8xf32> to vector<2x8x1xf32>
    %cst_83 = arith.constant 1.280000e+02 : f32
    %211 = vector.broadcast %cst_83 : f32 to vector<2x8x1xf32>
    %212 = arith.divf %210, %211 : vector<2x8x1xf32>
    %213 = vector.broadcast %212 : vector<2x8x1xf32> to vector<2x8x128xf32>
    %214 = arith.subf %208, %213 : vector<2x8x128xf32>
    %215 = arith.mulf %214, %214 : vector<2x8x128xf32>
    %cst_84 = arith.constant dense<0.000000e+00> : vector<2x8xf32>
    %216 = vector.multi_reduction <add>, %215, %cst_84 [2] : vector<2x8x128xf32> to vector<2x8xf32>
    %217 = vector.shape_cast %216 : vector<2x8xf32> to vector<2x8x1xf32>
    %cst_85 = arith.constant 1.280000e+02 : f32
    %218 = vector.broadcast %cst_85 : f32 to vector<2x8x1xf32>
    %219 = arith.divf %217, %218 : vector<2x8x1xf32>
    %220 = vector.broadcast %212 : vector<2x8x1xf32> to vector<2x8x128xf32>
    %221 = arith.subf %208, %220 : vector<2x8x128xf32>
    %cst_86 = arith.constant 9.99999974E-6 : f32
    %222 = vector.broadcast %cst_86 : f32 to vector<2x8x1xf32>
    %223 = arith.addf %219, %222 : vector<2x8x1xf32>
    %224 = math.rsqrt %223 : vector<2x8x1xf32>
    %225 = vector.broadcast %224 : vector<2x8x1xf32> to vector<2x8x128xf32>
    %226 = arith.mulf %221, %225 : vector<2x8x128xf32>
    %c1_87 = arith.constant 1 : index
    %c0_88 = arith.constant 0 : index
    %c0_89 = arith.constant 0 : index
    %227 = vector.load %arg3[%c1_87, %c0_88, %c0_89] : memref<2x3x128xf32, #tpu.memory_space<vmem>>, vector<1x1x128xf32>
    %228 = vector.shape_cast %227 : vector<1x1x128xf32> to vector<128xf32>
    %229 = vector.shape_cast %228 : vector<128xf32> to vector<1x1x128xf32>
    %230 = vector.broadcast %229 : vector<1x1x128xf32> to vector<2x8x128xf32>
    %231 = arith.mulf %226, %230 : vector<2x8x128xf32>
    %c1_90 = arith.constant 1 : index
    %c0_91 = arith.constant 0 : index
    %c0_92 = arith.constant 0 : index
    %232 = vector.load %arg4[%c1_90, %c0_91, %c0_92] : memref<2x3x128xf32, #tpu.memory_space<vmem>>, vector<1x1x128xf32>
    %233 = vector.shape_cast %232 : vector<1x1x128xf32> to vector<128xf32>
    %234 = vector.shape_cast %233 : vector<128xf32> to vector<1x1x128xf32>
    %235 = vector.broadcast %234 : vector<1x1x128xf32> to vector<2x8x128xf32>
    %236 = arith.addf %231, %235 : vector<2x8x128xf32>
    %c1_93 = arith.constant 1 : index
    %c1_94 = arith.constant 1 : index
    %c0_95 = arith.constant 0 : index
    %c0_96 = arith.constant 0 : index
    %237 = vector.load %arg2[%c1_93, %c1_94, %c0_95, %c0_96] : memref<2x3x128x384xbf16, #tpu.memory_space<vmem>>, vector<1x1x128x384xbf16>
    %238 = vector.shape_cast %237 : vector<1x1x128x384xbf16> to vector<128x384xbf16>
    %239 = vector.shape_cast %236 : vector<2x8x128xf32> to vector<16x128xf32>
    %240 = arith.truncf %239 : vector<16x128xf32> to vector<16x128xbf16>
    %cst_97 = arith.constant dense<0.000000e+00> : vector<16x384xf32>
    %241 = tpu.matmul %240, %238, %cst_97 {dimension_numbers = #tpu.dot_dimension_numbers<[1], [0], [0], [1], [0, 0, 1, 1], [], []>} : vector<16x128xbf16>, vector<128x384xbf16>, vector<16x384xf32> -> vector<16x384xf32>
    %242 = vector.shape_cast %241 : vector<16x384xf32> to vector<2x8x384xf32>
    %243 = vector.extract_strided_slice %242 {offsets = [0, 0, 0], sizes = [2, 8, 128], strides = [1, 1, 1]} : vector<2x8x384xf32> to vector<2x8x128xf32>
    %244 = vector.extract_strided_slice %242 {offsets = [0, 0, 128], sizes = [2, 8, 128], strides = [1, 1, 1]} : vector<2x8x384xf32> to vector<2x8x128xf32>
    %245 = vector.extract_strided_slice %242 {offsets = [0, 0, 256], sizes = [2, 8, 128], strides = [1, 1, 1]} : vector<2x8x384xf32> to vector<2x8x128xf32>
    %246 = arith.truncf %243 : vector<2x8x128xf32> to vector<2x8x128xbf16>
    %247 = arith.truncf %244 : vector<2x8x128xf32> to vector<2x8x128xbf16>
    "tpu.trace_start"() <{level = 10 : i32, message = "bqd,bkd->bqk"}> : () -> ()
    %cst_98 = arith.constant dense<0.000000e+00> : vector<2x8x8xf32>
    %248 = tpu.matmul %246, %247, %cst_98 {dimension_numbers = #tpu.dot_dimension_numbers<[2], [2], [1], [1], [0, 0, 0, 1, 1, 1], [0], [0]>} : vector<2x8x128xbf16>, vector<2x8x128xbf16>, vector<2x8x8xf32> -> vector<2x8x8xf32>
    %cst_99 = arith.constant -1.000000e+20 : f32
    "tpu.trace_stop"() : () -> ()
    %249 = vector.broadcast %cst_99 : f32 to vector<2x8x8xf32>
    %250 = arith.select %9, %248, %249 : vector<2x8x8xi1>, vector<2x8x8xf32>
    %cst_100 = arith.constant dense<0xFF800000> : vector<2x8xf32>
    %251 = vector.multi_reduction <maximumf>, %250, %cst_100 [2] : vector<2x8x8xf32> to vector<2x8xf32>
    %252 = vector.shape_cast %251 : vector<2x8xf32> to vector<2x8x1xf32>
    %253 = vector.broadcast %252 : vector<2x8x1xf32> to vector<2x8x8xf32>
    %254 = arith.subf %250, %253 : vector<2x8x8xf32>
    %255 = math.exp %254 : vector<2x8x8xf32>
    %cst_101 = arith.constant dense<0.000000e+00> : vector<2x8xf32>
    %256 = vector.multi_reduction <add>, %255, %cst_101 [2] : vector<2x8x8xf32> to vector<2x8xf32>
    %257 = vector.shape_cast %256 : vector<2x8xf32> to vector<2x8x1xf32>
    %258 = vector.broadcast %257 : vector<2x8x1xf32> to vector<2x8x8xf32>
    %259 = arith.divf %255, %258 : vector<2x8x8xf32>
    %260 = arith.truncf %259 : vector<2x8x8xf32> to vector<2x8x8xbf16>
    %261 = arith.truncf %245 : vector<2x8x128xf32> to vector<2x8x128xbf16>
    "tpu.trace_start"() <{level = 10 : i32, message = "bqk,bkd->bqd"}> : () -> ()
    %cst_102 = arith.constant dense<0.000000e+00> : vector<2x8x128xf32>
    %262 = tpu.matmul %260, %261, %cst_102 {dimension_numbers = #tpu.dot_dimension_numbers<[2], [1], [1], [2], [0, 0, 0, 1, 1, 2], [0], [0]>} : vector<2x8x8xbf16>, vector<2x8x128xbf16>, vector<2x8x128xf32> -> vector<2x8x128xf32>
    "tpu.trace_stop"() : () -> ()
    %263 = arith.addf %236, %262 : vector<2x8x128xf32>
    %cst_103 = arith.constant dense<0.000000e+00> : vector<2x8xf32>
    %264 = vector.multi_reduction <add>, %263, %cst_103 [2] : vector<2x8x128xf32> to vector<2x8xf32>
    %265 = vector.shape_cast %264 : vector<2x8xf32> to vector<2x8x1xf32>
    %cst_104 = arith.constant 1.280000e+02 : f32
    %266 = vector.broadcast %cst_104 : f32 to vector<2x8x1xf32>
    %267 = arith.divf %265, %266 : vector<2x8x1xf32>
    %268 = vector.broadcast %267 : vector<2x8x1xf32> to vector<2x8x128xf32>
    %269 = arith.subf %263, %268 : vector<2x8x128xf32>
    %270 = arith.mulf %269, %269 : vector<2x8x128xf32>
    %cst_105 = arith.constant dense<0.000000e+00> : vector<2x8xf32>
    %271 = vector.multi_reduction <add>, %270, %cst_105 [2] : vector<2x8x128xf32> to vector<2x8xf32>
    %272 = vector.shape_cast %271 : vector<2x8xf32> to vector<2x8x1xf32>
    %cst_106 = arith.constant 1.280000e+02 : f32
    %273 = vector.broadcast %cst_106 : f32 to vector<2x8x1xf32>
    %274 = arith.divf %272, %273 : vector<2x8x1xf32>
    %275 = vector.broadcast %267 : vector<2x8x1xf32> to vector<2x8x128xf32>
    %276 = arith.subf %263, %275 : vector<2x8x128xf32>
    %cst_107 = arith.constant 9.99999974E-6 : f32
    %277 = vector.broadcast %cst_107 : f32 to vector<2x8x1xf32>
    %278 = arith.addf %274, %277 : vector<2x8x1xf32>
    %279 = math.rsqrt %278 : vector<2x8x1xf32>
    %280 = vector.broadcast %279 : vector<2x8x1xf32> to vector<2x8x128xf32>
    %281 = arith.mulf %276, %280 : vector<2x8x128xf32>
    %c1_108 = arith.constant 1 : index
    %c1_109 = arith.constant 1 : index
    %c0_110 = arith.constant 0 : index
    %282 = vector.load %arg3[%c1_108, %c1_109, %c0_110] : memref<2x3x128xf32, #tpu.memory_space<vmem>>, vector<1x1x128xf32>
    %283 = vector.shape_cast %282 : vector<1x1x128xf32> to vector<128xf32>
    %284 = vector.shape_cast %283 : vector<128xf32> to vector<1x1x128xf32>
    %285 = vector.broadcast %284 : vector<1x1x128xf32> to vector<2x8x128xf32>
    %286 = arith.mulf %281, %285 : vector<2x8x128xf32>
    %c1_111 = arith.constant 1 : index
    %c1_112 = arith.constant 1 : index
    %c0_113 = arith.constant 0 : index
    %287 = vector.load %arg4[%c1_111, %c1_112, %c0_113] : memref<2x3x128xf32, #tpu.memory_space<vmem>>, vector<1x1x128xf32>
    %288 = vector.shape_cast %287 : vector<1x1x128xf32> to vector<128xf32>
    %289 = vector.shape_cast %288 : vector<128xf32> to vector<1x1x128xf32>
    %290 = vector.broadcast %289 : vector<1x1x128xf32> to vector<2x8x128xf32>
    %291 = arith.addf %286, %290 : vector<2x8x128xf32>
    %c1_114 = arith.constant 1 : index
    %c2_115 = arith.constant 2 : index
    %c0_116 = arith.constant 0 : index
    %c0_117 = arith.constant 0 : index
    %292 = vector.load %arg2[%c1_114, %c2_115, %c0_116, %c0_117] : memref<2x3x128x384xbf16, #tpu.memory_space<vmem>>, vector<1x1x128x384xbf16>
    %293 = vector.shape_cast %292 : vector<1x1x128x384xbf16> to vector<128x384xbf16>
    %294 = vector.shape_cast %291 : vector<2x8x128xf32> to vector<16x128xf32>
    %295 = arith.truncf %294 : vector<16x128xf32> to vector<16x128xbf16>
    %cst_118 = arith.constant dense<0.000000e+00> : vector<16x384xf32>
    %296 = tpu.matmul %295, %293, %cst_118 {dimension_numbers = #tpu.dot_dimension_numbers<[1], [0], [0], [1], [0, 0, 1, 1], [], []>} : vector<16x128xbf16>, vector<128x384xbf16>, vector<16x384xf32> -> vector<16x384xf32>
    %297 = vector.shape_cast %296 : vector<16x384xf32> to vector<2x8x384xf32>
    %298 = vector.extract_strided_slice %297 {offsets = [0, 0, 0], sizes = [2, 8, 128], strides = [1, 1, 1]} : vector<2x8x384xf32> to vector<2x8x128xf32>
    %299 = vector.extract_strided_slice %297 {offsets = [0, 0, 128], sizes = [2, 8, 128], strides = [1, 1, 1]} : vector<2x8x384xf32> to vector<2x8x128xf32>
    %300 = vector.extract_strided_slice %297 {offsets = [0, 0, 256], sizes = [2, 8, 128], strides = [1, 1, 1]} : vector<2x8x384xf32> to vector<2x8x128xf32>
    %301 = arith.truncf %298 : vector<2x8x128xf32> to vector<2x8x128xbf16>
    %302 = arith.truncf %299 : vector<2x8x128xf32> to vector<2x8x128xbf16>
    "tpu.trace_start"() <{level = 10 : i32, message = "bqd,bkd->bqk"}> : () -> ()
    %cst_119 = arith.constant dense<0.000000e+00> : vector<2x8x8xf32>
    %303 = tpu.matmul %301, %302, %cst_119 {dimension_numbers = #tpu.dot_dimension_numbers<[2], [2], [1], [1], [0, 0, 0, 1, 1, 1], [0], [0]>} : vector<2x8x128xbf16>, vector<2x8x128xbf16>, vector<2x8x8xf32> -> vector<2x8x8xf32>
    %cst_120 = arith.constant -1.000000e+20 : f32
    "tpu.trace_stop"() : () -> ()
    %304 = vector.broadcast %cst_120 : f32 to vector<2x8x8xf32>
    %305 = arith.select %9, %303, %304 : vector<2x8x8xi1>, vector<2x8x8xf32>
    %cst_121 = arith.constant dense<0xFF800000> : vector<2x8xf32>
    %306 = vector.multi_reduction <maximumf>, %305, %cst_121 [2] : vector<2x8x8xf32> to vector<2x8xf32>
    %307 = vector.shape_cast %306 : vector<2x8xf32> to vector<2x8x1xf32>
    %308 = vector.broadcast %307 : vector<2x8x1xf32> to vector<2x8x8xf32>
    %309 = arith.subf %305, %308 : vector<2x8x8xf32>
    %310 = math.exp %309 : vector<2x8x8xf32>
    %cst_122 = arith.constant dense<0.000000e+00> : vector<2x8xf32>
    %311 = vector.multi_reduction <add>, %310, %cst_122 [2] : vector<2x8x8xf32> to vector<2x8xf32>
    %312 = vector.shape_cast %311 : vector<2x8xf32> to vector<2x8x1xf32>
    %313 = vector.broadcast %312 : vector<2x8x1xf32> to vector<2x8x8xf32>
    %314 = arith.divf %310, %313 : vector<2x8x8xf32>
    %315 = arith.truncf %314 : vector<2x8x8xf32> to vector<2x8x8xbf16>
    %316 = arith.truncf %300 : vector<2x8x128xf32> to vector<2x8x128xbf16>
    "tpu.trace_start"() <{level = 10 : i32, message = "bqk,bkd->bqd"}> : () -> ()
    %cst_123 = arith.constant dense<0.000000e+00> : vector<2x8x128xf32>
    %317 = tpu.matmul %315, %316, %cst_123 {dimension_numbers = #tpu.dot_dimension_numbers<[2], [1], [1], [2], [0, 0, 0, 1, 1, 2], [0], [0]>} : vector<2x8x8xbf16>, vector<2x8x128xbf16>, vector<2x8x128xf32> -> vector<2x8x128xf32>
    "tpu.trace_stop"() : () -> ()
    %318 = arith.addf %291, %317 : vector<2x8x128xf32>
    %cst_124 = arith.constant dense<0.000000e+00> : vector<2x8xf32>
    %319 = vector.multi_reduction <add>, %318, %cst_124 [2] : vector<2x8x128xf32> to vector<2x8xf32>
    %320 = vector.shape_cast %319 : vector<2x8xf32> to vector<2x8x1xf32>
    %cst_125 = arith.constant 1.280000e+02 : f32
    %321 = vector.broadcast %cst_125 : f32 to vector<2x8x1xf32>
    %322 = arith.divf %320, %321 : vector<2x8x1xf32>
    %323 = vector.broadcast %322 : vector<2x8x1xf32> to vector<2x8x128xf32>
    %324 = arith.subf %318, %323 : vector<2x8x128xf32>
    %325 = arith.mulf %324, %324 : vector<2x8x128xf32>
    %cst_126 = arith.constant dense<0.000000e+00> : vector<2x8xf32>
    %326 = vector.multi_reduction <add>, %325, %cst_126 [2] : vector<2x8x128xf32> to vector<2x8xf32>
    %327 = vector.shape_cast %326 : vector<2x8xf32> to vector<2x8x1xf32>
    %cst_127 = arith.constant 1.280000e+02 : f32
    %328 = vector.broadcast %cst_127 : f32 to vector<2x8x1xf32>
    %329 = arith.divf %327, %328 : vector<2x8x1xf32>
    %330 = vector.broadcast %322 : vector<2x8x1xf32> to vector<2x8x128xf32>
    %331 = arith.subf %318, %330 : vector<2x8x128xf32>
    %cst_128 = arith.constant 9.99999974E-6 : f32
    %332 = vector.broadcast %cst_128 : f32 to vector<2x8x1xf32>
    %333 = arith.addf %329, %332 : vector<2x8x1xf32>
    %334 = math.rsqrt %333 : vector<2x8x1xf32>
    %335 = vector.broadcast %334 : vector<2x8x1xf32> to vector<2x8x128xf32>
    %336 = arith.mulf %331, %335 : vector<2x8x128xf32>
    %c1_129 = arith.constant 1 : index
    %c2_130 = arith.constant 2 : index
    %c0_131 = arith.constant 0 : index
    %337 = vector.load %arg3[%c1_129, %c2_130, %c0_131] : memref<2x3x128xf32, #tpu.memory_space<vmem>>, vector<1x1x128xf32>
    %338 = vector.shape_cast %337 : vector<1x1x128xf32> to vector<128xf32>
    %339 = vector.shape_cast %338 : vector<128xf32> to vector<1x1x128xf32>
    %340 = vector.broadcast %339 : vector<1x1x128xf32> to vector<2x8x128xf32>
    %341 = arith.mulf %336, %340 : vector<2x8x128xf32>
    %c1_132 = arith.constant 1 : index
    %c2_133 = arith.constant 2 : index
    %c0_134 = arith.constant 0 : index
    %342 = vector.load %arg4[%c1_132, %c2_133, %c0_134] : memref<2x3x128xf32, #tpu.memory_space<vmem>>, vector<1x1x128xf32>
    %343 = vector.shape_cast %342 : vector<1x1x128xf32> to vector<128xf32>
    %344 = vector.shape_cast %343 : vector<128xf32> to vector<1x1x128xf32>
    %345 = vector.broadcast %344 : vector<1x1x128xf32> to vector<2x8x128xf32>
    %346 = arith.addf %341, %345 : vector<2x8x128xf32>
    %cst_135 = arith.constant dense<0.000000e+00> : vector<2x128xf32>
    %347 = vector.multi_reduction <add>, %346, %cst_135 [1] : vector<2x8x128xf32> to vector<2x128xf32>
    %cst_136 = arith.constant 8.000000e+00 : f32
    %348 = vector.broadcast %cst_136 : f32 to vector<2x128xf32>
    %349 = arith.divf %347, %348 : vector<2x128xf32>
    %350 = tpu.concatenate %179, %349 in 1 : vector<2x128xf32>, vector<2x128xf32> -> vector<2x256xf32>
    %351 = arith.truncf %350 : vector<2x256xf32> to vector<2x256xbf16>
    %c0_137 = arith.constant 0 : index
    %c0_138 = arith.constant 0 : index
    %352 = vector.load %arg5[%c0_137, %c0_138] : memref<256x128xbf16, #tpu.memory_space<vmem>>, vector<256x128xbf16>
    %cst_139 = arith.constant dense<0.000000e+00> : vector<2x128xf32>
    %353 = tpu.matmul %351, %352, %cst_139 {dimension_numbers = #tpu.dot_dimension_numbers<[1], [0], [0], [1], [0, 0, 1, 1], [], []>} : vector<2x256xbf16>, vector<256x128xbf16>, vector<2x128xf32> -> vector<2x128xf32>
    %c0_140 = arith.constant 0 : index
    %c0_141 = arith.constant 0 : index
    %354 = vector.load %arg6[%c0_140, %c0_141] : memref<1x128xf32, #tpu.memory_space<vmem>>, vector<1x128xf32>
    %355 = vector.broadcast %354 : vector<1x128xf32> to vector<2x128xf32>
    %356 = arith.addf %353, %355 : vector<2x128xf32>
    %cst_142 = arith.constant 0.000000e+00 : f32
    %357 = vector.broadcast %cst_142 : f32 to vector<2x128xf32>
    %358 = arith.maximumf %356, %357 : vector<2x128xf32>
    %359 = arith.truncf %358 : vector<2x128xf32> to vector<2x128xbf16>
    %c0_143 = arith.constant 0 : index
    %c0_144 = arith.constant 0 : index
    %360 = vector.load %arg7[%c0_143, %c0_144] : memref<128x128xbf16, #tpu.memory_space<vmem>>, vector<128x128xbf16>
    %cst_145 = arith.constant dense<0.000000e+00> : vector<2x128xf32>
    %361 = tpu.matmul %359, %360, %cst_145 {dimension_numbers = #tpu.dot_dimension_numbers<[1], [0], [0], [1], [0, 0, 1, 1], [], []>} : vector<2x128xbf16>, vector<128x128xbf16>, vector<2x128xf32> -> vector<2x128xf32>
    %c0_146 = arith.constant 0 : index
    %c0_147 = arith.constant 0 : index
    %362 = vector.load %arg8[%c0_146, %c0_147] : memref<1x128xf32, #tpu.memory_space<vmem>>, vector<1x128xf32>
    %363 = vector.broadcast %362 : vector<1x128xf32> to vector<2x128xf32>
    %364 = arith.addf %361, %363 : vector<2x128xf32>
    %cst_148 = arith.constant 0.000000e+00 : f32
    %365 = vector.broadcast %cst_148 : f32 to vector<2x128xf32>
    %366 = arith.maximumf %364, %365 : vector<2x128xf32>
    %367 = arith.truncf %366 : vector<2x128xf32> to vector<2x128xbf16>
    %c0_149 = arith.constant 0 : index
    %c0_150 = arith.constant 0 : index
    %368 = vector.load %arg9[%c0_149, %c0_150] : memref<128x7xbf16, #tpu.memory_space<vmem>>, vector<128x7xbf16>
    %cst_151 = arith.constant dense<0.000000e+00> : vector<2x7xf32>
    %369 = tpu.matmul %367, %368, %cst_151 {dimension_numbers = #tpu.dot_dimension_numbers<[1], [0], [0], [1], [0, 0, 1, 1], [], []>} : vector<2x128xbf16>, vector<128x7xbf16>, vector<2x7xf32> -> vector<2x7xf32>
    %c0_152 = arith.constant 0 : index
    %c0_153 = arith.constant 0 : index
    %370 = vector.load %arg10[%c0_152, %c0_153] : memref<1x7xf32, #tpu.memory_space<vmem>>, vector<1x7xf32>
    %371 = vector.broadcast %370 : vector<1x7xf32> to vector<2x7xf32>
    %372 = arith.addf %369, %371 : vector<2x7xf32>
    %c0_154 = arith.constant 0 : index
    %c0_155 = arith.constant 0 : index
    %373 = vector.load %arg11[%c0_154, %c0_155] : memref<2x7xf32, #tpu.memory_space<vmem>>, vector<2x7xf32>
    tpu.vector_store %arg11[%c0_154, %c0_155], %372 {strides = array<i32>} : memref<2x7xf32, #tpu.memory_space<vmem>>, vector<2x7xf32>,
    return
  }
}

</mosaic_0001>

<llo_original>
// kernel: tpu_custom_call.1
$region0: #{tpu_custom_call.1}
  #allocation0 [shape = 'u32[]', space=smem, size = 0x4, offset = 0x4, fixed_abs, tag = 'smem constant byte address 0x4 - core index']
  #allocation1 [shape = 'u32[72,128]{1,0:T(1,128)}', space=vmem, size = 0x9000, scoped, tag = 'internal scratch']
  %s0 = inlined_call_operand.hbm [shape: f32[2,2,8,128], index: 0, kind: input, shape index: {}]
  %s1 = inlined_call_operand.vmem [shape: s32[2,8], index: 1, kind: input, shape index: {}]
  %s2 = inlined_call_operand.hbm [shape: bf16[2,3,128,384], index: 2, kind: input, shape index: {}]
  %s3 = inlined_call_operand.vmem [shape: f32[2,3,128], index: 3, kind: input, shape index: {}]
  %s4 = inlined_call_operand.vmem [shape: f32[2,3,128], index: 4, kind: input, shape index: {}]
  %s5 = inlined_call_operand.hbm [shape: bf16[256,128], index: 5, kind: input, shape index: {}]
  %s6 = inlined_call_operand.vmem [shape: f32[1,128], index: 6, kind: input, shape index: {}]
  %s7 = inlined_call_operand.vmem [shape: bf16[128,128], index: 7, kind: input, shape index: {}]
  %s8 = inlined_call_operand.vmem [shape: f32[1,128], index: 8, kind: input, shape index: {}]
  %s9 = inlined_call_operand.vmem [shape: bf16[128,7], index: 9, kind: input, shape index: {}]
  %s10 = inlined_call_operand.vmem [shape: f32[1,7], index: 10, kind: input, shape index: {}]
  %s11 = inlined_call_operand.hbm [shape: f32[2,7], index: 11, kind: output, shape index: {}]
  %s12 = sld [smem:[#allocation0]]
  $region66: #{tpu_custom_call.1} parent=0
    _
  %s14 = ssub.s32 1, %s12
  %s15 = scalar_select 0, %s14, %s12
  $region1: #{tpu_custom_call.1} parent=0
    #allocation2 [shape = 'u8[16384]{0}', space=vmem, size = 0x4000, scoped, tag = 'input window, operand 0, single buffered']
    #allocation3 [shape = 's32[1]{0}', space=sflag, size = 0x4, scoped, tag = 'scoped memory for tpu_custom_call.1']
    #allocation4 [shape = 's32[1]{0}', space=sflag, size = 0x4, scoped, tag = 'scoped memory for tpu_custom_call.1']
    #allocation5 [shape = 'u8[589824]{0}', space=vmem, size = 0x90000, scoped, tag = 'input window, operand 2, single buffered']
    #allocation6 [shape = 's32[1]{0}', space=sflag, size = 0x4, scoped, tag = 'scoped memory for tpu_custom_call.1']
    #allocation7 [shape = 'u8[65536]{0}', space=vmem, size = 0x10000, scoped, tag = 'input window, operand 5, single buffered']
    #allocation8 [shape = 'u8[1024]{0}', space=vmem, size = 0x400, scoped, tag = 'output window, operand 0, single buffered']
    %16 = vsyncpa [#allocation3], 0
    %17 = vsyncpa [#allocation6], 0
    %18 = vsyncpa [#allocation4], 0
    // Predicated region
    $region2: #{tpu_custom_call.1} parent=1 // pred_check
      _
    $region3: #{tpu_custom_call.1} parent=1 // pred_check_branch
      %20 = sbr.rel (0) target = $region5
    $region4: #{tpu_custom_call.1} parent=1 // pred_region
      %22 = vsyncadd [#allocation3], 0
      %s23 = sshll.u32 %s0, 4
      %s24 = int_to_ptr.hbm [resolvable:$true] %s23
      %s25 = sshll.u32 [#allocation2], 4
      %s26 = int_to_ptr.vmem [resolvable:$true] %s25
      %31 = dma.hbm_to_vmem [thread:$0]  %s24, 512, %s26, [#allocation3], 128, 128, 8
    $region5: #{tpu_custom_call.1} parent=1 // pred_fallthru
      _
    // Predicated region
    $region6: #{tpu_custom_call.1} parent=1 // pred_check
      _
    $region7: #{tpu_custom_call.1} parent=1 // pred_check_branch
      %33 = sbr.rel (0) target = $region9
    $region8: #{tpu_custom_call.1} parent=1 // pred_region
      _
    $region9: #{tpu_custom_call.1} parent=1 // pred_fallthru
      _
    // Predicated region
    $region10: #{tpu_custom_call.1} parent=1 // pred_check
      _
    $region11: #{tpu_custom_call.1} parent=1 // pred_check_branch
      %35 = sbr.rel (0) target = $region13
    $region12: #{tpu_custom_call.1} parent=1 // pred_region
      %37 = vsyncadd [#allocation6], 0
      %s38 = sshll.u32 %s2, 4
      %s39 = int_to_ptr.hbm [resolvable:$true] %s38
      %s40 = sshll.u32 [#allocation5], 4
      %s41 = int_to_ptr.vmem [resolvable:$true] %s40
      %46 = dma.hbm_to_vmem [thread:$0]  %s39, 18432, %s41, [#allocation6], 192, 192, 12
    $region13: #{tpu_custom_call.1} parent=1 // pred_fallthru
      _
    // Predicated region
    $region14: #{tpu_custom_call.1} parent=1 // pred_check
      _
    $region15: #{tpu_custom_call.1} parent=1 // pred_check_branch
      %48 = sbr.rel (0) target = $region17
    $region16: #{tpu_custom_call.1} parent=1 // pred_region
      _
    $region17: #{tpu_custom_call.1} parent=1 // pred_fallthru
      _
    // Predicated region
    $region18: #{tpu_custom_call.1} parent=1 // pred_check
      _
    $region19: #{tpu_custom_call.1} parent=1 // pred_check_branch
      %50 = sbr.rel (0) target = $region21
    $region20: #{tpu_custom_call.1} parent=1 // pred_region
      _
    $region21: #{tpu_custom_call.1} parent=1 // pred_fallthru
      _
    // Predicated region
    $region22: #{tpu_custom_call.1} parent=1 // pred_check
      _
    $region23: #{tpu_custom_call.1} parent=1 // pred_check_branch
      %52 = sbr.rel (0) target = $region25
    $region24: #{tpu_custom_call.1} parent=1 // pred_region
      %54 = vsyncadd [#allocation6], 0
      %s55 = sshll.u32 %s5, 4
      %s56 = int_to_ptr.hbm [resolvable:$true] %s55
      %s57 = sshll.u32 [#allocation7], 4
      %s58 = int_to_ptr.vmem [resolvable:$true] %s57
      %63 = dma.hbm_to_vmem [thread:$0]  %s56, 2048, %s58, [#allocation6], 64, 64, 4
    $region25: #{tpu_custom_call.1} parent=1 // pred_fallthru
      _
    // Predicated region
    $region26: #{tpu_custom_call.1} parent=1 // pred_check
      _
    $region27: #{tpu_custom_call.1} parent=1 // pred_check_branch
      %65 = sbr.rel (0) target = $region29
    $region28: #{tpu_custom_call.1} parent=1 // pred_region
      _
    $region29: #{tpu_custom_call.1} parent=1 // pred_fallthru
      _
    // Predicated region
    $region30: #{tpu_custom_call.1} parent=1 // pred_check
      _
    $region31: #{tpu_custom_call.1} parent=1 // pred_check_branch
      %67 = sbr.rel (0) target = $region33
    $region32: #{tpu_custom_call.1} parent=1 // pred_region
      _
    $region33: #{tpu_custom_call.1} parent=1 // pred_fallthru
      _
    // Predicated region
    $region34: #{tpu_custom_call.1} parent=1 // pred_check
      _
    $region35: #{tpu_custom_call.1} parent=1 // pred_check_branch
      %69 = sbr.rel (0) target = $region37
    $region36: #{tpu_custom_call.1} parent=1 // pred_region
      _
    $region37: #{tpu_custom_call.1} parent=1 // pred_fallthru
      _
    // Predicated region
    $region38: #{tpu_custom_call.1} parent=1 // pred_check
      _
    $region39: #{tpu_custom_call.1} parent=1 // pred_check_branch
      %71 = sbr.rel (0) target = $region41
    $region40: #{tpu_custom_call.1} parent=1 // pred_region
      _
    $region41: #{tpu_custom_call.1} parent=1 // pred_fallthru
      _
    // Predicated region
    $region42: #{tpu_custom_call.1} parent=1 // pred_check
      _
    $region43: #{tpu_custom_call.1} parent=1 // pred_check_branch
      %73 = sbr.rel (0) target = $region45
    $region44: #{tpu_custom_call.1} parent=1 // pred_region
      _
    $region45: #{tpu_custom_call.1} parent=1 // pred_fallthru
      _
    // Predicated region
    $region46: #{tpu_custom_call.1} parent=1 // pred_check
      _
    $region47: #{tpu_custom_call.1} parent=1 // pred_check_branch
      %75 = sbr.rel (0) target = $region49
    $region48: #{tpu_custom_call.1} parent=1 // pred_region
      %77 = dma.done [#allocation3], 512
    $region49: #{tpu_custom_call.1} parent=1 // pred_fallthru
      _
    // Predicated region
    $region50: #{tpu_custom_call.1} parent=1 // pred_check
      _
    $region51: #{tpu_custom_call.1} parent=1 // pred_check_branch
      %79 = sbr.rel (0) target = $region53
    $region52: #{tpu_custom_call.1} parent=1 // pred_region
      %81 = dma.done [#allocation6], 18432
    $region53: #{tpu_custom_call.1} parent=1 // pred_fallthru
      _
    // Predicated region
    $region54: #{tpu_custom_call.1} parent=1 // pred_check
      _
    $region55: #{tpu_custom_call.1} parent=1 // pred_check_branch
      %83 = sbr.rel (0) target = $region57
    $region56: #{tpu_custom_call.1} parent=1 // pred_region
      %85 = dma.done [#allocation6], 2048
    $region57: #{tpu_custom_call.1} parent=1 // pred_fallthru
      _
    %v87 = vld [vmem:[%s1] sm:$0x3]
    %v88 = vperm.slane %v87, 0
    %v89 = vlaneseq
    %v90 = vshrl.u32 %v89, 7
    %92 = vset.pattern.permute.xlu0 %v90
    %93 = vperm.xlu0 %92, %v88
    %v94 = vpop.permute.xlu0 %93
    %v95 = vperm.slane %v87, 1
    %v96 = vlaneseq
    %v97 = vshrl.u32 %v96, 7
    %99 = vset.pattern.permute.xlu0 %v97
    %100 = vperm.xlu0 %99, %v95
    %v101 = vpop.permute.xlu0 %100
    %vm102 = vcmp.ne.s32.totalorder %v94, 0
    %vm103 = vcmp.ne.s32.totalorder %v101, 0
    %v104 = vrot.slane %v87, 1
    %vm105 = vcmp.ne.s32.totalorder %v87, 0
    %vm106 = vcmp.ne.s32.totalorder %v104, 0
    %v107 = vsel %vm102, 1, 0
    %v108 = vsel %vm103, 1, 0
    %vm109 = vcmp.eq.s32.totalorder %v107, 1
    %vm110 = vcmp.eq.s32.totalorder %v108, 1
    %v111 = vsel %vm105, 1, 0
    %v112 = vsel %vm106, 1, 0
    %v113 = vperm.slane %v111, 0
    %v114 = vperm.slane %v112, 0
    %vm115 = vcmp.eq.s32.totalorder %v113, 1
    %vm116 = vcmp.eq.s32.totalorder %v114, 1
    %vm117 = vmand %vm109, %vm115
    %vm118 = vmand %vm110, %vm116
    %v119 = vld [vmem:[#allocation2] sm:$0xff]
    %v120 = vld [vmem:[#allocation2 + $0x8] sm:$0xff]
    %v121 = vld [vmem:[#allocation5] sm:$0xff]
    %v122 = vld [vmem:[#allocation5 + $0x8] sm:$0xf]
    %v123 = vld [vmem:[#allocation5 + $0xc] sm:$0xff]
    %v124 = vld [vmem:[#allocation5 + $0x14] sm:$0xf]
    %v125 = vld [vmem:[#allocation5 + $0x18] sm:$0xff]
    %v126 = vld [vmem:[#allocation5 + $0x20] sm:$0xf]
    %v127 = vld [vmem:[#allocation5 + $0x24] sm:$0xff]
    %v128 = vld [vmem:[#allocation5 + $0x2c] sm:$0xf]
    %v129 = vld [vmem:[#allocation5 + $0x30] sm:$0xff]
    %v130 = vld [vmem:[#allocation5 + $0x38] sm:$0xf]
    %v131 = vld [vmem:[#allocation5 + $0x3c] sm:$0xff]
    %v132 = vld [vmem:[#allocation5 + $0x44] sm:$0xf]
    %v133 = vld [vmem:[#allocation5 + $0x48] sm:$0xff]
    %v134 = vld [vmem:[#allocation5 + $0x50] sm:$0xf]
    %v135 = vld [vmem:[#allocation5 + $0x54] sm:$0xff]
    %v136 = vld [vmem:[#allocation5 + $0x5c] sm:$0xf]
    %v137 = vld [vmem:[#allocation5 + $0x60] sm:$0xff]
    %v138 = vld [vmem:[#allocation5 + $0x68] sm:$0xf]
    %v139 = vld [vmem:[#allocation5 + $0x6c] sm:$0xff]
    %v140 = vld [vmem:[#allocation5 + $0x74] sm:$0xf]
    %v141 = vld [vmem:[#allocation5 + $0x78] sm:$0xff]
    %v142 = vld [vmem:[#allocation5 + $0x80] sm:$0xf]
    %v143 = vld [vmem:[#allocation5 + $0x84] sm:$0xff]
    %v144 = vld [vmem:[#allocation5 + $0x8c] sm:$0xf]
    %v145 = vld [vmem:[#allocation5 + $0x90] sm:$0xff]
    %v146 = vld [vmem:[#allocation5 + $0x98] sm:$0xf]
    %v147 = vld [vmem:[#allocation5 + $0x9c] sm:$0xff]
    %v148 = vld [vmem:[#allocation5 + $0xa4] sm:$0xf]
    %v149 = vld [vmem:[#allocation5 + $0xa8] sm:$0xff]
    %v150 = vld [vmem:[#allocation5 + $0xb0] sm:$0xf]
    %v151 = vld [vmem:[#allocation5 + $0xb4] sm:$0xff]
    %v152 = vld [vmem:[#allocation5 + $0xbc] sm:$0xf]
    %v153 = vpack.c.bf16 %v120, %v119
    %v186 = vunpack.c.l.b16 %v121
    %v187 = vunpack.c.h.b16 %v121
    %v188 = vunpack.c.l.b16 %v122
    %v189 = vunpack.c.l.b16 %v123
    %v190 = vunpack.c.h.b16 %v123
    %v191 = vunpack.c.l.b16 %v124
    %v192 = vunpack.c.l.b16 %v125
    %v193 = vunpack.c.h.b16 %v125
    %v194 = vunpack.c.l.b16 %v126
    %v195 = vunpack.c.l.b16 %v127
    %v196 = vunpack.c.h.b16 %v127
    %v197 = vunpack.c.l.b16 %v128
    %v198 = vunpack.c.l.b16 %v129
    %v199 = vunpack.c.h.b16 %v129
    %v200 = vunpack.c.l.b16 %v130
    %v201 = vunpack.c.l.b16 %v131
    %v202 = vunpack.c.h.b16 %v131
    %v203 = vunpack.c.l.b16 %v132
    %v204 = vunpack.c.l.b16 %v133
    %v205 = vunpack.c.h.b16 %v133
    %v206 = vunpack.c.l.b16 %v134
    %v207 = vunpack.c.l.b16 %v135
    %v208 = vunpack.c.h.b16 %v135
    %v209 = vunpack.c.l.b16 %v136
    %v210 = vunpack.c.l.b16 %v137
    %v211 = vunpack.c.h.b16 %v137
    %v212 = vunpack.c.l.b16 %v138
    %v213 = vunpack.c.l.b16 %v139
    %v214 = vunpack.c.h.b16 %v139
    %v215 = vunpack.c.l.b16 %v140
    %v216 = vunpack.c.l.b16 %v141
    %v217 = vunpack.c.h.b16 %v141
    %v218 = vunpack.c.l.b16 %v142
    %v219 = vunpack.c.l.b16 %v143
    %v220 = vunpack.c.h.b16 %v143
    %v221 = vunpack.c.l.b16 %v144
    %v222 = vunpack.c.l.b16 %v145
    %v223 = vunpack.c.h.b16 %v145
    %v224 = vunpack.c.l.b16 %v146
    %v225 = vunpack.c.l.b16 %v147
    %v226 = vunpack.c.h.b16 %v147
    %v227 = vunpack.c.l.b16 %v148
    %v228 = vunpack.c.l.b16 %v149
    %v229 = vunpack.c.h.b16 %v149
    %v230 = vunpack.c.l.b16 %v150
    %v231 = vunpack.c.l.b16 %v151
    %v232 = vunpack.c.h.b16 %v151
    %v233 = vunpack.c.l.b16 %v152
    %v234 = vpack.c.b16 %v189, %v186
    %v235 = vpack.c.b16 %v190, %v187
    %v236 = vpack.c.b16 %v191, %v188
    %v237 = vpack.c.b16 %v195, %v192
    %v238 = vpack.c.b16 %v196, %v193
    %v239 = vpack.c.b16 %v197, %v194
    %v240 = vpack.c.b16 %v201, %v198
    %v241 = vpack.c.b16 %v202, %v199
    %v242 = vpack.c.b16 %v203, %v200
    %v243 = vpack.c.b16 %v207, %v204
    %v244 = vpack.c.b16 %v208, %v205
    %v245 = vpack.c.b16 %v209, %v206
    %v246 = vpack.c.b16 %v213, %v210
    %v247 = vpack.c.b16 %v214, %v211
    %v248 = vpack.c.b16 %v215, %v212
    %v249 = vpack.c.b16 %v219, %v216
    %v250 = vpack.c.b16 %v220, %v217
    %v251 = vpack.c.b16 %v221, %v218
    %v252 = vpack.c.b16 %v225, %v222
    %v253 = vpack.c.b16 %v226, %v223
    %v254 = vpack.c.b16 %v227, %v224
    %v255 = vpack.c.b16 %v231, %v228
    %v256 = vpack.c.b16 %v232, %v229
    %v257 = vpack.c.b16 %v233, %v230
    %282 = vmatpush.bf16.msra.mxu0 %v255
    %283 = vmatpush.bf16.msra.mxu0 %v252
    %284 = vmatpush.bf16.msra.mxu0 %v249
    %285 = vmatpush.bf16.msra.mxu0 %v246
    %286 = vmatpush.bf16.msra.mxu0 %v243
    %287 = vmatpush.bf16.msra.mxu0 %v240
    %288 = vmatpush.bf16.msra.mxu0 %v237
    %289 = vmatpush.bf16.msra.mxu0 %v234
    %290 = vmatmul.bf16.gmra.mxu0 %v153
    %v291 = vpop.f32.mrf.mxu0
    %v292 = vadd.f32 0.0, %v291
    %v293 = vpop.f32.mrf.mxu0
    %v294 = vadd.f32 0.0, %v293
    %295 = vdwg.mxu0
    %296 = vmatpush.bf16.msra.mxu0 %v256
    %297 = vmatpush.bf16.msra.mxu0 %v253
    %298 = vmatpush.bf16.msra.mxu0 %v250
    %299 = vmatpush.bf16.msra.mxu0 %v247
    %300 = vmatpush.bf16.msra.mxu0 %v244
    %301 = vmatpush.bf16.msra.mxu0 %v241
    %302 = vmatpush.bf16.msra.mxu0 %v238
    %303 = vmatpush.bf16.msra.mxu0 %v235
    %304 = vmatmul.bf16.gmra.mxu0 %v153
    %v305 = vpop.f32.mrf.mxu0
    %v306 = vadd.f32 0.0, %v305
    %v307 = vpop.f32.mrf.mxu0
    %v308 = vadd.f32 0.0, %v307
    %309 = vdwg.mxu0
    %310 = vmatpush.bf16.msra.mxu0 %v257
    %311 = vmatpush.bf16.msra.mxu0 %v254
    %312 = vmatpush.bf16.msra.mxu0 %v251
    %313 = vmatpush.bf16.msra.mxu0 %v248
    %314 = vmatpush.bf16.msra.mxu0 %v245
    %315 = vmatpush.bf16.msra.mxu0 %v242
    %316 = vmatpush.bf16.msra.mxu0 %v239
    %317 = vmatpush.bf16.msra.mxu0 %v236
    %318 = vmatmul.bf16.gmra.mxu0 %v153
    %v319 = vpop.f32.mrf.mxu0
    %v320 = vadd.f32 0.0, %v319
    %v321 = vpop.f32.mrf.mxu0
    %v322 = vadd.f32 0.0, %v321
    %323 = vdwg.mxu0
    %v324 = vpack.c.bf16 %v292, %v292
    %v325 = vpack.c.bf16 %v294, %v294
    %v326 = vpack.c.bf16 %v306, %v306
    %v327 = vpack.c.bf16 %v308, %v308
    %328 = vmatpush.bf16.xpose.msra.mxu0 0
    %329 = vmatpush.bf16.xpose.msra.mxu0 0
    %330 = vmatpush.bf16.xpose.msra.mxu0 0
    %331 = vmatpush.bf16.xpose.msra.mxu0 0
    %332 = vmatpush.bf16.xpose.msra.mxu0 0
    %333 = vmatpush.bf16.xpose.msra.mxu0 0
    %334 = vmatpush.bf16.xpose.msra.mxu0 0
    %335 = vmatpush.bf16.xpose.msra.mxu0 %v326
    %336 = vmatmul.bf16.gmra.mxu0 %v324
    %v337 = vpop.f32.mrf.mxu0
    %v338 = vadd.f32 0.0, %v337
    %v339 = vpop.f32.mrf.mxu0
    %340 = vdwg.mxu0
    %341 = vmatpush.bf16.xpose.msra.mxu0 0
    %342 = vmatpush.bf16.xpose.msra.mxu0 0
    %343 = vmatpush.bf16.xpose.msra.mxu0 0
    %344 = vmatpush.bf16.xpose.msra.mxu0 0
    %345 = vmatpush.bf16.xpose.msra.mxu0 0
    %346 = vmatpush.bf16.xpose.msra.mxu0 0
    %347 = vmatpush.bf16.xpose.msra.mxu0 0
    %348 = vmatpush.bf16.xpose.msra.mxu0 %v327
    %349 = vmatmul.bf16.gmra.mxu0 %v325
    %v350 = vpop.f32.mrf.mxu0
    %v351 = vadd.f32 0.0, %v350
    %v352 = vpop.f32.mrf.mxu0
    %353 = vdwg.mxu0
    %v354 = vsel %vm117, %v338, -1e+20
    %v355 = vsel %vm118, %v351, -1e+20
    %vm356 = vcmask 64512
    %v357 = vsel %vm356, %v354, -inf
    %358 = vmax.xlane.f32.xlu0 %v357
    %v359 = vpop.xlane.xlu0 %358
    %v360 = vsel %vm356, %v355, -inf
    %361 = vmax.xlane.f32.xlu0 %v360
    %v362 = vpop.xlane.xlu0 %361
    %v363 = vsub.f32 %v354, %v359
    %v364 = vsub.f32 %v355, %v362
    %v365 = vmul.f32 %v363, 1.442695
    %v366 = vpow.pop %v365
    %v367 = vmul.f32 %v364, 1.442695
    %v368 = vpow.pop %v367
    %v369 = vsel %vm356, %v366, 0.0
    %370 = vadd.xlane.f32.xlu0 %v369
    %v371 = vpop.xlane.xlu0 %370
    %v372 = vsel %vm356, %v368, 0.0
    %373 = vadd.xlane.f32.xlu0 %v372
    %v374 = vpop.xlane.xlu0 %373
    %v375 = vrcp.pop %v371
    %v376 = vmul.f32 %v371, %v375
    %v377 = vsub.f32 1.0, %v376
    %v378 = vmul.f32 %v375, %v377
    %v379 = vadd.f32 %v375, %v378
    %vm380 = vweird.f32 %v371
    %vm381 = vweird.f32 %v375
    %vm382 = vmor %vm380, %vm381
    %v383 = vsel %vm382, %v375, %v379
    %v384 = vand.u32 2147483647, %v371
    %vm385 = vcmp.eq.f32.partialorder %v384, 8.507059e+37
    %v386 = vand.u32 %v371, 2147483648
    %v387 = vor.u32 1.1754944e-38, %v386
    %v388 = vsel %vm385, %v387, %v383
    %v389 = vmul.f32 %v366, %v388
    %v390 = vrcp.pop %v374
    %v391 = vmul.f32 %v374, %v390
    %v392 = vsub.f32 1.0, %v391
    %v393 = vmul.f32 %v390, %v392
    %v394 = vadd.f32 %v390, %v393
    %vm395 = vweird.f32 %v374
    %vm396 = vweird.f32 %v390
    %vm397 = vmor %vm395, %vm396
    %v398 = vsel %vm397, %v390, %v394
    %v399 = vand.u32 2147483647, %v374
    %vm400 = vcmp.eq.f32.partialorder %v399, 8.507059e+37
    %v401 = vand.u32 %v374, 2147483648
    %v402 = vor.u32 1.1754944e-38, %v401
    %v403 = vsel %vm400, %v402, %v398
    %v404 = vmul.f32 %v368, %v403
    %v405 = vpack.c.bf16 %v389, %v389
    %v406 = vpack.c.bf16 %v404, %v404
    %v407 = vpack.c.bf16 %v320, %v320
    %v408 = vpack.c.bf16 %v322, %v322
    %v410 = vsel %vm356, %v405, 0
    %vm412 = vcmask 1043456
    %v414 = vsel %vm412, %v407, 0
    %416 = vmatpush.bf16.msra.mxu0 0
    %417 = vmatpush.bf16.msra.mxu0 0
    %418 = vmatpush.bf16.msra.mxu0 0
    %419 = vmatpush.bf16.msra.mxu0 0
    %420 = vmatpush.bf16.msra.mxu0 0
    %421 = vmatpush.bf16.msra.mxu0 0
    %422 = vmatpush.bf16.msra.mxu0 0
    %423 = vmatpush.bf16.msra.mxu0 %v414
    %424 = vmatmul.bf16.gmra.mxu0 %v410
    %v425 = vpop.f32.mrf.mxu0
    %v426 = vadd.f32 0.0, %v425
    %v427 = vpop.f32.mrf.mxu0
    %428 = vdwg.mxu0
    %v430 = vsel %vm356, %v406, 0
    %v433 = vsel %vm412, %v408, 0
    %435 = vmatpush.bf16.msra.mxu0 0
    %436 = vmatpush.bf16.msra.mxu0 0
    %437 = vmatpush.bf16.msra.mxu0 0
    %438 = vmatpush.bf16.msra.mxu0 0
    %439 = vmatpush.bf16.msra.mxu0 0
    %440 = vmatpush.bf16.msra.mxu0 0
    %441 = vmatpush.bf16.msra.mxu0 0
    %442 = vmatpush.bf16.msra.mxu0 %v433
    %443 = vmatmul.bf16.gmra.mxu0 %v430
    %v444 = vpop.f32.mrf.mxu0
    %v445 = vadd.f32 0.0, %v444
    %v446 = vpop.f32.mrf.mxu0
    %447 = vdwg.mxu0
    %v448 = vadd.f32 %v119, %v426
    %v449 = vadd.f32 %v120, %v445
    %450 = vadd.xlane.f32.xlu0 %v448
    %v451 = vpop.xlane.xlu0 %450
    %452 = vadd.xlane.f32.xlu0 %v449
    %v453 = vpop.xlane.xlu0 %452
    %v454 = vrcp.pop 128.0
    %v455 = vmul.f32 128.0, %v454
    %v456 = vsub.f32 1.0, %v455
    %v457 = vmul.f32 %v454, %v456
    %v458 = vadd.f32 %v454, %v457
    %vm459 = vweird.f32 %v454
    %v460 = vsel %vm459, %v454, %v458
    %v461 = vmul.f32 %v451, %v460
    %v462 = vmul.f32 %v453, %v460
    %v463 = vsub.f32 %v448, %v461
    %v464 = vsub.f32 %v449, %v462
    %v465 = vmul.f32 %v463, %v463
    %v466 = vmul.f32 %v464, %v464
    %467 = vadd.xlane.f32.xlu0 %v465
    %v468 = vpop.xlane.xlu0 %467
    %469 = vadd.xlane.f32.xlu0 %v466
    %v470 = vpop.xlane.xlu0 %469
    %v471 = vmul.f32 %v468, %v460
    %v472 = vmul.f32 %v470, %v460
    %v473 = vadd.f32 %v471, 1e-05
    %v474 = vadd.f32 %v472, 1e-05
    %v475 = vrsqrt.pop %v473
    %v476 = vmul.f32 %v475, %v473
    %v477 = vmul.f32 %v476, %v475
    %v478 = vmul.f32 0.5, %v477
    %v479 = vsub.f32 1.5, %v478
    %v480 = vmul.f32 %v475, %v479
    %vm481 = vweird.f32 %v473
    %vm482 = vweird.f32 %v475
    %vm483 = vmor %vm481, %vm482
    %v484 = vsel %vm483, %v475, %v480
    %v485 = vrsqrt.pop %v474
    %v486 = vmul.f32 %v485, %v474
    %v487 = vmul.f32 %v486, %v485
    %v488 = vmul.f32 0.5, %v487
    %v489 = vsub.f32 1.5, %v488
    %v490 = vmul.f32 %v485, %v489
    %vm491 = vweird.f32 %v474
    %vm492 = vweird.f32 %v485
    %vm493 = vmor %vm491, %vm492
    %v494 = vsel %vm493, %v485, %v490
    %v495 = vmul.f32 %v463, %v484
    %v496 = vmul.f32 %v464, %v494
    %v497 = vld [vmem:[%s3] sm:$0x1]
    %v498 = vperm.slane %v497, 0
    %v499 = vmul.f32 %v495, %v498
    %v500 = vmul.f32 %v496, %v498
    %v501 = vld [vmem:[%s4] sm:$0x1]
    %v502 = vperm.slane %v501, 0
    %v503 = vadd.f32 %v499, %v502
    %v504 = vadd.f32 %v500, %v502
    %s505 = scalar_lea.vmem [#allocation5], 192
    %v506 = vld [vmem:[%s505] sm:$0xff]
    %v507 = vld [vmem:[%s505 + $0x8] sm:$0xf]
    %v508 = vld [vmem:[%s505 + $0xc] sm:$0xff]
    %v509 = vld [vmem:[%s505 + $0x14] sm:$0xf]
    %v510 = vld [vmem:[%s505 + $0x18] sm:$0xff]
    %v511 = vld [vmem:[%s505 + $0x20] sm:$0xf]
    %v512 = vld [vmem:[%s505 + $0x24] sm:$0xff]
    %v513 = vld [vmem:[%s505 + $0x2c] sm:$0xf]
    %v514 = vld [vmem:[%s505 + $0x30] sm:$0xff]
    %v515 = vld [vmem:[%s505 + $0x38] sm:$0xf]
    %v516 = vld [vmem:[%s505 + $0x3c] sm:$0xff]
    %v517 = vld [vmem:[%s505 + $0x44] sm:$0xf]
    %v518 = vld [vmem:[%s505 + $0x48] sm:$0xff]
    %v519 = vld [vmem:[%s505 + $0x50] sm:$0xf]
    %v520 = vld [vmem:[%s505 + $0x54] sm:$0xff]
    %v521 = vld [vmem:[%s505 + $0x5c] sm:$0xf]
    %v522 = vld [vmem:[%s505 + $0x60] sm:$0xff]
    %v523 = vld [vmem:[%s505 + $0x68] sm:$0xf]
    %v524 = vld [vmem:[%s505 + $0x6c] sm:$0xff]
    %v525 = vld [vmem:[%s505 + $0x74] sm:$0xf]
    %v526 = vld [vmem:[%s505 + $0x78] sm:$0xff]
    %v527 = vld [vmem:[%s505 + $0x80] sm:$0xf]
    %v528 = vld [vmem:[%s505 + $0x84] sm:$0xff]
    %v529 = vld [vmem:[%s505 + $0x8c] sm:$0xf]
    %v530 = vld [vmem:[%s505 + $0x90] sm:$0xff]
    %v531 = vld [vmem:[%s505 + $0x98] sm:$0xf]
    %v532 = vld [vmem:[%s505 + $0x9c] sm:$0xff]
    %v533 = vld [vmem:[%s505 + $0xa4] sm:$0xf]
    %v534 = vld [vmem:[%s505 + $0xa8] sm:$0xff]
    %v535 = vld [vmem:[%s505 + $0xb0] sm:$0xf]
    %v536 = vld [vmem:[%s505 + $0xb4] sm:$0xff]
    %v537 = vld [vmem:[%s505 + $0xbc] sm:$0xf]
    %v538 = vpack.c.bf16 %v504, %v503
    %v571 = vunpack.c.l.b16 %v506
    %v572 = vunpack.c.h.b16 %v506
    %v573 = vunpack.c.l.b16 %v507
    %v574 = vunpack.c.l.b16 %v508
    %v575 = vunpack.c.h.b16 %v508
    %v576 = vunpack.c.l.b16 %v509
    %v577 = vunpack.c.l.b16 %v510
    %v578 = vunpack.c.h.b16 %v510
    %v579 = vunpack.c.l.b16 %v511
    %v580 = vunpack.c.l.b16 %v512
    %v581 = vunpack.c.h.b16 %v512
    %v582 = vunpack.c.l.b16 %v513
    %v583 = vunpack.c.l.b16 %v514
    %v584 = vunpack.c.h.b16 %v514
    %v585 = vunpack.c.l.b16 %v515
    %v586 = vunpack.c.l.b16 %v516
    %v587 = vunpack.c.h.b16 %v516
    %v588 = vunpack.c.l.b16 %v517
    %v589 = vunpack.c.l.b16 %v518
    %v590 = vunpack.c.h.b16 %v518
    %v591 = vunpack.c.l.b16 %v519
    %v592 = vunpack.c.l.b16 %v520
    %v593 = vunpack.c.h.b16 %v520
    %v594 = vunpack.c.l.b16 %v521
    %v595 = vunpack.c.l.b16 %v522
    %v596 = vunpack.c.h.b16 %v522
    %v597 = vunpack.c.l.b16 %v523
    %v598 = vunpack.c.l.b16 %v524
    %v599 = vunpack.c.h.b16 %v524
    %v600 = vunpack.c.l.b16 %v525
    %v601 = vunpack.c.l.b16 %v526
    %v602 = vunpack.c.h.b16 %v526
    %v603 = vunpack.c.l.b16 %v527
    %v604 = vunpack.c.l.b16 %v528
    %v605 = vunpack.c.h.b16 %v528
    %v606 = vunpack.c.l.b16 %v529
    %v607 = vunpack.c.l.b16 %v530
    %v608 = vunpack.c.h.b16 %v530
    %v609 = vunpack.c.l.b16 %v531
    %v610 = vunpack.c.l.b16 %v532
    %v611 = vunpack.c.h.b16 %v532
    %v612 = vunpack.c.l.b16 %v533
    %v613 = vunpack.c.l.b16 %v534
    %v614 = vunpack.c.h.b16 %v534
    %v615 = vunpack.c.l.b16 %v535
    %v616 = vunpack.c.l.b16 %v536
    %v617 = vunpack.c.h.b16 %v536
    %v618 = vunpack.c.l.b16 %v537
    %v619 = vpack.c.b16 %v574, %v571
    %v620 = vpack.c.b16 %v575, %v572
    %v621 = vpack.c.b16 %v576, %v573
    %v622 = vpack.c.b16 %v580, %v577
    %v623 = vpack.c.b16 %v581, %v578
    %v624 = vpack.c.b16 %v582, %v579
    %v625 = vpack.c.b16 %v586, %v583
    %v626 = vpack.c.b16 %v587, %v584
    %v627 = vpack.c.b16 %v588, %v585
    %v628 = vpack.c.b16 %v592, %v589
    %v629 = vpack.c.b16 %v593, %v590
    %v630 = vpack.c.b16 %v594, %v591
    %v631 = vpack.c.b16 %v598, %v595
    %v632 = vpack.c.b16 %v599, %v596
    %v633 = vpack.c.b16 %v600, %v597
    %v634 = vpack.c.b16 %v604, %v601
    %v635 = vpack.c.b16 %v605, %v602
    %v636 = vpack.c.b16 %v606, %v603
    %v637 = vpack.c.b16 %v610, %v607
    %v638 = vpack.c.b16 %v611, %v608
    %v639 = vpack.c.b16 %v612, %v609
    %v640 = vpack.c.b16 %v616, %v613
    %v641 = vpack.c.b16 %v617, %v614
    %v642 = vpack.c.b16 %v618, %v615
    %667 = vmatpush.bf16.msra.mxu0 %v640
    %668 = vmatpush.bf16.msra.mxu0 %v637
    %669 = vmatpush.bf16.msra.mxu0 %v634
    %670 = vmatpush.bf16.msra.mxu0 %v631
    %671 = vmatpush.bf16.msra.mxu0 %v628
    %672 = vmatpush.bf16.msra.mxu0 %v625
    %673 = vmatpush.bf16.msra.mxu0 %v622
    %674 = vmatpush.bf16.msra.mxu0 %v619
    %675 = vmatmul.bf16.gmra.mxu0 %v538
    %v676 = vpop.f32.mrf.mxu0
    %v677 = vadd.f32 0.0, %v676
    %v678 = vpop.f32.mrf.mxu0
    %v679 = vadd.f32 0.0, %v678
    %680 = vdwg.mxu0
    %681 = vmatpush.bf16.msra.mxu0 %v641
    %682 = vmatpush.bf16.msra.mxu0 %v638
    %683 = vmatpush.bf16.msra.mxu0 %v635
    %684 = vmatpush.bf16.msra.mxu0 %v632
    %685 = vmatpush.bf16.msra.mxu0 %v629
    %686 = vmatpush.bf16.msra.mxu0 %v626
    %687 = vmatpush.bf16.msra.mxu0 %v623
    %688 = vmatpush.bf16.msra.mxu0 %v620
    %689 = vmatmul.bf16.gmra.mxu0 %v538
    %v690 = vpop.f32.mrf.mxu0
    %v691 = vadd.f32 0.0, %v690
    %v692 = vpop.f32.mrf.mxu0
    %v693 = vadd.f32 0.0, %v692
    %694 = vdwg.mxu0
    %695 = vmatpush.bf16.msra.mxu0 %v642
    %696 = vmatpush.bf16.msra.mxu0 %v639
    %697 = vmatpush.bf16.msra.mxu0 %v636
    %698 = vmatpush.bf16.msra.mxu0 %v633
    %699 = vmatpush.bf16.msra.mxu0 %v630
    %700 = vmatpush.bf16.msra.mxu0 %v627
    %701 = vmatpush.bf16.msra.mxu0 %v624
    %702 = vmatpush.bf16.msra.mxu0 %v621
    %703 = vmatmul.bf16.gmra.mxu0 %v538
    %v704 = vpop.f32.mrf.mxu0
    %v705 = vadd.f32 0.0, %v704
    %v706 = vpop.f32.mrf.mxu0
    %v707 = vadd.f32 0.0, %v706
    %708 = vdwg.mxu0
    %v709 = vpack.c.bf16 %v677, %v677
    %v710 = vpack.c.bf16 %v679, %v679
    %v711 = vpack.c.bf16 %v691, %v691
    %v712 = vpack.c.bf16 %v693, %v693
    %713 = vmatpush.bf16.xpose.msra.mxu0 0
    %714 = vmatpush.bf16.xpose.msra.mxu0 0
    %715 = vmatpush.bf16.xpose.msra.mxu0 0
    %716 = vmatpush.bf16.xpose.msra.mxu0 0
    %717 = vmatpush.bf16.xpose.msra.mxu0 0
    %718 = vmatpush.bf16.xpose.msra.mxu0 0
    %719 = vmatpush.bf16.xpose.msra.mxu0 0
    %720 = vmatpush.bf16.xpose.msra.mxu0 %v711
    %721 = vmatmul.bf16.gmra.mxu0 %v709
    %v722 = vpop.f32.mrf.mxu0
    %v723 = vadd.f32 0.0, %v722
    %v724 = vpop.f32.mrf.mxu0
    %725 = vdwg.mxu0
    %726 = vmatpush.bf16.xpose.msra.mxu0 0
    %727 = vmatpush.bf16.xpose.msra.mxu0 0
    %728 = vmatpush.bf16.xpose.msra.mxu0 0
    %729 = vmatpush.bf16.xpose.msra.mxu0 0
    %730 = vmatpush.bf16.xpose.msra.mxu0 0
    %731 = vmatpush.bf16.xpose.msra.mxu0 0
    %732 = vmatpush.bf16.xpose.msra.mxu0 0
    %733 = vmatpush.bf16.xpose.msra.mxu0 %v712
    %734 = vmatmul.bf16.gmra.mxu0 %v710
    %v735 = vpop.f32.mrf.mxu0
    %v736 = vadd.f32 0.0, %v735
    %v737 = vpop.f32.mrf.mxu0
    %738 = vdwg.mxu0
    %v739 = vsel %vm117, %v723, -1e+20
    %v740 = vsel %vm118, %v736, -1e+20
    %v741 = vsel %vm356, %v739, -inf
    %742 = vmax.xlane.f32.xlu0 %v741
    %v743 = vpop.xlane.xlu0 %742
    %v744 = vsel %vm356, %v740, -inf
    %745 = vmax.xlane.f32.xlu0 %v744
    %v746 = vpop.xlane.xlu0 %745
    %v747 = vsub.f32 %v739, %v743
    %v748 = vsub.f32 %v740, %v746
    %v749 = vmul.f32 %v747, 1.442695
    %v750 = vpow.pop %v749
    %v751 = vmul.f32 %v748, 1.442695
    %v752 = vpow.pop %v751
    %v753 = vsel %vm356, %v750, 0.0
    %754 = vadd.xlane.f32.xlu0 %v753
    %v755 = vpop.xlane.xlu0 %754
    %v756 = vsel %vm356, %v752, 0.0
    %757 = vadd.xlane.f32.xlu0 %v756
    %v758 = vpop.xlane.xlu0 %757
    %v759 = vrcp.pop %v755
    %v760 = vmul.f32 %v755, %v759
    %v761 = vsub.f32 1.0, %v760
    %v762 = vmul.f32 %v759, %v761
    %v763 = vadd.f32 %v759, %v762
    %vm764 = vweird.f32 %v755
    %vm765 = vweird.f32 %v759
    %vm766 = vmor %vm764, %vm765
    %v767 = vsel %vm766, %v759, %v763
    %v768 = vand.u32 2147483647, %v755
    %vm769 = vcmp.eq.f32.partialorder %v768, 8.507059e+37
    %v770 = vand.u32 %v755, 2147483648
    %v771 = vor.u32 1.1754944e-38, %v770
    %v772 = vsel %vm769, %v771, %v767
    %v773 = vmul.f32 %v750, %v772
    %v774 = vrcp.pop %v758
    %v775 = vmul.f32 %v758, %v774
    %v776 = vsub.f32 1.0, %v775
    %v777 = vmul.f32 %v774, %v776
    %v778 = vadd.f32 %v774, %v777
    %vm779 = vweird.f32 %v758
    %vm780 = vweird.f32 %v774
    %vm781 = vmor %vm779, %vm780
    %v782 = vsel %vm781, %v774, %v778
    %v783 = vand.u32 2147483647, %v758
    %vm784 = vcmp.eq.f32.partialorder %v783, 8.507059e+37
    %v785 = vand.u32 %v758, 2147483648
    %v786 = vor.u32 1.1754944e-38, %v785
    %v787 = vsel %vm784, %v786, %v782
    %v788 = vmul.f32 %v752, %v787
    %v789 = vpack.c.bf16 %v773, %v773
    %v790 = vpack.c.bf16 %v788, %v788
    %v791 = vpack.c.bf16 %v705, %v705
    %v792 = vpack.c.bf16 %v707, %v707
    %v794 = vsel %vm356, %v789, 0
    %v797 = vsel %vm412, %v791, 0
    %799 = vmatpush.bf16.msra.mxu0 0
    %800 = vmatpush.bf16.msra.mxu0 0
    %801 = vmatpush.bf16.msra.mxu0 0
    %802 = vmatpush.bf16.msra.mxu0 0
    %803 = vmatpush.bf16.msra.mxu0 0
    %804 = vmatpush.bf16.msra.mxu0 0
    %805 = vmatpush.bf16.msra.mxu0 0
    %806 = vmatpush.bf16.msra.mxu0 %v797
    %807 = vmatmul.bf16.gmra.mxu0 %v794
    %v808 = vpop.f32.mrf.mxu0
    %v809 = vadd.f32 0.0, %v808
    %v810 = vpop.f32.mrf.mxu0
    %811 = vdwg.mxu0
    %v813 = vsel %vm356, %v790, 0
    %v816 = vsel %vm412, %v792, 0
    %818 = vmatpush.bf16.msra.mxu0 0
    %819 = vmatpush.bf16.msra.mxu0 0
    %820 = vmatpush.bf16.msra.mxu0 0
    %821 = vmatpush.bf16.msra.mxu0 0
    %822 = vmatpush.bf16.msra.mxu0 0
    %823 = vmatpush.bf16.msra.mxu0 0
    %824 = vmatpush.bf16.msra.mxu0 0
    %825 = vmatpush.bf16.msra.mxu0 %v816
    %826 = vmatmul.bf16.gmra.mxu0 %v813
    %v827 = vpop.f32.mrf.mxu0
    %v828 = vadd.f32 0.0, %v827
    %v829 = vpop.f32.mrf.mxu0
    %830 = vdwg.mxu0
    %v831 = vadd.f32 %v503, %v809
    %v832 = vadd.f32 %v504, %v828
    %833 = vadd.xlane.f32.xlu0 %v831
    %v834 = vpop.xlane.xlu0 %833
    %835 = vadd.xlane.f32.xlu0 %v832
    %v836 = vpop.xlane.xlu0 %835
    %v837 = vmul.f32 %v834, %v460
    %v838 = vmul.f32 %v836, %v460
    %v839 = vsub.f32 %v831, %v837
    %v840 = vsub.f32 %v832, %v838
    %v841 = vmul.f32 %v839, %v839
    %v842 = vmul.f32 %v840, %v840
    %843 = vadd.xlane.f32.xlu0 %v841
    %v844 = vpop.xlane.xlu0 %843
    %845 = vadd.xlane.f32.xlu0 %v842
    %v846 = vpop.xlane.xlu0 %845
    %v847 = vmul.f32 %v844, %v460
    %v848 = vmul.f32 %v846, %v460
    %v849 = vadd.f32 %v847, 1e-05
    %v850 = vadd.f32 %v848, 1e-05
    %v851 = vrsqrt.pop %v849
    %v852 = vmul.f32 %v851, %v849
    %v853 = vmul.f32 %v852, %v851
    %v854 = vmul.f32 0.5, %v853
    %v855 = vsub.f32 1.5, %v854
    %v856 = vmul.f32 %v851, %v855
    %vm857 = vweird.f32 %v849
    %vm858 = vweird.f32 %v851
    %vm859 = vmor %vm857, %vm858
    %v860 = vsel %vm859, %v851, %v856
    %v861 = vrsqrt.pop %v850
    %v862 = vmul.f32 %v861, %v850
    %v863 = vmul.f32 %v862, %v861
    %v864 = vmul.f32 0.5, %v863
    %v865 = vsub.f32 1.5, %v864
    %v866 = vmul.f32 %v861, %v865
    %vm867 = vweird.f32 %v850
    %vm868 = vweird.f32 %v861
    %vm869 = vmor %vm867, %vm868
    %v870 = vsel %vm869, %v861, %v866
    %v871 = vmul.f32 %v839, %v860
    %v872 = vmul.f32 %v840, %v870
    %v873 = vld [vmem:[%s3 + $0x1] sm:$0x1]
    %v874 = vperm.slane %v873, 0
    %v875 = vmul.f32 %v871, %v874
    %v876 = vmul.f32 %v872, %v874
    %v877 = vld [vmem:[%s4 + $0x1] sm:$0x1]
    %v878 = vperm.slane %v877, 0
    %v879 = vadd.f32 %v875, %v878
    %v880 = vadd.f32 %v876, %v878
    %s881 = scalar_lea.vmem [#allocation5], 384
    %v882 = vld [vmem:[%s881] sm:$0xff]
    %v883 = vld [vmem:[%s881 + $0x8] sm:$0xf]
    %v884 = vld [vmem:[%s881 + $0xc] sm:$0xff]
    %v885 = vld [vmem:[%s881 + $0x14] sm:$0xf]
    %v886 = vld [vmem:[%s881 + $0x18] sm:$0xff]
    %v887 = vld [vmem:[%s881 + $0x20] sm:$0xf]
    %v888 = vld [vmem:[%s881 + $0x24] sm:$0xff]
    %v889 = vld [vmem:[%s881 + $0x2c] sm:$0xf]
    %v890 = vld [vmem:[%s881 + $0x30] sm:$0xff]
    %v891 = vld [vmem:[%s881 + $0x38] sm:$0xf]
    %v892 = vld [vmem:[%s881 + $0x3c] sm:$0xff]
    %v893 = vld [vmem:[%s881 + $0x44] sm:$0xf]
    %v894 = vld [vmem:[%s881 + $0x48] sm:$0xff]
    %v895 = vld [vmem:[%s881 + $0x50] sm:$0xf]
    %v896 = vld [vmem:[%s881 + $0x54] sm:$0xff]
    %v897 = vld [vmem:[%s881 + $0x5c] sm:$0xf]
    %v898 = vld [vmem:[%s881 + $0x60] sm:$0xff]
    %v899 = vld [vmem:[%s881 + $0x68] sm:$0xf]
    %v900 = vld [vmem:[%s881 + $0x6c] sm:$0xff]
    %v901 = vld [vmem:[%s881 + $0x74] sm:$0xf]
    %v902 = vld [vmem:[%s881 + $0x78] sm:$0xff]
    %v903 = vld [vmem:[%s881 + $0x80] sm:$0xf]
    %v904 = vld [vmem:[%s881 + $0x84] sm:$0xff]
    %v905 = vld [vmem:[%s881 + $0x8c] sm:$0xf]
    %v906 = vld [vmem:[%s881 + $0x90] sm:$0xff]
    %v907 = vld [vmem:[%s881 + $0x98] sm:$0xf]
    %v908 = vld [vmem:[%s881 + $0x9c] sm:$0xff]
    %v909 = vld [vmem:[%s881 + $0xa4] sm:$0xf]
    %v910 = vld [vmem:[%s881 + $0xa8] sm:$0xff]
    %v911 = vld [vmem:[%s881 + $0xb0] sm:$0xf]
    %v912 = vld [vmem:[%s881 + $0xb4] sm:$0xff]
    %v913 = vld [vmem:[%s881 + $0xbc] sm:$0xf]
    %v914 = vpack.c.bf16 %v880, %v879
    %v947 = vunpack.c.l.b16 %v882
    %v948 = vunpack.c.h.b16 %v882
    %v949 = vunpack.c.l.b16 %v883
    %v950 = vunpack.c.l.b16 %v884
    %v951 = vunpack.c.h.b16 %v884
    %v952 = vunpack.c.l.b16 %v885
    %v953 = vunpack.c.l.b16 %v886
    %v954 = vunpack.c.h.b16 %v886
    %v955 = vunpack.c.l.b16 %v887
    %v956 = vunpack.c.l.b16 %v888
    %v957 = vunpack.c.h.b16 %v888
    %v958 = vunpack.c.l.b16 %v889
    %v959 = vunpack.c.l.b16 %v890
    %v960 = vunpack.c.h.b16 %v890
    %v961 = vunpack.c.l.b16 %v891
    %v962 = vunpack.c.l.b16 %v892
    %v963 = vunpack.c.h.b16 %v892
    %v964 = vunpack.c.l.b16 %v893
    %v965 = vunpack.c.l.b16 %v894
    %v966 = vunpack.c.h.b16 %v894
    %v967 = vunpack.c.l.b16 %v895
    %v968 = vunpack.c.l.b16 %v896
    %v969 = vunpack.c.h.b16 %v896
    %v970 = vunpack.c.l.b16 %v897
    %v971 = vunpack.c.l.b16 %v898
    %v972 = vunpack.c.h.b16 %v898
    %v973 = vunpack.c.l.b16 %v899
    %v974 = vunpack.c.l.b16 %v900
    %v975 = vunpack.c.h.b16 %v900
    %v976 = vunpack.c.l.b16 %v901
    %v977 = vunpack.c.l.b16 %v902
    %v978 = vunpack.c.h.b16 %v902
    %v979 = vunpack.c.l.b16 %v903
    %v980 = vunpack.c.l.b16 %v904
    %v981 = vunpack.c.h.b16 %v904
    %v982 = vunpack.c.l.b16 %v905
    %v983 = vunpack.c.l.b16 %v906
    %v984 = vunpack.c.h.b16 %v906
    %v985 = vunpack.c.l.b16 %v907
    %v986 = vunpack.c.l.b16 %v908
    %v987 = vunpack.c.h.b16 %v908
    %v988 = vunpack.c.l.b16 %v909
    %v989 = vunpack.c.l.b16 %v910
    %v990 = vunpack.c.h.b16 %v910
    %v991 = vunpack.c.l.b16 %v911
    %v992 = vunpack.c.l.b16 %v912
    %v993 = vunpack.c.h.b16 %v912
    %v994 = vunpack.c.l.b16 %v913
    %v995 = vpack.c.b16 %v950, %v947
    %v996 = vpack.c.b16 %v951, %v948
    %v997 = vpack.c.b16 %v952, %v949
    %v998 = vpack.c.b16 %v956, %v953
    %v999 = vpack.c.b16 %v957, %v954
    %v1000 = vpack.c.b16 %v958, %v955
    %v1001 = vpack.c.b16 %v962, %v959
    %v1002 = vpack.c.b16 %v963, %v960
    %v1003 = vpack.c.b16 %v964, %v961
    %v1004 = vpack.c.b16 %v968, %v965
    %v1005 = vpack.c.b16 %v969, %v966
    %v1006 = vpack.c.b16 %v970, %v967
    %v1007 = vpack.c.b16 %v974, %v971
    %v1008 = vpack.c.b16 %v975, %v972
    %v1009 = vpack.c.b16 %v976, %v973
    %v1010 = vpack.c.b16 %v980, %v977
    %v1011 = vpack.c.b16 %v981, %v978
    %v1012 = vpack.c.b16 %v982, %v979
    %v1013 = vpack.c.b16 %v986, %v983
    %v1014 = vpack.c.b16 %v987, %v984
    %v1015 = vpack.c.b16 %v988, %v985
    %v1016 = vpack.c.b16 %v992, %v989
    %v1017 = vpack.c.b16 %v993, %v990
    %v1018 = vpack.c.b16 %v994, %v991
    %1043 = vmatpush.bf16.msra.mxu0 %v1016
    %1044 = vmatpush.bf16.msra.mxu0 %v1013
    %1045 = vmatpush.bf16.msra.mxu0 %v1010
    %1046 = vmatpush.bf16.msra.mxu0 %v1007
    %1047 = vmatpush.bf16.msra.mxu0 %v1004
    %1048 = vmatpush.bf16.msra.mxu0 %v1001
    %1049 = vmatpush.bf16.msra.mxu0 %v998
    %1050 = vmatpush.bf16.msra.mxu0 %v995
    %1051 = vmatmul.bf16.gmra.mxu0 %v914
    %v1052 = vpop.f32.mrf.mxu0
    %v1053 = vadd.f32 0.0, %v1052
    %v1054 = vpop.f32.mrf.mxu0
    %v1055 = vadd.f32 0.0, %v1054
    %1056 = vdwg.mxu0
    %1057 = vmatpush.bf16.msra.mxu0 %v1017
    %1058 = vmatpush.bf16.msra.mxu0 %v1014
    %1059 = vmatpush.bf16.msra.mxu0 %v1011
    %1060 = vmatpush.bf16.msra.mxu0 %v1008
    %1061 = vmatpush.bf16.msra.mxu0 %v1005
    %1062 = vmatpush.bf16.msra.mxu0 %v1002
    %1063 = vmatpush.bf16.msra.mxu0 %v999
    %1064 = vmatpush.bf16.msra.mxu0 %v996
    %1065 = vmatmul.bf16.gmra.mxu0 %v914
    %v1066 = vpop.f32.mrf.mxu0
    %v1067 = vadd.f32 0.0, %v1066
    %v1068 = vpop.f32.mrf.mxu0
    %v1069 = vadd.f32 0.0, %v1068
    %1070 = vdwg.mxu0
    %1071 = vmatpush.bf16.msra.mxu0 %v1018
    %1072 = vmatpush.bf16.msra.mxu0 %v1015
    %1073 = vmatpush.bf16.msra.mxu0 %v1012
    %1074 = vmatpush.bf16.msra.mxu0 %v1009
    %1075 = vmatpush.bf16.msra.mxu0 %v1006
    %1076 = vmatpush.bf16.msra.mxu0 %v1003
    %1077 = vmatpush.bf16.msra.mxu0 %v1000
    %1078 = vmatpush.bf16.msra.mxu0 %v997
    %1079 = vmatmul.bf16.gmra.mxu0 %v914
    %v1080 = vpop.f32.mrf.mxu0
    %v1081 = vadd.f32 0.0, %v1080
    %v1082 = vpop.f32.mrf.mxu0
    %v1083 = vadd.f32 0.0, %v1082
    %1084 = vdwg.mxu0
    %v1085 = vpack.c.bf16 %v1053, %v1053
    %v1086 = vpack.c.bf16 %v1055, %v1055
    %v1087 = vpack.c.bf16 %v1067, %v1067
    %v1088 = vpack.c.bf16 %v1069, %v1069
    %1089 = vmatpush.bf16.xpose.msra.mxu0 0
    %1090 = vmatpush.bf16.xpose.msra.mxu0 0
    %1091 = vmatpush.bf16.xpose.msra.mxu0 0
    %1092 = vmatpush.bf16.xpose.msra.mxu0 0
    %1093 = vmatpush.bf16.xpose.msra.mxu0 0
    %1094 = vmatpush.bf16.xpose.msra.mxu0 0
    %1095 = vmatpush.bf16.xpose.msra.mxu0 0
    %1096 = vmatpush.bf16.xpose.msra.mxu0 %v1087
    %1097 = vmatmul.bf16.gmra.mxu0 %v1085
    %v1098 = vpop.f32.mrf.mxu0
    %v1099 = vadd.f32 0.0, %v1098
    %v1100 = vpop.f32.mrf.mxu0
    %1101 = vdwg.mxu0
    %1102 = vmatpush.bf16.xpose.msra.mxu0 0
    %1103 = vmatpush.bf16.xpose.msra.mxu0 0
    %1104 = vmatpush.bf16.xpose.msra.mxu0 0
    %1105 = vmatpush.bf16.xpose.msra.mxu0 0
    %1106 = vmatpush.bf16.xpose.msra.mxu0 0
    %1107 = vmatpush.bf16.xpose.msra.mxu0 0
    %1108 = vmatpush.bf16.xpose.msra.mxu0 0
    %1109 = vmatpush.bf16.xpose.msra.mxu0 %v1088
    %1110 = vmatmul.bf16.gmra.mxu0 %v1086
    %v1111 = vpop.f32.mrf.mxu0
    %v1112 = vadd.f32 0.0, %v1111
    %v1113 = vpop.f32.mrf.mxu0
    %1114 = vdwg.mxu0
    %v1115 = vsel %vm117, %v1099, -1e+20
    %v1116 = vsel %vm118, %v1112, -1e+20
    %v1117 = vsel %vm356, %v1115, -inf
    %1118 = vmax.xlane.f32.xlu0 %v1117
    %v1119 = vpop.xlane.xlu0 %1118
    %v1120 = vsel %vm356, %v1116, -inf
    %1121 = vmax.xlane.f32.xlu0 %v1120
    %v1122 = vpop.xlane.xlu0 %1121
    %v1123 = vsub.f32 %v1115, %v1119
    %v1124 = vsub.f32 %v1116, %v1122
    %v1125 = vmul.f32 %v1123, 1.442695
    %v1126 = vpow.pop %v1125
    %v1127 = vmul.f32 %v1124, 1.442695
    %v1128 = vpow.pop %v1127
    %v1129 = vsel %vm356, %v1126, 0.0
    %1130 = vadd.xlane.f32.xlu0 %v1129
    %v1131 = vpop.xlane.xlu0 %1130
    %v1132 = vsel %vm356, %v1128, 0.0
    %1133 = vadd.xlane.f32.xlu0 %v1132
    %v1134 = vpop.xlane.xlu0 %1133
    %v1135 = vrcp.pop %v1131
    %v1136 = vmul.f32 %v1131, %v1135
    %v1137 = vsub.f32 1.0, %v1136
    %v1138 = vmul.f32 %v1135, %v1137
    %v1139 = vadd.f32 %v1135, %v1138
    %vm1140 = vweird.f32 %v1131
    %vm1141 = vweird.f32 %v1135
    %vm1142 = vmor %vm1140, %vm1141
    %v1143 = vsel %vm1142, %v1135, %v1139
    %v1144 = vand.u32 2147483647, %v1131
    %vm1145 = vcmp.eq.f32.partialorder %v1144, 8.507059e+37
    %v1146 = vand.u32 %v1131, 2147483648
    %v1147 = vor.u32 1.1754944e-38, %v1146
    %v1148 = vsel %vm1145, %v1147, %v1143
    %v1149 = vmul.f32 %v1126, %v1148
    %v1150 = vrcp.pop %v1134
    %v1151 = vmul.f32 %v1134, %v1150
    %v1152 = vsub.f32 1.0, %v1151
    %v1153 = vmul.f32 %v1150, %v1152
    %v1154 = vadd.f32 %v1150, %v1153
    %vm1155 = vweird.f32 %v1134
    %vm1156 = vweird.f32 %v1150
    %vm1157 = vmor %vm1155, %vm1156
    %v1158 = vsel %vm1157, %v1150, %v1154
    %v1159 = vand.u32 2147483647, %v1134
    %vm1160 = vcmp.eq.f32.partialorder %v1159, 8.507059e+37
    %v1161 = vand.u32 %v1134, 2147483648
    %v1162 = vor.u32 1.1754944e-38, %v1161
    %v1163 = vsel %vm1160, %v1162, %v1158
    %v1164 = vmul.f32 %v1128, %v1163
    %v1165 = vpack.c.bf16 %v1149, %v1149
    %v1166 = vpack.c.bf16 %v1164, %v1164
    %v1167 = vpack.c.bf16 %v1081, %v1081
    %v1168 = vpack.c.bf16 %v1083, %v1083
    %v1170 = vsel %vm356, %v1165, 0
    %v1173 = vsel %vm412, %v1167, 0
    %1175 = vmatpush.bf16.msra.mxu0 0
    %1176 = vmatpush.bf16.msra.mxu0 0
    %1177 = vmatpush.bf16.msra.mxu0 0
    %1178 = vmatpush.bf16.msra.mxu0 0
    %1179 = vmatpush.bf16.msra.mxu0 0
    %1180 = vmatpush.bf16.msra.mxu0 0
    %1181 = vmatpush.bf16.msra.mxu0 0
    %1182 = vmatpush.bf16.msra.mxu0 %v1173
    %1183 = vmatmul.bf16.gmra.mxu0 %v1170
    %v1184 = vpop.f32.mrf.mxu0
    %v1185 = vadd.f32 0.0, %v1184
    %v1186 = vpop.f32.mrf.mxu0
    %1187 = vdwg.mxu0
    %v1189 = vsel %vm356, %v1166, 0
    %v1192 = vsel %vm412, %v1168, 0
    %1194 = vmatpush.bf16.msra.mxu0 0
    %1195 = vmatpush.bf16.msra.mxu0 0
    %1196 = vmatpush.bf16.msra.mxu0 0
    %1197 = vmatpush.bf16.msra.mxu0 0
    %1198 = vmatpush.bf16.msra.mxu0 0
    %1199 = vmatpush.bf16.msra.mxu0 0
    %1200 = vmatpush.bf16.msra.mxu0 0
    %1201 = vmatpush.bf16.msra.mxu0 %v1192
    %1202 = vmatmul.bf16.gmra.mxu0 %v1189
    %v1203 = vpop.f32.mrf.mxu0
    %v1204 = vadd.f32 0.0, %v1203
    %v1205 = vpop.f32.mrf.mxu0
    %1206 = vdwg.mxu0
    %v1207 = vadd.f32 %v879, %v1185
    %v1208 = vadd.f32 %v880, %v1204
    %1209 = vadd.xlane.f32.xlu0 %v1207
    %v1210 = vpop.xlane.xlu0 %1209
    %1211 = vadd.xlane.f32.xlu0 %v1208
    %v1212 = vpop.xlane.xlu0 %1211
    %v1213 = vmul.f32 %v1210, %v460
    %v1214 = vmul.f32 %v1212, %v460
    %v1215 = vsub.f32 %v1207, %v1213
    %v1216 = vsub.f32 %v1208, %v1214
    %v1217 = vmul.f32 %v1215, %v1215
    %v1218 = vmul.f32 %v1216, %v1216
    %1219 = vadd.xlane.f32.xlu0 %v1217
    %v1220 = vpop.xlane.xlu0 %1219
    %1221 = vadd.xlane.f32.xlu0 %v1218
    %v1222 = vpop.xlane.xlu0 %1221
    %v1223 = vmul.f32 %v1220, %v460
    %v1224 = vmul.f32 %v1222, %v460
    %v1225 = vadd.f32 %v1223, 1e-05
    %v1226 = vadd.f32 %v1224, 1e-05
    %v1227 = vrsqrt.pop %v1225
    %v1228 = vmul.f32 %v1227, %v1225
    %v1229 = vmul.f32 %v1228, %v1227
    %v1230 = vmul.f32 0.5, %v1229
    %v1231 = vsub.f32 1.5, %v1230
    %v1232 = vmul.f32 %v1227, %v1231
    %vm1233 = vweird.f32 %v1225
    %vm1234 = vweird.f32 %v1227
    %vm1235 = vmor %vm1233, %vm1234
    %v1236 = vsel %vm1235, %v1227, %v1232
    %v1237 = vrsqrt.pop %v1226
    %v1238 = vmul.f32 %v1237, %v1226
    %v1239 = vmul.f32 %v1238, %v1237
    %v1240 = vmul.f32 0.5, %v1239
    %v1241 = vsub.f32 1.5, %v1240
    %v1242 = vmul.f32 %v1237, %v1241
    %vm1243 = vweird.f32 %v1226
    %vm1244 = vweird.f32 %v1237
    %vm1245 = vmor %vm1243, %vm1244
    %v1246 = vsel %vm1245, %v1237, %v1242
    %v1247 = vmul.f32 %v1215, %v1236
    %v1248 = vmul.f32 %v1216, %v1246
    %v1249 = vld [vmem:[%s3 + $0x2] sm:$0x1]
    %v1250 = vperm.slane %v1249, 0
    %v1251 = vmul.f32 %v1247, %v1250
    %v1252 = vmul.f32 %v1248, %v1250
    %v1253 = vld [vmem:[%s4 + $0x2] sm:$0x1]
    %v1254 = vperm.slane %v1253, 0
    %v1255 = vadd.f32 %v1251, %v1254
    %v1256 = vadd.f32 %v1252, %v1254
    %v1257 = vrot.slane %v1255, 4
    %v1258 = vadd.f32 %v1255, %v1257
    %v1259 = vrot.slane %v1258, 2
    %v1260 = vadd.f32 %v1258, %v1259
    %v1261 = vrot.slane %v1260, 1
    %v1262 = vadd.f32 %v1260, %v1261
    %v1263 = vrot.slane %v1256, 4
    %v1264 = vadd.f32 %v1256, %v1263
    %v1265 = vrot.slane %v1264, 2
    %v1266 = vadd.f32 %v1264, %v1265
    %v1267 = vrot.slane %v1266, 1
    %v1268 = vadd.f32 %v1266, %v1267
    %v1269 = vrcp.pop 8.0
    %v1270 = vmul.f32 8.0, %v1269
    %v1271 = vsub.f32 1.0, %v1270
    %v1272 = vmul.f32 %v1269, %v1271
    %v1273 = vadd.f32 %v1269, %v1272
    %vm1274 = vweird.f32 %v1269
    %v1275 = vsel %vm1274, %v1269, %v1273
    %v1276 = vmul.f32 %v1262, %v1275
    %v1277 = vmul.f32 %v1268, %v1275
    %s1278 = scalar_lea.vmem [#allocation2], 16
    %v1279 = vld [vmem:[%s1278] sm:$0xff]
    %v1280 = vld [vmem:[%s1278 + $0x8] sm:$0xff]
    %s1281 = scalar_lea.vmem [#allocation5], 576
    %v1282 = vld [vmem:[%s1281] sm:$0xff]
    %v1283 = vld [vmem:[%s1281 + $0x8] sm:$0xf]
    %v1284 = vld [vmem:[%s1281 + $0xc] sm:$0xff]
    %v1285 = vld [vmem:[%s1281 + $0x14] sm:$0xf]
    %v1286 = vld [vmem:[%s1281 + $0x18] sm:$0xff]
    %v1287 = vld [vmem:[%s1281 + $0x20] sm:$0xf]
    %v1288 = vld [vmem:[%s1281 + $0x24] sm:$0xff]
    %v1289 = vld [vmem:[%s1281 + $0x2c] sm:$0xf]
    %v1290 = vld [vmem:[%s1281 + $0x30] sm:$0xff]
    %v1291 = vld [vmem:[%s1281 + $0x38] sm:$0xf]
    %v1292 = vld [vmem:[%s1281 + $0x3c] sm:$0xff]
    %v1293 = vld [vmem:[%s1281 + $0x44] sm:$0xf]
    %v1294 = vld [vmem:[%s1281 + $0x48] sm:$0xff]
    %v1295 = vld [vmem:[%s1281 + $0x50] sm:$0xf]
    %v1296 = vld [vmem:[%s1281 + $0x54] sm:$0xff]
    %v1297 = vld [vmem:[%s1281 + $0x5c] sm:$0xf]
    %v1298 = vld [vmem:[%s1281 + $0x60] sm:$0xff]
    %v1299 = vld [vmem:[%s1281 + $0x68] sm:$0xf]
    %v1300 = vld [vmem:[%s1281 + $0x6c] sm:$0xff]
    %v1301 = vld [vmem:[%s1281 + $0x74] sm:$0xf]
    %v1302 = vld [vmem:[%s1281 + $0x78] sm:$0xff]
    %v1303 = vld [vmem:[%s1281 + $0x80] sm:$0xf]
    %v1304 = vld [vmem:[%s1281 + $0x84] sm:$0xff]
    %v1305 = vld [vmem:[%s1281 + $0x8c] sm:$0xf]
    %v1306 = vld [vmem:[%s1281 + $0x90] sm:$0xff]
    %v1307 = vld [vmem:[%s1281 + $0x98] sm:$0xf]
    %v1308 = vld [vmem:[%s1281 + $0x9c] sm:$0xff]
    %v1309 = vld [vmem:[%s1281 + $0xa4] sm:$0xf]
    %v1310 = vld [vmem:[%s1281 + $0xa8] sm:$0xff]
    %v1311 = vld [vmem:[%s1281 + $0xb0] sm:$0xf]
    %v1312 = vld [vmem:[%s1281 + $0xb4] sm:$0xff]
    %v1313 = vld [vmem:[%s1281 + $0xbc] sm:$0xf]
    %v1314 = vpack.c.bf16 %v1280, %v1279
    %v1347 = vunpack.c.l.b16 %v1282
    %v1348 = vunpack.c.h.b16 %v1282
    %v1349 = vunpack.c.l.b16 %v1283
    %v1350 = vunpack.c.l.b16 %v1284
    %v1351 = vunpack.c.h.b16 %v1284
    %v1352 = vunpack.c.l.b16 %v1285
    %v1353 = vunpack.c.l.b16 %v1286
    %v1354 = vunpack.c.h.b16 %v1286
    %v1355 = vunpack.c.l.b16 %v1287
    %v1356 = vunpack.c.l.b16 %v1288
    %v1357 = vunpack.c.h.b16 %v1288
    %v1358 = vunpack.c.l.b16 %v1289
    %v1359 = vunpack.c.l.b16 %v1290
    %v1360 = vunpack.c.h.b16 %v1290
    %v1361 = vunpack.c.l.b16 %v1291
    %v1362 = vunpack.c.l.b16 %v1292
    %v1363 = vunpack.c.h.b16 %v1292
    %v1364 = vunpack.c.l.b16 %v1293
    %v1365 = vunpack.c.l.b16 %v1294
    %v1366 = vunpack.c.h.b16 %v1294
    %v1367 = vunpack.c.l.b16 %v1295
    %v1368 = vunpack.c.l.b16 %v1296
    %v1369 = vunpack.c.h.b16 %v1296
    %v1370 = vunpack.c.l.b16 %v1297
    %v1371 = vunpack.c.l.b16 %v1298
    %v1372 = vunpack.c.h.b16 %v1298
    %v1373 = vunpack.c.l.b16 %v1299
    %v1374 = vunpack.c.l.b16 %v1300
    %v1375 = vunpack.c.h.b16 %v1300
    %v1376 = vunpack.c.l.b16 %v1301
    %v1377 = vunpack.c.l.b16 %v1302
    %v1378 = vunpack.c.h.b16 %v1302
    %v1379 = vunpack.c.l.b16 %v1303
    %v1380 = vunpack.c.l.b16 %v1304
    %v1381 = vunpack.c.h.b16 %v1304
    %v1382 = vunpack.c.l.b16 %v1305
    %v1383 = vunpack.c.l.b16 %v1306
    %v1384 = vunpack.c.h.b16 %v1306
    %v1385 = vunpack.c.l.b16 %v1307
    %v1386 = vunpack.c.l.b16 %v1308
    %v1387 = vunpack.c.h.b16 %v1308
    %v1388 = vunpack.c.l.b16 %v1309
    %v1389 = vunpack.c.l.b16 %v1310
    %v1390 = vunpack.c.h.b16 %v1310
    %v1391 = vunpack.c.l.b16 %v1311
    %v1392 = vunpack.c.l.b16 %v1312
    %v1393 = vunpack.c.h.b16 %v1312
    %v1394 = vunpack.c.l.b16 %v1313
    %v1395 = vpack.c.b16 %v1350, %v1347
    %v1396 = vpack.c.b16 %v1351, %v1348
    %v1397 = vpack.c.b16 %v1352, %v1349
    %v1398 = vpack.c.b16 %v1356, %v1353
    %v1399 = vpack.c.b16 %v1357, %v1354
    %v1400 = vpack.c.b16 %v1358, %v1355
    %v1401 = vpack.c.b16 %v1362, %v1359
    %v1402 = vpack.c.b16 %v1363, %v1360
    %v1403 = vpack.c.b16 %v1364, %v1361
    %v1404 = vpack.c.b16 %v1368, %v1365
    %v1405 = vpack.c.b16 %v1369, %v1366
    %v1406 = vpack.c.b16 %v1370, %v1367
    %v1407 = vpack.c.b16 %v1374, %v1371
    %v1408 = vpack.c.b16 %v1375, %v1372
    %v1409 = vpack.c.b16 %v1376, %v1373
    %v1410 = vpack.c.b16 %v1380, %v1377
    %v1411 = vpack.c.b16 %v1381, %v1378
    %v1412 = vpack.c.b16 %v1382, %v1379
    %v1413 = vpack.c.b16 %v1386, %v1383
    %v1414 = vpack.c.b16 %v1387, %v1384
    %v1415 = vpack.c.b16 %v1388, %v1385
    %v1416 = vpack.c.b16 %v1392, %v1389
    %v1417 = vpack.c.b16 %v1393, %v1390
    %v1418 = vpack.c.b16 %v1394, %v1391
    %1443 = vmatpush.bf16.msra.mxu0 %v1416
    %1444 = vmatpush.bf16.msra.mxu0 %v1413
    %1445 = vmatpush.bf16.msra.mxu0 %v1410
    %1446 = vmatpush.bf16.msra.mxu0 %v1407
    %1447 = vmatpush.bf16.msra.mxu0 %v1404
    %1448 = vmatpush.bf16.msra.mxu0 %v1401
    %1449 = vmatpush.bf16.msra.mxu0 %v1398
    %1450 = vmatpush.bf16.msra.mxu0 %v1395
    %1451 = vmatmul.bf16.gmra.mxu0 %v1314
    %v1452 = vpop.f32.mrf.mxu0
    %v1453 = vadd.f32 0.0, %v1452
    %v1454 = vpop.f32.mrf.mxu0
    %v1455 = vadd.f32 0.0, %v1454
    %1456 = vdwg.mxu0
    %1457 = vmatpush.bf16.msra.mxu0 %v1417
    %1458 = vmatpush.bf16.msra.mxu0 %v1414
    %1459 = vmatpush.bf16.msra.mxu0 %v1411
    %1460 = vmatpush.bf16.msra.mxu0 %v1408
    %1461 = vmatpush.bf16.msra.mxu0 %v1405
    %1462 = vmatpush.bf16.msra.mxu0 %v1402
    %1463 = vmatpush.bf16.msra.mxu0 %v1399
    %1464 = vmatpush.bf16.msra.mxu0 %v1396
    %1465 = vmatmul.bf16.gmra.mxu0 %v1314
    %v1466 = vpop.f32.mrf.mxu0
    %v1467 = vadd.f32 0.0, %v1466
    %v1468 = vpop.f32.mrf.mxu0
    %v1469 = vadd.f32 0.0, %v1468
    %1470 = vdwg.mxu0
    %1471 = vmatpush.bf16.msra.mxu0 %v1418
    %1472 = vmatpush.bf16.msra.mxu0 %v1415
    %1473 = vmatpush.bf16.msra.mxu0 %v1412
    %1474 = vmatpush.bf16.msra.mxu0 %v1409
    %1475 = vmatpush.bf16.msra.mxu0 %v1406
    %1476 = vmatpush.bf16.msra.mxu0 %v1403
    %1477 = vmatpush.bf16.msra.mxu0 %v1400
    %1478 = vmatpush.bf16.msra.mxu0 %v1397
    %1479 = vmatmul.bf16.gmra.mxu0 %v1314
    %v1480 = vpop.f32.mrf.mxu0
    %v1481 = vadd.f32 0.0, %v1480
    %v1482 = vpop.f32.mrf.mxu0
    %v1483 = vadd.f32 0.0, %v1482
    %1484 = vdwg.mxu0
    %v1485 = vpack.c.bf16 %v1453, %v1453
    %v1486 = vpack.c.bf16 %v1455, %v1455
    %v1487 = vpack.c.bf16 %v1467, %v1467
    %v1488 = vpack.c.bf16 %v1469, %v1469
    %1489 = vmatpush.bf16.xpose.msra.mxu0 0
    %1490 = vmatpush.bf16.xpose.msra.mxu0 0
    %1491 = vmatpush.bf16.xpose.msra.mxu0 0
    %1492 = vmatpush.bf16.xpose.msra.mxu0 0
    %1493 = vmatpush.bf16.xpose.msra.mxu0 0
    %1494 = vmatpush.bf16.xpose.msra.mxu0 0
    %1495 = vmatpush.bf16.xpose.msra.mxu0 0
    %1496 = vmatpush.bf16.xpose.msra.mxu0 %v1487
    %1497 = vmatmul.bf16.gmra.mxu0 %v1485
    %v1498 = vpop.f32.mrf.mxu0
    %v1499 = vadd.f32 0.0, %v1498
    %v1500 = vpop.f32.mrf.mxu0
    %1501 = vdwg.mxu0
    %1502 = vmatpush.bf16.xpose.msra.mxu0 0
    %1503 = vmatpush.bf16.xpose.msra.mxu0 0
    %1504 = vmatpush.bf16.xpose.msra.mxu0 0
    %1505 = vmatpush.bf16.xpose.msra.mxu0 0
    %1506 = vmatpush.bf16.xpose.msra.mxu0 0
    %1507 = vmatpush.bf16.xpose.msra.mxu0 0
    %1508 = vmatpush.bf16.xpose.msra.mxu0 0
    %1509 = vmatpush.bf16.xpose.msra.mxu0 %v1488
    %1510 = vmatmul.bf16.gmra.mxu0 %v1486
    %v1511 = vpop.f32.mrf.mxu0
    %v1512 = vadd.f32 0.0, %v1511
    %v1513 = vpop.f32.mrf.mxu0
    %1514 = vdwg.mxu0
    %v1515 = vsel %vm117, %v1499, -1e+20
    %v1516 = vsel %vm118, %v1512, -1e+20
    %v1517 = vsel %vm356, %v1515, -inf
    %1518 = vmax.xlane.f32.xlu0 %v1517
    %v1519 = vpop.xlane.xlu0 %1518
    %v1520 = vsel %vm356, %v1516, -inf
    %1521 = vmax.xlane.f32.xlu0 %v1520
    %v1522 = vpop.xlane.xlu0 %1521
    %v1523 = vsub.f32 %v1515, %v1519
    %v1524 = vsub.f32 %v1516, %v1522
    %v1525 = vmul.f32 %v1523, 1.442695
    %v1526 = vpow.pop %v1525
    %v1527 = vmul.f32 %v1524, 1.442695
    %v1528 = vpow.pop %v1527
    %v1529 = vsel %vm356, %v1526, 0.0
    %1530 = vadd.xlane.f32.xlu0 %v1529
    %v1531 = vpop.xlane.xlu0 %1530
    %v1532 = vsel %vm356, %v1528, 0.0
    %1533 = vadd.xlane.f32.xlu0 %v1532
    %v1534 = vpop.xlane.xlu0 %1533
    %v1535 = vrcp.pop %v1531
    %v1536 = vmul.f32 %v1531, %v1535
    %v1537 = vsub.f32 1.0, %v1536
    %v1538 = vmul.f32 %v1535, %v1537
    %v1539 = vadd.f32 %v1535, %v1538
    %vm1540 = vweird.f32 %v1531
    %vm1541 = vweird.f32 %v1535
    %vm1542 = vmor %vm1540, %vm1541
    %v1543 = vsel %vm1542, %v1535, %v1539
    %v1544 = vand.u32 2147483647, %v1531
    %vm1545 = vcmp.eq.f32.partialorder %v1544, 8.507059e+37
    %v1546 = vand.u32 %v1531, 2147483648
    %v1547 = vor.u32 1.1754944e-38, %v1546
    %v1548 = vsel %vm1545, %v1547, %v1543
    %v1549 = vmul.f32 %v1526, %v1548
    %v1550 = vrcp.pop %v1534
    %v1551 = vmul.f32 %v1534, %v1550
    %v1552 = vsub.f32 1.0, %v1551
    %v1553 = vmul.f32 %v1550, %v1552
    %v1554 = vadd.f32 %v1550, %v1553
    %vm1555 = vweird.f32 %v1534
    %vm1556 = vweird.f32 %v1550
    %vm1557 = vmor %vm1555, %vm1556
    %v1558 = vsel %vm1557, %v1550, %v1554
    %v1559 = vand.u32 2147483647, %v1534
    %vm1560 = vcmp.eq.f32.partialorder %v1559, 8.507059e+37
    %v1561 = vand.u32 %v1534, 2147483648
    %v1562 = vor.u32 1.1754944e-38, %v1561
    %v1563 = vsel %vm1560, %v1562, %v1558
    %v1564 = vmul.f32 %v1528, %v1563
    %v1565 = vpack.c.bf16 %v1549, %v1549
    %v1566 = vpack.c.bf16 %v1564, %v1564
    %v1567 = vpack.c.bf16 %v1481, %v1481
    %v1568 = vpack.c.bf16 %v1483, %v1483
    %v1570 = vsel %vm356, %v1565, 0
    %v1573 = vsel %vm412, %v1567, 0
    %1575 = vmatpush.bf16.msra.mxu0 0
    %1576 = vmatpush.bf16.msra.mxu0 0
    %1577 = vmatpush.bf16.msra.mxu0 0
    %1578 = vmatpush.bf16.msra.mxu0 0
    %1579 = vmatpush.bf16.msra.mxu0 0
    %1580 = vmatpush.bf16.msra.mxu0 0
    %1581 = vmatpush.bf16.msra.mxu0 0
    %1582 = vmatpush.bf16.msra.mxu0 %v1573
    %1583 = vmatmul.bf16.gmra.mxu0 %v1570
    %v1584 = vpop.f32.mrf.mxu0
    %v1585 = vadd.f32 0.0, %v1584
    %v1586 = vpop.f32.mrf.mxu0
    %1587 = vdwg.mxu0
    %v1589 = vsel %vm356, %v1566, 0
    %v1592 = vsel %vm412, %v1568, 0
    %1594 = vmatpush.bf16.msra.mxu0 0
    %1595 = vmatpush.bf16.msra.mxu0 0
    %1596 = vmatpush.bf16.msra.mxu0 0
    %1597 = vmatpush.bf16.msra.mxu0 0
    %1598 = vmatpush.bf16.msra.mxu0 0
    %1599 = vmatpush.bf16.msra.mxu0 0
    %1600 = vmatpush.bf16.msra.mxu0 0
    %1601 = vmatpush.bf16.msra.mxu0 %v1592
    %1602 = vmatmul.bf16.gmra.mxu0 %v1589
    %v1603 = vpop.f32.mrf.mxu0
    %v1604 = vadd.f32 0.0, %v1603
    %v1605 = vpop.f32.mrf.mxu0
    %1606 = vdwg.mxu0
    %v1607 = vadd.f32 %v1279, %v1585
    %v1608 = vadd.f32 %v1280, %v1604
    %1609 = vadd.xlane.f32.xlu0 %v1607
    %v1610 = vpop.xlane.xlu0 %1609
    %1611 = vadd.xlane.f32.xlu0 %v1608
    %v1612 = vpop.xlane.xlu0 %1611
    %v1613 = vmul.f32 %v1610, %v460
    %v1614 = vmul.f32 %v1612, %v460
    %v1615 = vsub.f32 %v1607, %v1613
    %v1616 = vsub.f32 %v1608, %v1614
    %v1617 = vmul.f32 %v1615, %v1615
    %v1618 = vmul.f32 %v1616, %v1616
    %1619 = vadd.xlane.f32.xlu0 %v1617
    %v1620 = vpop.xlane.xlu0 %1619
    %1621 = vadd.xlane.f32.xlu0 %v1618
    %v1622 = vpop.xlane.xlu0 %1621
    %v1623 = vmul.f32 %v1620, %v460
    %v1624 = vmul.f32 %v1622, %v460
    %v1625 = vadd.f32 %v1623, 1e-05
    %v1626 = vadd.f32 %v1624, 1e-05
    %v1627 = vrsqrt.pop %v1625
    %v1628 = vmul.f32 %v1627, %v1625
    %v1629 = vmul.f32 %v1628, %v1627
    %v1630 = vmul.f32 0.5, %v1629
    %v1631 = vsub.f32 1.5, %v1630
    %v1632 = vmul.f32 %v1627, %v1631
    %vm1633 = vweird.f32 %v1625
    %vm1634 = vweird.f32 %v1627
    %vm1635 = vmor %vm1633, %vm1634
    %v1636 = vsel %vm1635, %v1627, %v1632
    %v1637 = vrsqrt.pop %v1626
    %v1638 = vmul.f32 %v1637, %v1626
    %v1639 = vmul.f32 %v1638, %v1637
    %v1640 = vmul.f32 0.5, %v1639
    %v1641 = vsub.f32 1.5, %v1640
    %v1642 = vmul.f32 %v1637, %v1641
    %vm1643 = vweird.f32 %v1626
    %vm1644 = vweird.f32 %v1637
    %vm1645 = vmor %vm1643, %vm1644
    %v1646 = vsel %vm1645, %v1637, %v1642
    %v1647 = vmul.f32 %v1615, %v1636
    %v1648 = vmul.f32 %v1616, %v1646
    %s1649 = scalar_lea.vmem %s3, 4
    %v1650 = vld [vmem:[%s1649] sm:$0x1]
    %v1651 = vperm.slane %v1650, 0
    %v1652 = vmul.f32 %v1647, %v1651
    %v1653 = vmul.f32 %v1648, %v1651
    %s1654 = scalar_lea.vmem %s4, 4
    %v1655 = vld [vmem:[%s1654] sm:$0x1]
    %v1656 = vperm.slane %v1655, 0
    %v1657 = vadd.f32 %v1652, %v1656
    %v1658 = vadd.f32 %v1653, %v1656
    %s1659 = scalar_lea.vmem [#allocation5], 768
    %v1660 = vld [vmem:[%s1659] sm:$0xff]
    %v1661 = vld [vmem:[%s1659 + $0x8] sm:$0xf]
    %v1662 = vld [vmem:[%s1659 + $0xc] sm:$0xff]
    %v1663 = vld [vmem:[%s1659 + $0x14] sm:$0xf]
    %v1664 = vld [vmem:[%s1659 + $0x18] sm:$0xff]
    %v1665 = vld [vmem:[%s1659 + $0x20] sm:$0xf]
    %v1666 = vld [vmem:[%s1659 + $0x24] sm:$0xff]
    %v1667 = vld [vmem:[%s1659 + $0x2c] sm:$0xf]
    %v1668 = vld [vmem:[%s1659 + $0x30] sm:$0xff]
    %v1669 = vld [vmem:[%s1659 + $0x38] sm:$0xf]
    %v1670 = vld [vmem:[%s1659 + $0x3c] sm:$0xff]
    %v1671 = vld [vmem:[%s1659 + $0x44] sm:$0xf]
    %v1672 = vld [vmem:[%s1659 + $0x48] sm:$0xff]
    %v1673 = vld [vmem:[%s1659 + $0x50] sm:$0xf]
    %v1674 = vld [vmem:[%s1659 + $0x54] sm:$0xff]
    %v1675 = vld [vmem:[%s1659 + $0x5c] sm:$0xf]
    %v1676 = vld [vmem:[%s1659 + $0x60] sm:$0xff]
    %v1677 = vld [vmem:[%s1659 + $0x68] sm:$0xf]
    %v1678 = vld [vmem:[%s1659 + $0x6c] sm:$0xff]
    %v1679 = vld [vmem:[%s1659 + $0x74] sm:$0xf]
    %v1680 = vld [vmem:[%s1659 + $0x78] sm:$0xff]
    %v1681 = vld [vmem:[%s1659 + $0x80] sm:$0xf]
    %v1682 = vld [vmem:[%s1659 + $0x84] sm:$0xff]
    %v1683 = vld [vmem:[%s1659 + $0x8c] sm:$0xf]
    %v1684 = vld [vmem:[%s1659 + $0x90] sm:$0xff]
    %v1685 = vld [vmem:[%s1659 + $0x98] sm:$0xf]
    %v1686 = vld [vmem:[%s1659 + $0x9c] sm:$0xff]
    %v1687 = vld [vmem:[%s1659 + $0xa4] sm:$0xf]
    %v1688 = vld [vmem:[%s1659 + $0xa8] sm:$0xff]
    %v1689 = vld [vmem:[%s1659 + $0xb0] sm:$0xf]
    %v1690 = vld [vmem:[%s1659 + $0xb4] sm:$0xff]
    %v1691 = vld [vmem:[%s1659 + $0xbc] sm:$0xf]
    %v1692 = vpack.c.bf16 %v1658, %v1657
    %v1725 = vunpack.c.l.b16 %v1660
    %v1726 = vunpack.c.h.b16 %v1660
    %v1727 = vunpack.c.l.b16 %v1661
    %v1728 = vunpack.c.l.b16 %v1662
    %v1729 = vunpack.c.h.b16 %v1662
    %v1730 = vunpack.c.l.b16 %v1663
    %v1731 = vunpack.c.l.b16 %v1664
    %v1732 = vunpack.c.h.b16 %v1664
    %v1733 = vunpack.c.l.b16 %v1665
    %v1734 = vunpack.c.l.b16 %v1666
    %v1735 = vunpack.c.h.b16 %v1666
    %v1736 = vunpack.c.l.b16 %v1667
    %v1737 = vunpack.c.l.b16 %v1668
    %v1738 = vunpack.c.h.b16 %v1668
    %v1739 = vunpack.c.l.b16 %v1669
    %v1740 = vunpack.c.l.b16 %v1670
    %v1741 = vunpack.c.h.b16 %v1670
    %v1742 = vunpack.c.l.b16 %v1671
    %v1743 = vunpack.c.l.b16 %v1672
    %v1744 = vunpack.c.h.b16 %v1672
    %v1745 = vunpack.c.l.b16 %v1673
    %v1746 = vunpack.c.l.b16 %v1674
    %v1747 = vunpack.c.h.b16 %v1674
    %v1748 = vunpack.c.l.b16 %v1675
    %v1749 = vunpack.c.l.b16 %v1676
    %v1750 = vunpack.c.h.b16 %v1676
    %v1751 = vunpack.c.l.b16 %v1677
    %v1752 = vunpack.c.l.b16 %v1678
    %v1753 = vunpack.c.h.b16 %v1678
    %v1754 = vunpack.c.l.b16 %v1679
    %v1755 = vunpack.c.l.b16 %v1680
    %v1756 = vunpack.c.h.b16 %v1680
    %v1757 = vunpack.c.l.b16 %v1681
    %v1758 = vunpack.c.l.b16 %v1682
    %v1759 = vunpack.c.h.b16 %v1682
    %v1760 = vunpack.c.l.b16 %v1683
    %v1761 = vunpack.c.l.b16 %v1684
    %v1762 = vunpack.c.h.b16 %v1684
    %v1763 = vunpack.c.l.b16 %v1685
    %v1764 = vunpack.c.l.b16 %v1686
    %v1765 = vunpack.c.h.b16 %v1686
    %v1766 = vunpack.c.l.b16 %v1687
    %v1767 = vunpack.c.l.b16 %v1688
    %v1768 = vunpack.c.h.b16 %v1688
    %v1769 = vunpack.c.l.b16 %v1689
    %v1770 = vunpack.c.l.b16 %v1690
    %v1771 = vunpack.c.h.b16 %v1690
    %v1772 = vunpack.c.l.b16 %v1691
    %v1773 = vpack.c.b16 %v1728, %v1725
    %v1774 = vpack.c.b16 %v1729, %v1726
    %v1775 = vpack.c.b16 %v1730, %v1727
    %v1776 = vpack.c.b16 %v1734, %v1731
    %v1777 = vpack.c.b16 %v1735, %v1732
    %v1778 = vpack.c.b16 %v1736, %v1733
    %v1779 = vpack.c.b16 %v1740, %v1737
    %v1780 = vpack.c.b16 %v1741, %v1738
    %v1781 = vpack.c.b16 %v1742, %v1739
    %v1782 = vpack.c.b16 %v1746, %v1743
    %v1783 = vpack.c.b16 %v1747, %v1744
    %v1784 = vpack.c.b16 %v1748, %v1745
    %v1785 = vpack.c.b16 %v1752, %v1749
    %v1786 = vpack.c.b16 %v1753, %v1750
    %v1787 = vpack.c.b16 %v1754, %v1751
    %v1788 = vpack.c.b16 %v1758, %v1755
    %v1789 = vpack.c.b16 %v1759, %v1756
    %v1790 = vpack.c.b16 %v1760, %v1757
    %v1791 = vpack.c.b16 %v1764, %v1761
    %v1792 = vpack.c.b16 %v1765, %v1762
    %v1793 = vpack.c.b16 %v1766, %v1763
    %v1794 = vpack.c.b16 %v1770, %v1767
    %v1795 = vpack.c.b16 %v1771, %v1768
    %v1796 = vpack.c.b16 %v1772, %v1769
    %1821 = vmatpush.bf16.msra.mxu0 %v1794
    %1822 = vmatpush.bf16.msra.mxu0 %v1791
    %1823 = vmatpush.bf16.msra.mxu0 %v1788
    %1824 = vmatpush.bf16.msra.mxu0 %v1785
    %1825 = vmatpush.bf16.msra.mxu0 %v1782
    %1826 = vmatpush.bf16.msra.mxu0 %v1779
    %1827 = vmatpush.bf16.msra.mxu0 %v1776
    %1828 = vmatpush.bf16.msra.mxu0 %v1773
    %1829 = vmatmul.bf16.gmra.mxu0 %v1692
    %v1830 = vpop.f32.mrf.mxu0
    %v1831 = vadd.f32 0.0, %v1830
    %v1832 = vpop.f32.mrf.mxu0
    %v1833 = vadd.f32 0.0, %v1832
    %1834 = vdwg.mxu0
    %1835 = vmatpush.bf16.msra.mxu0 %v1795
    %1836 = vmatpush.bf16.msra.mxu0 %v1792
    %1837 = vmatpush.bf16.msra.mxu0 %v1789
    %1838 = vmatpush.bf16.msra.mxu0 %v1786
    %1839 = vmatpush.bf16.msra.mxu0 %v1783
    %1840 = vmatpush.bf16.msra.mxu0 %v1780
    %1841 = vmatpush.bf16.msra.mxu0 %v1777
    %1842 = vmatpush.bf16.msra.mxu0 %v1774
    %1843 = vmatmul.bf16.gmra.mxu0 %v1692
    %v1844 = vpop.f32.mrf.mxu0
    %v1845 = vadd.f32 0.0, %v1844
    %v1846 = vpop.f32.mrf.mxu0
    %v1847 = vadd.f32 0.0, %v1846
    %1848 = vdwg.mxu0
    %1849 = vmatpush.bf16.msra.mxu0 %v1796
    %1850 = vmatpush.bf16.msra.mxu0 %v1793
    %1851 = vmatpush.bf16.msra.mxu0 %v1790
    %1852 = vmatpush.bf16.msra.mxu0 %v1787
    %1853 = vmatpush.bf16.msra.mxu0 %v1784
    %1854 = vmatpush.bf16.msra.mxu0 %v1781
    %1855 = vmatpush.bf16.msra.mxu0 %v1778
    %1856 = vmatpush.bf16.msra.mxu0 %v1775
    %1857 = vmatmul.bf16.gmra.mxu0 %v1692
    %v1858 = vpop.f32.mrf.mxu0
    %v1859 = vadd.f32 0.0, %v1858
    %v1860 = vpop.f32.mrf.mxu0
    %v1861 = vadd.f32 0.0, %v1860
    %1862 = vdwg.mxu0
    %v1863 = vpack.c.bf16 %v1831, %v1831
    %v1864 = vpack.c.bf16 %v1833, %v1833
    %v1865 = vpack.c.bf16 %v1845, %v1845
    %v1866 = vpack.c.bf16 %v1847, %v1847
    %1867 = vmatpush.bf16.xpose.msra.mxu0 0
    %1868 = vmatpush.bf16.xpose.msra.mxu0 0
    %1869 = vmatpush.bf16.xpose.msra.mxu0 0
    %1870 = vmatpush.bf16.xpose.msra.mxu0 0
    %1871 = vmatpush.bf16.xpose.msra.mxu0 0
    %1872 = vmatpush.bf16.xpose.msra.mxu0 0
    %1873 = vmatpush.bf16.xpose.msra.mxu0 0
    %1874 = vmatpush.bf16.xpose.msra.mxu0 %v1865
    %1875 = vmatmul.bf16.gmra.mxu0 %v1863
    %v1876 = vpop.f32.mrf.mxu0
    %v1877 = vadd.f32 0.0, %v1876
    %v1878 = vpop.f32.mrf.mxu0
    %1879 = vdwg.mxu0
    %1880 = vmatpush.bf16.xpose.msra.mxu0 0
    %1881 = vmatpush.bf16.xpose.msra.mxu0 0
    %1882 = vmatpush.bf16.xpose.msra.mxu0 0
    %1883 = vmatpush.bf16.xpose.msra.mxu0 0
    %1884 = vmatpush.bf16.xpose.msra.mxu0 0
    %1885 = vmatpush.bf16.xpose.msra.mxu0 0
    %1886 = vmatpush.bf16.xpose.msra.mxu0 0
    %1887 = vmatpush.bf16.xpose.msra.mxu0 %v1866
    %1888 = vmatmul.bf16.gmra.mxu0 %v1864
    %v1889 = vpop.f32.mrf.mxu0
    %v1890 = vadd.f32 0.0, %v1889
    %v1891 = vpop.f32.mrf.mxu0
    %1892 = vdwg.mxu0
    %v1893 = vsel %vm117, %v1877, -1e+20
    %v1894 = vsel %vm118, %v1890, -1e+20
    %v1895 = vsel %vm356, %v1893, -inf
    %1896 = vmax.xlane.f32.xlu0 %v1895
    %v1897 = vpop.xlane.xlu0 %1896
    %v1898 = vsel %vm356, %v1894, -inf
    %1899 = vmax.xlane.f32.xlu0 %v1898
    %v1900 = vpop.xlane.xlu0 %1899
    %v1901 = vsub.f32 %v1893, %v1897
    %v1902 = vsub.f32 %v1894, %v1900
    %v1903 = vmul.f32 %v1901, 1.442695
    %v1904 = vpow.pop %v1903
    %v1905 = vmul.f32 %v1902, 1.442695
    %v1906 = vpow.pop %v1905
    %v1907 = vsel %vm356, %v1904, 0.0
    %1908 = vadd.xlane.f32.xlu0 %v1907
    %v1909 = vpop.xlane.xlu0 %1908
    %v1910 = vsel %vm356, %v1906, 0.0
    %1911 = vadd.xlane.f32.xlu0 %v1910
    %v1912 = vpop.xlane.xlu0 %1911
    %v1913 = vrcp.pop %v1909
    %v1914 = vmul.f32 %v1909, %v1913
    %v1915 = vsub.f32 1.0, %v1914
    %v1916 = vmul.f32 %v1913, %v1915
    %v1917 = vadd.f32 %v1913, %v1916
    %vm1918 = vweird.f32 %v1909
    %vm1919 = vweird.f32 %v1913
    %vm1920 = vmor %vm1918, %vm1919
    %v1921 = vsel %vm1920, %v1913, %v1917
    %v1922 = vand.u32 2147483647, %v1909
    %vm1923 = vcmp.eq.f32.partialorder %v1922, 8.507059e+37
    %v1924 = vand.u32 %v1909, 2147483648
    %v1925 = vor.u32 1.1754944e-38, %v1924
    %v1926 = vsel %vm1923, %v1925, %v1921
    %v1927 = vmul.f32 %v1904, %v1926
    %v1928 = vrcp.pop %v1912
    %v1929 = vmul.f32 %v1912, %v1928
    %v1930 = vsub.f32 1.0, %v1929
    %v1931 = vmul.f32 %v1928, %v1930
    %v1932 = vadd.f32 %v1928, %v1931
    %vm1933 = vweird.f32 %v1912
    %vm1934 = vweird.f32 %v1928
    %vm1935 = vmor %vm1933, %vm1934
    %v1936 = vsel %vm1935, %v1928, %v1932
    %v1937 = vand.u32 2147483647, %v1912
    %vm1938 = vcmp.eq.f32.partialorder %v1937, 8.507059e+37
    %v1939 = vand.u32 %v1912, 2147483648
    %v1940 = vor.u32 1.1754944e-38, %v1939
    %v1941 = vsel %vm1938, %v1940, %v1936
    %v1942 = vmul.f32 %v1906, %v1941
    %v1943 = vpack.c.bf16 %v1927, %v1927
    %v1944 = vpack.c.bf16 %v1942, %v1942
    %v1945 = vpack.c.bf16 %v1859, %v1859
    %v1946 = vpack.c.bf16 %v1861, %v1861
    %v1948 = vsel %vm356, %v1943, 0
    %v1951 = vsel %vm412, %v1945, 0
    %1953 = vmatpush.bf16.msra.mxu0 0
    %1954 = vmatpush.bf16.msra.mxu0 0
    %1955 = vmatpush.bf16.msra.mxu0 0
    %1956 = vmatpush.bf16.msra.mxu0 0
    %1957 = vmatpush.bf16.msra.mxu0 0
    %1958 = vmatpush.bf16.msra.mxu0 0
    %1959 = vmatpush.bf16.msra.mxu0 0
    %1960 = vmatpush.bf16.msra.mxu0 %v1951
    %1961 = vmatmul.bf16.gmra.mxu0 %v1948
    %v1962 = vpop.f32.mrf.mxu0
    %v1963 = vadd.f32 0.0, %v1962
    %v1964 = vpop.f32.mrf.mxu0
    %1965 = vdwg.mxu0
    %v1967 = vsel %vm356, %v1944, 0
    %v1970 = vsel %vm412, %v1946, 0
    %1972 = vmatpush.bf16.msra.mxu0 0
    %1973 = vmatpush.bf16.msra.mxu0 0
    %1974 = vmatpush.bf16.msra.mxu0 0
    %1975 = vmatpush.bf16.msra.mxu0 0
    %1976 = vmatpush.bf16.msra.mxu0 0
    %1977 = vmatpush.bf16.msra.mxu0 0
    %1978 = vmatpush.bf16.msra.mxu0 0
    %1979 = vmatpush.bf16.msra.mxu0 %v1970
    %1980 = vmatmul.bf16.gmra.mxu0 %v1967
    %v1981 = vpop.f32.mrf.mxu0
    %v1982 = vadd.f32 0.0, %v1981
    %v1983 = vpop.f32.mrf.mxu0
    %1984 = vdwg.mxu0
    %v1985 = vadd.f32 %v1657, %v1963
    %v1986 = vadd.f32 %v1658, %v1982
    %1987 = vadd.xlane.f32.xlu0 %v1985
    %v1988 = vpop.xlane.xlu0 %1987
    %1989 = vadd.xlane.f32.xlu0 %v1986
    %v1990 = vpop.xlane.xlu0 %1989
    %v1991 = vmul.f32 %v1988, %v460
    %v1992 = vmul.f32 %v1990, %v460
    %v1993 = vsub.f32 %v1985, %v1991
    %v1994 = vsub.f32 %v1986, %v1992
    %v1995 = vmul.f32 %v1993, %v1993
    %v1996 = vmul.f32 %v1994, %v1994
    %1997 = vadd.xlane.f32.xlu0 %v1995
    %v1998 = vpop.xlane.xlu0 %1997
    %1999 = vadd.xlane.f32.xlu0 %v1996
    %v2000 = vpop.xlane.xlu0 %1999
    %v2001 = vmul.f32 %v1998, %v460
    %v2002 = vmul.f32 %v2000, %v460
    %v2003 = vadd.f32 %v2001, 1e-05
    %v2004 = vadd.f32 %v2002, 1e-05
    %v2005 = vrsqrt.pop %v2003
    %v2006 = vmul.f32 %v2005, %v2003
    %v2007 = vmul.f32 %v2006, %v2005
    %v2008 = vmul.f32 0.5, %v2007
    %v2009 = vsub.f32 1.5, %v2008
    %v2010 = vmul.f32 %v2005, %v2009
    %vm2011 = vweird.f32 %v2003
    %vm2012 = vweird.f32 %v2005
    %vm2013 = vmor %vm2011, %vm2012
    %v2014 = vsel %vm2013, %v2005, %v2010
    %v2015 = vrsqrt.pop %v2004
    %v2016 = vmul.f32 %v2015, %v2004
    %v2017 = vmul.f32 %v2016, %v2015
    %v2018 = vmul.f32 0.5, %v2017
    %v2019 = vsub.f32 1.5, %v2018
    %v2020 = vmul.f32 %v2015, %v2019
    %vm2021 = vweird.f32 %v2004
    %vm2022 = vweird.f32 %v2015
    %vm2023 = vmor %vm2021, %vm2022
    %v2024 = vsel %vm2023, %v2015, %v2020
    %v2025 = vmul.f32 %v1993, %v2014
    %v2026 = vmul.f32 %v1994, %v2024
    %v2027 = vld [vmem:[%s1649 + $0x1] sm:$0x1]
    %v2028 = vperm.slane %v2027, 0
    %v2029 = vmul.f32 %v2025, %v2028
    %v2030 = vmul.f32 %v2026, %v2028
    %v2031 = vld [vmem:[%s1654 + $0x1] sm:$0x1]
    %v2032 = vperm.slane %v2031, 0
    %v2033 = vadd.f32 %v2029, %v2032
    %v2034 = vadd.f32 %v2030, %v2032
    %s2035 = scalar_lea.vmem [#allocation5], 960
    %v2036 = vld [vmem:[%s2035] sm:$0xff]
    %v2037 = vld [vmem:[%s2035 + $0x8] sm:$0xf]
    %v2038 = vld [vmem:[%s2035 + $0xc] sm:$0xff]
    %v2039 = vld [vmem:[%s2035 + $0x14] sm:$0xf]
    %v2040 = vld [vmem:[%s2035 + $0x18] sm:$0xff]
    %v2041 = vld [vmem:[%s2035 + $0x20] sm:$0xf]
    %v2042 = vld [vmem:[%s2035 + $0x24] sm:$0xff]
    %v2043 = vld [vmem:[%s2035 + $0x2c] sm:$0xf]
    %v2044 = vld [vmem:[%s2035 + $0x30] sm:$0xff]
    %v2045 = vld [vmem:[%s2035 + $0x38] sm:$0xf]
    %v2046 = vld [vmem:[%s2035 + $0x3c] sm:$0xff]
    %v2047 = vld [vmem:[%s2035 + $0x44] sm:$0xf]
    %v2048 = vld [vmem:[%s2035 + $0x48] sm:$0xff]
    %v2049 = vld [vmem:[%s2035 + $0x50] sm:$0xf]
    %v2050 = vld [vmem:[%s2035 + $0x54] sm:$0xff]
    %v2051 = vld [vmem:[%s2035 + $0x5c] sm:$0xf]
    %v2052 = vld [vmem:[%s2035 + $0x60] sm:$0xff]
    %v2053 = vld [vmem:[%s2035 + $0x68] sm:$0xf]
    %v2054 = vld [vmem:[%s2035 + $0x6c] sm:$0xff]
    %v2055 = vld [vmem:[%s2035 + $0x74] sm:$0xf]
    %v2056 = vld [vmem:[%s2035 + $0x78] sm:$0xff]
    %v2057 = vld [vmem:[%s2035 + $0x80] sm:$0xf]
    %v2058 = vld [vmem:[%s2035 + $0x84] sm:$0xff]
    %v2059 = vld [vmem:[%s2035 + $0x8c] sm:$0xf]
    %v2060 = vld [vmem:[%s2035 + $0x90] sm:$0xff]
    %v2061 = vld [vmem:[%s2035 + $0x98] sm:$0xf]
    %v2062 = vld [vmem:[%s2035 + $0x9c] sm:$0xff]
    %v2063 = vld [vmem:[%s2035 + $0xa4] sm:$0xf]
    %v2064 = vld [vmem:[%s2035 + $0xa8] sm:$0xff]
    %v2065 = vld [vmem:[%s2035 + $0xb0] sm:$0xf]
    %v2066 = vld [vmem:[%s2035 + $0xb4] sm:$0xff]
    %v2067 = vld [vmem:[%s2035 + $0xbc] sm:$0xf]
    %v2068 = vpack.c.bf16 %v2034, %v2033
    %v2101 = vunpack.c.l.b16 %v2036
    %v2102 = vunpack.c.h.b16 %v2036
    %v2103 = vunpack.c.l.b16 %v2037
    %v2104 = vunpack.c.l.b16 %v2038
    %v2105 = vunpack.c.h.b16 %v2038
    %v2106 = vunpack.c.l.b16 %v2039
    %v2107 = vunpack.c.l.b16 %v2040
    %v2108 = vunpack.c.h.b16 %v2040
    %v2109 = vunpack.c.l.b16 %v2041
    %v2110 = vunpack.c.l.b16 %v2042
    %v2111 = vunpack.c.h.b16 %v2042
    %v2112 = vunpack.c.l.b16 %v2043
    %v2113 = vunpack.c.l.b16 %v2044
    %v2114 = vunpack.c.h.b16 %v2044
    %v2115 = vunpack.c.l.b16 %v2045
    %v2116 = vunpack.c.l.b16 %v2046
    %v2117 = vunpack.c.h.b16 %v2046
    %v2118 = vunpack.c.l.b16 %v2047
    %v2119 = vunpack.c.l.b16 %v2048
    %v2120 = vunpack.c.h.b16 %v2048
    %v2121 = vunpack.c.l.b16 %v2049
    %v2122 = vunpack.c.l.b16 %v2050
    %v2123 = vunpack.c.h.b16 %v2050
    %v2124 = vunpack.c.l.b16 %v2051
    %v2125 = vunpack.c.l.b16 %v2052
    %v2126 = vunpack.c.h.b16 %v2052
    %v2127 = vunpack.c.l.b16 %v2053
    %v2128 = vunpack.c.l.b16 %v2054
    %v2129 = vunpack.c.h.b16 %v2054
    %v2130 = vunpack.c.l.b16 %v2055
    %v2131 = vunpack.c.l.b16 %v2056
    %v2132 = vunpack.c.h.b16 %v2056
    %v2133 = vunpack.c.l.b16 %v2057
    %v2134 = vunpack.c.l.b16 %v2058
    %v2135 = vunpack.c.h.b16 %v2058
    %v2136 = vunpack.c.l.b16 %v2059
    %v2137 = vunpack.c.l.b16 %v2060
    %v2138 = vunpack.c.h.b16 %v2060
    %v2139 = vunpack.c.l.b16 %v2061
    %v2140 = vunpack.c.l.b16 %v2062
    %v2141 = vunpack.c.h.b16 %v2062
    %v2142 = vunpack.c.l.b16 %v2063
    %v2143 = vunpack.c.l.b16 %v2064
    %v2144 = vunpack.c.h.b16 %v2064
    %v2145 = vunpack.c.l.b16 %v2065
    %v2146 = vunpack.c.l.b16 %v2066
    %v2147 = vunpack.c.h.b16 %v2066
    %v2148 = vunpack.c.l.b16 %v2067
    %v2149 = vpack.c.b16 %v2104, %v2101
    %v2150 = vpack.c.b16 %v2105, %v2102
    %v2151 = vpack.c.b16 %v2106, %v2103
    %v2152 = vpack.c.b16 %v2110, %v2107
    %v2153 = vpack.c.b16 %v2111, %v2108
    %v2154 = vpack.c.b16 %v2112, %v2109
    %v2155 = vpack.c.b16 %v2116, %v2113
    %v2156 = vpack.c.b16 %v2117, %v2114
    %v2157 = vpack.c.b16 %v2118, %v2115
    %v2158 = vpack.c.b16 %v2122, %v2119
    %v2159 = vpack.c.b16 %v2123, %v2120
    %v2160 = vpack.c.b16 %v2124, %v2121
    %v2161 = vpack.c.b16 %v2128, %v2125
    %v2162 = vpack.c.b16 %v2129, %v2126
    %v2163 = vpack.c.b16 %v2130, %v2127
    %v2164 = vpack.c.b16 %v2134, %v2131
    %v2165 = vpack.c.b16 %v2135, %v2132
    %v2166 = vpack.c.b16 %v2136, %v2133
    %v2167 = vpack.c.b16 %v2140, %v2137
    %v2168 = vpack.c.b16 %v2141, %v2138
    %v2169 = vpack.c.b16 %v2142, %v2139
    %v2170 = vpack.c.b16 %v2146, %v2143
    %v2171 = vpack.c.b16 %v2147, %v2144
    %v2172 = vpack.c.b16 %v2148, %v2145
    %2197 = vmatpush.bf16.msra.mxu0 %v2170
    %2198 = vmatpush.bf16.msra.mxu0 %v2167
    %2199 = vmatpush.bf16.msra.mxu0 %v2164
    %2200 = vmatpush.bf16.msra.mxu0 %v2161
    %2201 = vmatpush.bf16.msra.mxu0 %v2158
    %2202 = vmatpush.bf16.msra.mxu0 %v2155
    %2203 = vmatpush.bf16.msra.mxu0 %v2152
    %2204 = vmatpush.bf16.msra.mxu0 %v2149
    %2205 = vmatmul.bf16.gmra.mxu0 %v2068
    %v2206 = vpop.f32.mrf.mxu0
    %v2207 = vadd.f32 0.0, %v2206
    %v2208 = vpop.f32.mrf.mxu0
    %v2209 = vadd.f32 0.0, %v2208
    %2210 = vdwg.mxu0
    %2211 = vmatpush.bf16.msra.mxu0 %v2171
    %2212 = vmatpush.bf16.msra.mxu0 %v2168
    %2213 = vmatpush.bf16.msra.mxu0 %v2165
    %2214 = vmatpush.bf16.msra.mxu0 %v2162
    %2215 = vmatpush.bf16.msra.mxu0 %v2159
    %2216 = vmatpush.bf16.msra.mxu0 %v2156
    %2217 = vmatpush.bf16.msra.mxu0 %v2153
    %2218 = vmatpush.bf16.msra.mxu0 %v2150
    %2219 = vmatmul.bf16.gmra.mxu0 %v2068
    %v2220 = vpop.f32.mrf.mxu0
    %v2221 = vadd.f32 0.0, %v2220
    %v2222 = vpop.f32.mrf.mxu0
    %v2223 = vadd.f32 0.0, %v2222
    %2224 = vdwg.mxu0
    %2225 = vmatpush.bf16.msra.mxu0 %v2172
    %2226 = vmatpush.bf16.msra.mxu0 %v2169
    %2227 = vmatpush.bf16.msra.mxu0 %v2166
    %2228 = vmatpush.bf16.msra.mxu0 %v2163
    %2229 = vmatpush.bf16.msra.mxu0 %v2160
    %2230 = vmatpush.bf16.msra.mxu0 %v2157
    %2231 = vmatpush.bf16.msra.mxu0 %v2154
    %2232 = vmatpush.bf16.msra.mxu0 %v2151
    %2233 = vmatmul.bf16.gmra.mxu0 %v2068
    %v2234 = vpop.f32.mrf.mxu0
    %v2235 = vadd.f32 0.0, %v2234
    %v2236 = vpop.f32.mrf.mxu0
    %v2237 = vadd.f32 0.0, %v2236
    %2238 = vdwg.mxu0
    %v2239 = vpack.c.bf16 %v2207, %v2207
    %v2240 = vpack.c.bf16 %v2209, %v2209
    %v2241 = vpack.c.bf16 %v2221, %v2221
    %v2242 = vpack.c.bf16 %v2223, %v2223
    %2243 = vmatpush.bf16.xpose.msra.mxu0 0
    %2244 = vmatpush.bf16.xpose.msra.mxu0 0
    %2245 = vmatpush.bf16.xpose.msra.mxu0 0
    %2246 = vmatpush.bf16.xpose.msra.mxu0 0
    %2247 = vmatpush.bf16.xpose.msra.mxu0 0
    %2248 = vmatpush.bf16.xpose.msra.mxu0 0
    %2249 = vmatpush.bf16.xpose.msra.mxu0 0
    %2250 = vmatpush.bf16.xpose.msra.mxu0 %v2241
    %2251 = vmatmul.bf16.gmra.mxu0 %v2239
    %v2252 = vpop.f32.mrf.mxu0
    %v2253 = vadd.f32 0.0, %v2252
    %v2254 = vpop.f32.mrf.mxu0
    %2255 = vdwg.mxu0
    %2256 = vmatpush.bf16.xpose.msra.mxu0 0
    %2257 = vmatpush.bf16.xpose.msra.mxu0 0
    %2258 = vmatpush.bf16.xpose.msra.mxu0 0
    %2259 = vmatpush.bf16.xpose.msra.mxu0 0
    %2260 = vmatpush.bf16.xpose.msra.mxu0 0
    %2261 = vmatpush.bf16.xpose.msra.mxu0 0
    %2262 = vmatpush.bf16.xpose.msra.mxu0 0
    %2263 = vmatpush.bf16.xpose.msra.mxu0 %v2242
    %2264 = vmatmul.bf16.gmra.mxu0 %v2240
    %v2265 = vpop.f32.mrf.mxu0
    %v2266 = vadd.f32 0.0, %v2265
    %v2267 = vpop.f32.mrf.mxu0
    %2268 = vdwg.mxu0
    %v2269 = vsel %vm117, %v2253, -1e+20
    %v2270 = vsel %vm118, %v2266, -1e+20
    %v2271 = vsel %vm356, %v2269, -inf
    %2272 = vmax.xlane.f32.xlu0 %v2271
    %v2273 = vpop.xlane.xlu0 %2272
    %v2274 = vsel %vm356, %v2270, -inf
    %2275 = vmax.xlane.f32.xlu0 %v2274
    %v2276 = vpop.xlane.xlu0 %2275
    %v2277 = vsub.f32 %v2269, %v2273
    %v2278 = vsub.f32 %v2270, %v2276
    %v2279 = vmul.f32 %v2277, 1.442695
    %v2280 = vpow.pop %v2279
    %v2281 = vmul.f32 %v2278, 1.442695
    %v2282 = vpow.pop %v2281
    %v2283 = vsel %vm356, %v2280, 0.0
    %2284 = vadd.xlane.f32.xlu0 %v2283
    %v2285 = vpop.xlane.xlu0 %2284
    %v2286 = vsel %vm356, %v2282, 0.0
    %2287 = vadd.xlane.f32.xlu0 %v2286
    %v2288 = vpop.xlane.xlu0 %2287
    %v2289 = vrcp.pop %v2285
    %v2290 = vmul.f32 %v2285, %v2289
    %v2291 = vsub.f32 1.0, %v2290
    %v2292 = vmul.f32 %v2289, %v2291
    %v2293 = vadd.f32 %v2289, %v2292
    %vm2294 = vweird.f32 %v2285
    %vm2295 = vweird.f32 %v2289
    %vm2296 = vmor %vm2294, %vm2295
    %v2297 = vsel %vm2296, %v2289, %v2293
    %v2298 = vand.u32 2147483647, %v2285
    %vm2299 = vcmp.eq.f32.partialorder %v2298, 8.507059e+37
    %v2300 = vand.u32 %v2285, 2147483648
    %v2301 = vor.u32 1.1754944e-38, %v2300
    %v2302 = vsel %vm2299, %v2301, %v2297
    %v2303 = vmul.f32 %v2280, %v2302
    %v2304 = vrcp.pop %v2288
    %v2305 = vmul.f32 %v2288, %v2304
    %v2306 = vsub.f32 1.0, %v2305
    %v2307 = vmul.f32 %v2304, %v2306
    %v2308 = vadd.f32 %v2304, %v2307
    %vm2309 = vweird.f32 %v2288
    %vm2310 = vweird.f32 %v2304
    %vm2311 = vmor %vm2309, %vm2310
    %v2312 = vsel %vm2311, %v2304, %v2308
    %v2313 = vand.u32 2147483647, %v2288
    %vm2314 = vcmp.eq.f32.partialorder %v2313, 8.507059e+37
    %v2315 = vand.u32 %v2288, 2147483648
    %v2316 = vor.u32 1.1754944e-38, %v2315
    %v2317 = vsel %vm2314, %v2316, %v2312
    %v2318 = vmul.f32 %v2282, %v2317
    %v2319 = vpack.c.bf16 %v2303, %v2303
    %v2320 = vpack.c.bf16 %v2318, %v2318
    %v2321 = vpack.c.bf16 %v2235, %v2235
    %v2322 = vpack.c.bf16 %v2237, %v2237
    %v2324 = vsel %vm356, %v2319, 0
    %v2327 = vsel %vm412, %v2321, 0
    %2329 = vmatpush.bf16.msra.mxu0 0
    %2330 = vmatpush.bf16.msra.mxu0 0
    %2331 = vmatpush.bf16.msra.mxu0 0
    %2332 = vmatpush.bf16.msra.mxu0 0
    %2333 = vmatpush.bf16.msra.mxu0 0
    %2334 = vmatpush.bf16.msra.mxu0 0
    %2335 = vmatpush.bf16.msra.mxu0 0
    %2336 = vmatpush.bf16.msra.mxu0 %v2327
    %2337 = vmatmul.bf16.gmra.mxu0 %v2324
    %v2338 = vpop.f32.mrf.mxu0
    %v2339 = vadd.f32 0.0, %v2338
    %v2340 = vpop.f32.mrf.mxu0
    %2341 = vdwg.mxu0
    %v2343 = vsel %vm356, %v2320, 0
    %v2346 = vsel %vm412, %v2322, 0
    %2348 = vmatpush.bf16.msra.mxu0 0
    %2349 = vmatpush.bf16.msra.mxu0 0
    %2350 = vmatpush.bf16.msra.mxu0 0
    %2351 = vmatpush.bf16.msra.mxu0 0
    %2352 = vmatpush.bf16.msra.mxu0 0
    %2353 = vmatpush.bf16.msra.mxu0 0
    %2354 = vmatpush.bf16.msra.mxu0 0
    %2355 = vmatpush.bf16.msra.mxu0 %v2346
    %2356 = vmatmul.bf16.gmra.mxu0 %v2343
    %v2357 = vpop.f32.mrf.mxu0
    %v2358 = vadd.f32 0.0, %v2357
    %v2359 = vpop.f32.mrf.mxu0
    %2360 = vdwg.mxu0
    %v2361 = vadd.f32 %v2033, %v2339
    %v2362 = vadd.f32 %v2034, %v2358
    %2363 = vadd.xlane.f32.xlu0 %v2361
    %v2364 = vpop.xlane.xlu0 %2363
    %2365 = vadd.xlane.f32.xlu0 %v2362
    %v2366 = vpop.xlane.xlu0 %2365
    %v2367 = vmul.f32 %v2364, %v460
    %v2368 = vmul.f32 %v2366, %v460
    %v2369 = vsub.f32 %v2361, %v2367
    %v2370 = vsub.f32 %v2362, %v2368
    %v2371 = vmul.f32 %v2369, %v2369
    %v2372 = vmul.f32 %v2370, %v2370
    %2373 = vadd.xlane.f32.xlu0 %v2371
    %v2374 = vpop.xlane.xlu0 %2373
    %2375 = vadd.xlane.f32.xlu0 %v2372
    %v2376 = vpop.xlane.xlu0 %2375
    %v2377 = vmul.f32 %v2374, %v460
    %v2378 = vmul.f32 %v2376, %v460
    %v2379 = vadd.f32 %v2377, 1e-05
    %v2380 = vadd.f32 %v2378, 1e-05
    %v2381 = vrsqrt.pop %v2379
    %v2382 = vmul.f32 %v2381, %v2379
    %v2383 = vmul.f32 %v2382, %v2381
    %v2384 = vmul.f32 0.5, %v2383
    %v2385 = vsub.f32 1.5, %v2384
    %v2386 = vmul.f32 %v2381, %v2385
    %vm2387 = vweird.f32 %v2379
    %vm2388 = vweird.f32 %v2381
    %vm2389 = vmor %vm2387, %vm2388
    %v2390 = vsel %vm2389, %v2381, %v2386
    %v2391 = vrsqrt.pop %v2380
    %v2392 = vmul.f32 %v2391, %v2380
    %v2393 = vmul.f32 %v2392, %v2391
    %v2394 = vmul.f32 0.5, %v2393
    %v2395 = vsub.f32 1.5, %v2394
    %v2396 = vmul.f32 %v2391, %v2395
    %vm2397 = vweird.f32 %v2380
    %vm2398 = vweird.f32 %v2391
    %vm2399 = vmor %vm2397, %vm2398
    %v2400 = vsel %vm2399, %v2391, %v2396
    %v2401 = vmul.f32 %v2369, %v2390
    %v2402 = vmul.f32 %v2370, %v2400
    %v2403 = vld [vmem:[%s1649 + $0x2] sm:$0x1]
    %v2404 = vperm.slane %v2403, 0
    %v2405 = vmul.f32 %v2401, %v2404
    %v2406 = vmul.f32 %v2402, %v2404
    %v2407 = vld [vmem:[%s1654 + $0x2] sm:$0x1]
    %v2408 = vperm.slane %v2407, 0
    %v2409 = vadd.f32 %v2405, %v2408
    %v2410 = vadd.f32 %v2406, %v2408
    %v2411 = vrot.slane %v2409, 4
    %v2412 = vadd.f32 %v2409, %v2411
    %v2413 = vrot.slane %v2412, 2
    %v2414 = vadd.f32 %v2412, %v2413
    %v2415 = vrot.slane %v2414, 1
    %v2416 = vadd.f32 %v2414, %v2415
    %v2417 = vrot.slane %v2410, 4
    %v2418 = vadd.f32 %v2410, %v2417
    %v2419 = vrot.slane %v2418, 2
    %v2420 = vadd.f32 %v2418, %v2419
    %v2421 = vrot.slane %v2420, 1
    %v2422 = vadd.f32 %v2420, %v2421
    %v2423 = vmul.f32 %v2416, %v1275
    %v2424 = vmul.f32 %v2422, %v1275
    %vm2427 = vcmask 1041409
    %v2428 = vsel %vm2427, %v1277, %v1276
    %v2432 = vsel %vm2427, %v2424, %v2423
    %v2434 = vpack.c.bf16 %v2428, %v2428
    %v2435 = vpack.c.bf16 %v2432, %v2432
    %v2436 = vld [vmem:[#allocation7] sm:$0xf]
    %v2437 = vld [vmem:[#allocation7 + $0x4] sm:$0xf]
    %v2438 = vld [vmem:[#allocation7 + $0x8] sm:$0xf]
    %v2439 = vld [vmem:[#allocation7 + $0xc] sm:$0xf]
    %v2440 = vld [vmem:[#allocation7 + $0x10] sm:$0xf]
    %v2441 = vld [vmem:[#allocation7 + $0x14] sm:$0xf]
    %v2442 = vld [vmem:[#allocation7 + $0x18] sm:$0xf]
    %v2443 = vld [vmem:[#allocation7 + $0x1c] sm:$0xf]
    %v2444 = vld [vmem:[#allocation7 + $0x20] sm:$0xf]
    %v2445 = vld [vmem:[#allocation7 + $0x24] sm:$0xf]
    %v2446 = vld [vmem:[#allocation7 + $0x28] sm:$0xf]
    %v2447 = vld [vmem:[#allocation7 + $0x2c] sm:$0xf]
    %v2448 = vld [vmem:[#allocation7 + $0x30] sm:$0xf]
    %v2449 = vld [vmem:[#allocation7 + $0x34] sm:$0xf]
    %v2450 = vld [vmem:[#allocation7 + $0x38] sm:$0xf]
    %v2451 = vld [vmem:[#allocation7 + $0x3c] sm:$0xf]
    %v2452 = vld [vmem:[#allocation7 + $0x40] sm:$0xf]
    %v2453 = vld [vmem:[#allocation7 + $0x44] sm:$0xf]
    %v2454 = vld [vmem:[#allocation7 + $0x48] sm:$0xf]
    %v2455 = vld [vmem:[#allocation7 + $0x4c] sm:$0xf]
    %v2456 = vld [vmem:[#allocation7 + $0x50] sm:$0xf]
    %v2457 = vld [vmem:[#allocation7 + $0x54] sm:$0xf]
    %v2458 = vld [vmem:[#allocation7 + $0x58] sm:$0xf]
    %v2459 = vld [vmem:[#allocation7 + $0x5c] sm:$0xf]
    %v2460 = vld [vmem:[#allocation7 + $0x60] sm:$0xf]
    %v2461 = vld [vmem:[#allocation7 + $0x64] sm:$0xf]
    %v2462 = vld [vmem:[#allocation7 + $0x68] sm:$0xf]
    %v2463 = vld [vmem:[#allocation7 + $0x6c] sm:$0xf]
    %v2464 = vld [vmem:[#allocation7 + $0x70] sm:$0xf]
    %v2465 = vld [vmem:[#allocation7 + $0x74] sm:$0xf]
    %v2466 = vld [vmem:[#allocation7 + $0x78] sm:$0xf]
    %v2467 = vld [vmem:[#allocation7 + $0x7c] sm:$0xf]
    %v2468 = vld [vmem:[%s6] sm:$0x1]
    %v2470 = vperm.slane %v2468, 0
    %v2504 = vunpack.c.l.b16 %v2436
    %v2505 = vunpack.c.l.b16 %v2437
    %v2506 = vunpack.c.l.b16 %v2438
    %v2507 = vunpack.c.l.b16 %v2439
    %v2508 = vunpack.c.l.b16 %v2440
    %v2509 = vunpack.c.l.b16 %v2441
    %v2510 = vunpack.c.l.b16 %v2442
    %v2511 = vunpack.c.l.b16 %v2443
    %v2512 = vunpack.c.l.b16 %v2444
    %v2513 = vunpack.c.l.b16 %v2445
    %v2514 = vunpack.c.l.b16 %v2446
    %v2515 = vunpack.c.l.b16 %v2447
    %v2516 = vunpack.c.l.b16 %v2448
    %v2517 = vunpack.c.l.b16 %v2449
    %v2518 = vunpack.c.l.b16 %v2450
    %v2519 = vunpack.c.l.b16 %v2451
    %v2520 = vunpack.c.l.b16 %v2452
    %v2521 = vunpack.c.l.b16 %v2453
    %v2522 = vunpack.c.l.b16 %v2454
    %v2523 = vunpack.c.l.b16 %v2455
    %v2524 = vunpack.c.l.b16 %v2456
    %v2525 = vunpack.c.l.b16 %v2457
    %v2526 = vunpack.c.l.b16 %v2458
    %v2527 = vunpack.c.l.b16 %v2459
    %v2528 = vunpack.c.l.b16 %v2460
    %v2529 = vunpack.c.l.b16 %v2461
    %v2530 = vunpack.c.l.b16 %v2462
    %v2531 = vunpack.c.l.b16 %v2463
    %v2532 = vunpack.c.l.b16 %v2464
    %v2533 = vunpack.c.l.b16 %v2465
    %v2534 = vunpack.c.l.b16 %v2466
    %v2535 = vunpack.c.l.b16 %v2467
    %v2536 = vpack.c.b16 %v2505, %v2504
    %v2537 = vpack.c.b16 %v2507, %v2506
    %v2538 = vpack.c.b16 %v2509, %v2508
    %v2539 = vpack.c.b16 %v2511, %v2510
    %v2540 = vpack.c.b16 %v2513, %v2512
    %v2541 = vpack.c.b16 %v2515, %v2514
    %v2542 = vpack.c.b16 %v2517, %v2516
    %v2543 = vpack.c.b16 %v2519, %v2518
    %v2544 = vpack.c.b16 %v2521, %v2520
    %v2545 = vpack.c.b16 %v2523, %v2522
    %v2546 = vpack.c.b16 %v2525, %v2524
    %v2547 = vpack.c.b16 %v2527, %v2526
    %v2548 = vpack.c.b16 %v2529, %v2528
    %v2549 = vpack.c.b16 %v2531, %v2530
    %v2550 = vpack.c.b16 %v2533, %v2532
    %v2551 = vpack.c.b16 %v2535, %v2534
    %2568 = vmatpush.bf16.msra.mxu0 %v2543
    %2569 = vmatpush.bf16.msra.mxu0 %v2542
    %2570 = vmatpush.bf16.msra.mxu0 %v2541
    %2571 = vmatpush.bf16.msra.mxu0 %v2540
    %2572 = vmatpush.bf16.msra.mxu0 %v2539
    %2573 = vmatpush.bf16.msra.mxu0 %v2538
    %2574 = vmatpush.bf16.msra.mxu0 %v2537
    %2575 = vmatpush.bf16.msra.mxu0 %v2536
    %2576 = vmatmul.bf16.gmra.mxu0 %v2434
    %v2577 = vpop.f32.mrf.mxu0
    %v2578 = vadd.f32 %v2470, %v2577
    %v2579 = vpop.f32.mrf.mxu0
    %2580 = vdwg.mxu0
    %2581 = vmatpush.bf16.msra.mxu0 %v2551
    %2582 = vmatpush.bf16.msra.mxu0 %v2550
    %2583 = vmatpush.bf16.msra.mxu0 %v2549
    %2584 = vmatpush.bf16.msra.mxu0 %v2548
    %2585 = vmatpush.bf16.msra.mxu0 %v2547
    %2586 = vmatpush.bf16.msra.mxu0 %v2546
    %2587 = vmatpush.bf16.msra.mxu0 %v2545
    %2588 = vmatpush.bf16.msra.mxu0 %v2544
    %2589 = vmatmul.bf16.gmra.mxu0 %v2435
    %v2590 = vpop.f32.mrf.mxu0
    %v2591 = vadd.f32 %v2578, %v2590
    %v2592 = vpop.f32.mrf.mxu0
    %2593 = vdwg.mxu0
    %v2594 = vmax.f32 %v2591, 0.0
    %v2595 = vpack.c.bf16 %v2594, %v2594
    %v2596 = vld [vmem:[%s7] sm:$0xf]
    %v2597 = vld [vmem:[%s7 + $0x4] sm:$0xf]
    %v2598 = vld [vmem:[%s7 + $0x8] sm:$0xf]
    %v2599 = vld [vmem:[%s7 + $0xc] sm:$0xf]
    %v2600 = vld [vmem:[%s7 + $0x10] sm:$0xf]
    %v2601 = vld [vmem:[%s7 + $0x14] sm:$0xf]
    %v2602 = vld [vmem:[%s7 + $0x18] sm:$0xf]
    %v2603 = vld [vmem:[%s7 + $0x1c] sm:$0xf]
    %v2604 = vld [vmem:[%s7 + $0x20] sm:$0xf]
    %v2605 = vld [vmem:[%s7 + $0x24] sm:$0xf]
    %v2606 = vld [vmem:[%s7 + $0x28] sm:$0xf]
    %v2607 = vld [vmem:[%s7 + $0x2c] sm:$0xf]
    %v2608 = vld [vmem:[%s7 + $0x30] sm:$0xf]
    %v2609 = vld [vmem:[%s7 + $0x34] sm:$0xf]
    %v2610 = vld [vmem:[%s7 + $0x38] sm:$0xf]
    %v2611 = vld [vmem:[%s7 + $0x3c] sm:$0xf]
    %v2612 = vld [vmem:[%s8] sm:$0x1]
    %v2614 = vperm.slane %v2612, 0
    %v2632 = vunpack.c.l.b16 %v2596
    %v2633 = vunpack.c.l.b16 %v2597
    %v2634 = vunpack.c.l.b16 %v2598
    %v2635 = vunpack.c.l.b16 %v2599
    %v2636 = vunpack.c.l.b16 %v2600
    %v2637 = vunpack.c.l.b16 %v2601
    %v2638 = vunpack.c.l.b16 %v2602
    %v2639 = vunpack.c.l.b16 %v2603
    %v2640 = vunpack.c.l.b16 %v2604
    %v2641 = vunpack.c.l.b16 %v2605
    %v2642 = vunpack.c.l.b16 %v2606
    %v2643 = vunpack.c.l.b16 %v2607
    %v2644 = vunpack.c.l.b16 %v2608
    %v2645 = vunpack.c.l.b16 %v2609
    %v2646 = vunpack.c.l.b16 %v2610
    %v2647 = vunpack.c.l.b16 %v2611
    %v2648 = vpack.c.b16 %v2633, %v2632
    %v2649 = vpack.c.b16 %v2635, %v2634
    %v2650 = vpack.c.b16 %v2637, %v2636
    %v2651 = vpack.c.b16 %v2639, %v2638
    %v2652 = vpack.c.b16 %v2641, %v2640
    %v2653 = vpack.c.b16 %v2643, %v2642
    %v2654 = vpack.c.b16 %v2645, %v2644
    %v2655 = vpack.c.b16 %v2647, %v2646
    %2664 = vmatpush.bf16.msra.mxu0 %v2655
    %2665 = vmatpush.bf16.msra.mxu0 %v2654
    %2666 = vmatpush.bf16.msra.mxu0 %v2653
    %2667 = vmatpush.bf16.msra.mxu0 %v2652
    %2668 = vmatpush.bf16.msra.mxu0 %v2651
    %2669 = vmatpush.bf16.msra.mxu0 %v2650
    %2670 = vmatpush.bf16.msra.mxu0 %v2649
    %2671 = vmatpush.bf16.msra.mxu0 %v2648
    %2672 = vmatmul.bf16.gmra.mxu0 %v2595
    %v2673 = vpop.f32.mrf.mxu0
    %v2674 = vadd.f32 %v2614, %v2673
    %v2675 = vpop.f32.mrf.mxu0
    %2676 = vdwg.mxu0
    %v2677 = vmax.f32 %v2674, 0.0
    %v2678 = vpack.c.bf16 %v2677, %v2677
    %v2679 = vld [vmem:[%s9] sm:$0xf]
    %v2680 = vld [vmem:[%s9 + $0x4] sm:$0xf]
    %v2681 = vld [vmem:[%s9 + $0x8] sm:$0xf]
    %v2682 = vld [vmem:[%s9 + $0xc] sm:$0xf]
    %v2683 = vld [vmem:[%s9 + $0x10] sm:$0xf]
    %v2684 = vld [vmem:[%s9 + $0x14] sm:$0xf]
    %v2685 = vld [vmem:[%s9 + $0x18] sm:$0xf]
    %v2686 = vld [vmem:[%s9 + $0x1c] sm:$0xf]
    %v2687 = vld [vmem:[%s9 + $0x20] sm:$0xf]
    %v2688 = vld [vmem:[%s9 + $0x24] sm:$0xf]
    %v2689 = vld [vmem:[%s9 + $0x28] sm:$0xf]
    %v2690 = vld [vmem:[%s9 + $0x2c] sm:$0xf]
    %v2691 = vld [vmem:[%s9 + $0x30] sm:$0xf]
    %v2692 = vld [vmem:[%s9 + $0x34] sm:$0xf]
    %v2693 = vld [vmem:[%s9 + $0x38] sm:$0xf]
    %v2694 = vld [vmem:[%s9 + $0x3c] sm:$0xf]
    %v2695 = vld [vmem:[%s10] sm:$0x1]
    %v2697 = vperm.slane %v2695, 0
    %v2715 = vunpack.c.l.b16 %v2679
    %v2716 = vunpack.c.l.b16 %v2680
    %v2717 = vunpack.c.l.b16 %v2681
    %v2718 = vunpack.c.l.b16 %v2682
    %v2719 = vunpack.c.l.b16 %v2683
    %v2720 = vunpack.c.l.b16 %v2684
    %v2721 = vunpack.c.l.b16 %v2685
    %v2722 = vunpack.c.l.b16 %v2686
    %v2723 = vunpack.c.l.b16 %v2687
    %v2724 = vunpack.c.l.b16 %v2688
    %v2725 = vunpack.c.l.b16 %v2689
    %v2726 = vunpack.c.l.b16 %v2690
    %v2727 = vunpack.c.l.b16 %v2691
    %v2728 = vunpack.c.l.b16 %v2692
    %v2729 = vunpack.c.l.b16 %v2693
    %v2730 = vunpack.c.l.b16 %v2694
    %v2731 = vpack.c.b16 %v2716, %v2715
    %v2732 = vpack.c.b16 %v2718, %v2717
    %v2733 = vpack.c.b16 %v2720, %v2719
    %v2734 = vpack.c.b16 %v2722, %v2721
    %v2735 = vpack.c.b16 %v2724, %v2723
    %v2736 = vpack.c.b16 %v2726, %v2725
    %v2737 = vpack.c.b16 %v2728, %v2727
    %v2738 = vpack.c.b16 %v2730, %v2729
    %2747 = vmatpush.bf16.msra.mxu0 %v2738
    %2748 = vmatpush.bf16.msra.mxu0 %v2737
    %2749 = vmatpush.bf16.msra.mxu0 %v2736
    %2750 = vmatpush.bf16.msra.mxu0 %v2735
    %2751 = vmatpush.bf16.msra.mxu0 %v2734
    %2752 = vmatpush.bf16.msra.mxu0 %v2733
    %2753 = vmatpush.bf16.msra.mxu0 %v2732
    %2754 = vmatpush.bf16.msra.mxu0 %v2731
    %2755 = vmatmul.bf16.gmra.mxu0 %v2678
    %v2756 = vpop.f32.mrf.mxu0
    %v2757 = vadd.f32 %v2697, %v2756
    %v2758 = vpop.f32.mrf.mxu0
    %2759 = vdwg.mxu0
    %vm2760 = vcmask 50176
    %2761 = vst.msk [vmem:[#allocation8] sm:$0x3] %vm2760, %v2757
    // Predicated region
    $region58: #{tpu_custom_call.1} parent=1 // pred_check
      _
    $region59: #{tpu_custom_call.1} parent=1 // pred_check_branch
      %2763 = sbr.rel (0) target = $region61
    $region60: #{tpu_custom_call.1} parent=1 // pred_region
      %2765 = vsyncadd [#allocation4], 0
      %s2767 = sshll.u32 [#allocation8], 4
      %s2768 = int_to_ptr.vmem [resolvable:$true] %s2767
      %s2769 = sshll.u32 %s11, 4
      %s2770 = int_to_ptr.hbm [resolvable:$true] %s2769
      %2772 = dma.vmem_to_hbm [thread:$0]  %s2768, 32, %s2770, [#allocation4]
    $region61: #{tpu_custom_call.1} parent=1 // pred_fallthru
      _
    // Predicated region
    $region62: #{tpu_custom_call.1} parent=1 // pred_check
      _
    $region63: #{tpu_custom_call.1} parent=1 // pred_check_branch
      %2774 = sbr.rel (0) target = $region65
    $region64: #{tpu_custom_call.1} parent=1 // pred_region
      %2776 = dma.done [#allocation4], 32
    $region65: #{tpu_custom_call.1} parent=1 // pred_fallthru
      _
    %2777 = vsyncpa [#allocation3], 1
    %2778 = vsyncpa [#allocation6], 1
    %2779 = vsyncpa [#allocation4], 1

</llo_original>
